<compile_context>
chip_gen: v6e
topology: v6e:2x2x1
jax: 0.10.0
libtpu: 0.0.40
codegen_flags: <defaults>
</compile_context>

<pallas_src>
import functools

import jax
import jax.numpy as jnp
from jax import lax
from jax.experimental import pallas as pl
from jax.experimental.pallas import tpu as pltpu

LEAKY_SLOPE = 0.2
BN_EPS = 1e-5
LANES = 128

# (weight key, (gamma key, beta key) or None, stride, pad)
LAYERS = (
    ("w1", None, 2, 1),
    ("w2", ("g2", "b2"), 2, 1),
    ("w3", ("g3", "b3"), 2, 1),
    ("w4", ("g4", "b4"), 2, 1),
    ("w5", None, 1, 0),
)


# ----------------------------------------------------------------------------
# Pallas kernels
# ----------------------------------------------------------------------------
def _apply_act(z, act):
    if act == "leaky":
        return jnp.where(z > 0, z, LEAKY_SLOPE * z)
    if act == "sigmoid":
        return pl.reciprocal(1.0 + jnp.exp(-z), approx=True)
    return z


def _gemm_act_kernel(a_ref, w_ref, o_ref, *, act):
    """One row tile of o = act(A @ W).  No stats, parallel-safe."""
    y = jnp.dot(a_ref[...], w_ref[...], preferred_element_type=jnp.float32)
    o_ref[...] = _apply_act(y, act)


def _gemm_bn_act_kernel(a_ref, w_ref, gamma_ref, beta_ref, o_ref, *, act, tm):
    """Fused Conv-GEMM + training-mode BatchNorm + activation.

    The (M, Cp) output block is resident in VMEM across the whole row grid:
    each step stores its raw GEMM tile into it; the last step computes the
    per-channel batch mean / centered variance over the full block and
    overwrites it with the normalized + activated result (single HBM write).
    """
    i = pl.program_id(0)
    y = jnp.dot(a_ref[...], w_ref[...], preferred_element_type=jnp.float32)
    r0 = pl.multiple_of(i * tm, tm)
    o_ref[pl.ds(r0, tm), :] = y

    @pl.when(i == pl.num_programs(0) - 1)
    def _():
        yf = o_ref[...]                                   # (M, Cp) raw GEMM
        m = yf.shape[0]
        mean = jnp.sum(yf, axis=0, keepdims=True) * (1.0 / m)
        d = yf - mean
        var = jnp.sum(d * d, axis=0, keepdims=True) * (1.0 / m)   # biased var
        scale = gamma_ref[...] * lax.rsqrt(var + BN_EPS)
        o_ref[...] = _apply_act(d * scale + beta_ref[...], act)


def _row_tile(m):
    for t in (1024, 512, 256, 128):
        if m % t == 0:
            return t
    return m  # small M: whole array as one block (full-dim exemption)


def gemm_act(patches, w2d, act):
    M, K = patches.shape
    _, Cp = w2d.shape
    tm = _row_tile(M)
    return pl.pallas_call(
        functools.partial(_gemm_act_kernel, act=act),
        out_shape=jax.ShapeDtypeStruct((M, Cp), jnp.float32),
        grid_spec=pltpu.PrefetchScalarGridSpec(
            num_scalar_prefetch=0,
            grid=(M // tm,),
            in_specs=[pl.BlockSpec((tm, K), lambda i: (i, 0)),
                      pl.BlockSpec((K, Cp), lambda i: (0, 0))],
            out_specs=pl.BlockSpec((tm, Cp), lambda i: (i, 0))),
        compiler_params=pltpu.CompilerParams(
            dimension_semantics=("parallel",)),
    )(patches, w2d)


def gemm_bn_act(patches, w2d, gamma_p, beta_p, act):
    M, K = patches.shape
    _, Cp = w2d.shape
    tm = _row_tile(M)
    return pl.pallas_call(
        functools.partial(_gemm_bn_act_kernel, act=act, tm=tm),
        out_shape=jax.ShapeDtypeStruct((M, Cp), jnp.float32),
        grid_spec=pltpu.PrefetchScalarGridSpec(
            num_scalar_prefetch=0,
            grid=(M // tm,),
            in_specs=[pl.BlockSpec((tm, K), lambda i: (i, 0)),
                      pl.BlockSpec((K, Cp), lambda i: (0, 0)),
                      pl.BlockSpec((1, Cp), lambda i: (0, 0)),
                      pl.BlockSpec((1, Cp), lambda i: (0, 0))],
            # Output block is the whole array and resident across the grid.
            out_specs=pl.BlockSpec((M, Cp), lambda i: (0, 0))),
        compiler_params=pltpu.CompilerParams(
            dimension_semantics=("arbitrary",)),
    )(patches, w2d, gamma_p, beta_p)


# ----------------------------------------------------------------------------
# Plain-JAX glue: im2col + parameter preparation + layer assembly
# ----------------------------------------------------------------------------
def im2col(x_nhwc, k, stride, pad):
    # TODO(synk): replace with an in-kernel kH*kW shifted-window K grid at
    #             real DCGAN sizes to avoid the 16x activation HBM reads.
    N, H, W, C = x_nhwc.shape
    xp = jnp.pad(x_nhwc, ((0, 0), (pad, pad), (pad, pad), (0, 0)))
    Ho = (H + 2 * pad - k) // stride + 1
    Wo = (W + 2 * pad - k) // stride + 1
    cols = []
    for i in range(k):
        for j in range(k):
            cols.append(lax.slice(
                xp,
                (0, i, j, 0),
                (N, i + stride * (Ho - 1) + 1, j + stride * (Wo - 1) + 1, C),
                (1, stride, stride, 1)))            # (N, Ho, Wo, C)
    patches = jnp.stack(cols, axis=3)                # (N, Ho, Wo, k*k, C)
    return patches.reshape(N * Ho * Wo, k * k * C), Ho, Wo


def prepare_params(params):
    """One-time (hoisted) conversion of PyTorch-style params to GEMM form.

    OIHW weights -> (kH*kW*Cin, Cp) bf16 with the output-channel axis zero
    padded to a multiple of 128 lanes; gamma/beta zero-padded to (1, Cp) f32
    (zero pad keeps the padded channels exactly zero through BN + LeakyReLU).
    """
    prep = {}
    couts = []
    for wk, bn, _, _ in LAYERS:
        w = params[wk]
        cout, cin, kh, kw = w.shape
        couts.append(cout)
        cp = -(-cout // LANES) * LANES
        w2d = jnp.transpose(w, (2, 3, 1, 0)).reshape(kh * kw * cin, cout)
        prep[wk] = jnp.pad(w2d, ((0, 0), (0, cp - cout))).astype(jnp.bfloat16)
        if bn is not None:
            gk, bk = bn
            prep[gk] = jnp.pad(params[gk], (0, cp - cout)
                               ).reshape(1, cp).astype(jnp.float32)
            prep[bk] = jnp.pad(params[bk], (0, cp - cout)
                               ).reshape(1, cp).astype(jnp.float32)
    return prep, tuple(couts)


def discriminator_forward(prep, x_nchw, couts):
    x = jnp.transpose(x_nchw, (0, 2, 3, 1))                        # NCHW->NHWC
    acts = ("leaky", "leaky", "leaky", "leaky", "sigmoid")
    for (wk, bn, stride, pad), cout, act in zip(LAYERS, couts, acts):
        N = x.shape[0]
        patches, Ho, Wo = im2col(x.astype(jnp.bfloat16), 4, stride, pad)
        if bn is not None:
            y = gemm_bn_act(patches, prep[wk], prep[bn[0]], prep[bn[1]], act)
        else:
            y = gemm_act(patches, prep[wk], act)
        x = y[:, :cout].reshape(N, Ho, Wo, cout)     # drop lane padding
    return jnp.transpose(x, (0, 3, 1, 2))                          # NHWC->NCHW


def init_params(key, num_channels, feat):
    ks = jax.random.split(key, 5)

    def conv_w(k, cout, cin):
        return 0.02 * jax.random.normal(k, (cout, cin, 4, 4), jnp.float32)

    return {
        "w1": conv_w(ks[0], feat, num_channels),
        "w2": conv_w(ks[1], 2 * feat, feat),
        "g2": jnp.ones((2 * feat,), jnp.float32),
        "b2": jnp.zeros((2 * feat,), jnp.float32),
        "w3": conv_w(ks[2], 4 * feat, 2 * feat),
        "g3": jnp.ones((4 * feat,), jnp.float32),
        "b3": jnp.zeros((4 * feat,), jnp.float32),
        "w4": conv_w(ks[3], 8 * feat, 4 * feat),
        "g4": jnp.ones((8 * feat,), jnp.float32),
        "b4": jnp.zeros((8 * feat,), jnp.float32),
        "w5": conv_w(ks[4], 1, 8 * feat),
    }


# ----------------------------------------------------------------------------
# Pure-JAX reference (for correctness check)
# ----------------------------------------------------------------------------
def _ref_conv(x, w, stride, pad):
    return lax.conv_general_dilated(
        x, w, (stride, stride), [(pad, pad), (pad, pad)],
        dimension_numbers=("NCHW", "OIHW", "NCHW"),
        precision=lax.Precision.HIGHEST)


def reference_forward(params, x):
    def leaky(v):
        return jnp.where(v > 0, v, LEAKY_SLOPE * v)

    def bn(v, g, b):
        m = jnp.mean(v, axis=(0, 2, 3), keepdims=True)
        var = jnp.mean((v - m) ** 2, axis=(0, 2, 3), keepdims=True)
        return ((v - m) * lax.rsqrt(var + BN_EPS) * g.reshape(1, -1, 1, 1)
                + b.reshape(1, -1, 1, 1))

    v = leaky(_ref_conv(x, params["w1"], 2, 1))
    v = leaky(bn(_ref_conv(v, params["w2"], 2, 1), params["g2"], params["b2"]))
    v = leaky(bn(_ref_conv(v, params["w3"], 2, 1), params["g3"], params["b3"]))
    v = leaky(bn(_ref_conv(v, params["w4"], 2, 1), params["g4"], params["b4"]))
    v = jax.nn.sigmoid(_ref_conv(v, params["w5"], 1, 0))
    return v


if __name__ == "__main__":
    # DCGAN discriminator geometry: four 4x4/stride-2 convs need a 64x64 input
    # to reach the final 4x4 -> 1x1 valid conv.  Small config: 3 ch, feat=8.
    NUM_CHANNELS, FEAT, BATCH, SPATIAL = 3, 8, 2, 64

    key = jax.random.PRNGKey(0)
    kp, kx = jax.random.split(key)
    params = init_params(kp, NUM_CHANNELS, FEAT)
    x = jax.random.normal(kx, (BATCH, NUM_CHANNELS, SPATIAL, SPATIAL),
                          jnp.float32)

    prep, couts = prepare_params(params)          # hoisted weight prep
    fwd = jax.jit(functools.partial(discriminator_forward, couts=couts))

    out = fwd(prep, x)
    out = jax.block_until_ready(out)

    ref = reference_forward(params, x)
    assert out.shape == (BATCH, 1, 1, 1), out.shape
    # bf16 MXU operands (f32 accumulation) -> slightly looser tolerance than
    # the all-f32 reference.
    assert jnp.allclose(out, ref, atol=2e-2, rtol=2e-2), (out, ref)
    print("KERNEL_OK")
</pallas_src>

<mosaic_0001>
module attributes {stable_mosaic.version = 11 : i64} {
  func.func @_gemm_act_kernel(%arg0: i32, %arg1: memref<1024x48xbf16, #tpu.memory_space<vmem>>, %arg2: memref<48x128xbf16, #tpu.memory_space<vmem>>, %arg3: memref<1024x128xf32, #tpu.memory_space<vmem>>) attributes {dimension_semantics = [#tpu.dimension_semantics<parallel>], iteration_bounds = array<i64: 2>, scalar_prefetch = 0 : i64, scratch_operands = 0 : i64, tpu.core_type = #tpu.core_type<tc>, window_params = [{transform_indices = @transform_0, window_bounds = array<i64: 1024, 48>}, {pipeline_mode = #tpu.pipeline_mode<synchronous>, transform_indices = @transform_1, window_bounds = array<i64: 48, 128>}, {transform_indices = @transform_2, window_bounds = array<i64: 1024, 128>}]} {
    %c0 = arith.constant 0 : index
    %c0_0 = arith.constant 0 : index
    %0 = vector.load %arg1[%c0, %c0_0] : memref<1024x48xbf16, #tpu.memory_space<vmem>>, vector<1024x48xbf16>
    %c0_1 = arith.constant 0 : index
    %c0_2 = arith.constant 0 : index
    %1 = vector.load %arg2[%c0_1, %c0_2] : memref<48x128xbf16, #tpu.memory_space<vmem>>, vector<48x128xbf16>
    %cst = arith.constant dense<0.000000e+00> : vector<1024x128xf32>
    %2 = tpu.matmul %0, %1, %cst {dimension_numbers = #tpu.dot_dimension_numbers<[1], [0], [0], [1], [0, 0, 1, 1], [], []>} : vector<1024x48xbf16>, vector<48x128xbf16>, vector<1024x128xf32> -> vector<1024x128xf32>
    %cst_3 = arith.constant 0.000000e+00 : f32
    %3 = vector.broadcast %cst_3 : f32 to vector<1024x128xf32>
    %4 = arith.cmpf ogt, %2, %3 : vector<1024x128xf32>
    %cst_4 = arith.constant 2.000000e-01 : f32
    %5 = vector.broadcast %cst_4 : f32 to vector<1024x128xf32>
    %6 = arith.mulf %5, %2 : vector<1024x128xf32>
    %7 = arith.select %4, %2, %6 : vector<1024x128xi1>, vector<1024x128xf32>
    %c0_5 = arith.constant 0 : index
    %c0_6 = arith.constant 0 : index
    %8 = vector.load %arg3[%c0_5, %c0_6] : memref<1024x128xf32, #tpu.memory_space<vmem>>, vector<1024x128xf32>
    tpu.vector_store %arg3[%c0_5, %c0_6], %7 {strides = array<i32>} : memref<1024x128xf32, #tpu.memory_space<vmem>>, vector<1024x128xf32>,
    return
  }
  func.func @transform_0(%arg0: i32) -> (i32, i32) {
    %c0_i32 = arith.constant 0 : i32
    %c0_i32_0 = arith.constant 0 : i32
    return %arg0, %c0_i32 : i32, i32
  }
  func.func @transform_1(%arg0: i32) -> (i32, i32) {
    %c0_i32 = arith.constant 0 : i32
    %c0_i32_0 = arith.constant 0 : i32
    %c0_i32_1 = arith.constant 0 : i32
    return %c0_i32, %c0_i32_0 : i32, i32
  }
  func.func @transform_2(%arg0: i32) -> (i32, i32) {
    %c0_i32 = arith.constant 0 : i32
    %c0_i32_0 = arith.constant 0 : i32
    return %arg0, %c0_i32 : i32, i32
  }
}

module attributes {stable_mosaic.version = 11 : i64} {
  func.func @_gemm_bn_act_kernel(%arg0: i32, %arg1: memref<512x128xbf16, #tpu.memory_space<vmem>>, %arg2: memref<128x128xbf16, #tpu.memory_space<vmem>>, %arg3: memref<1x128xf32, #tpu.memory_space<vmem>>, %arg4: memref<1x128xf32, #tpu.memory_space<vmem>>, %arg5: memref<512x128xf32, #tpu.memory_space<vmem>>) attributes {dimension_semantics = [#tpu.dimension_semantics<arbitrary>], iteration_bounds = array<i64: 1>, scalar_prefetch = 0 : i64, scratch_operands = 0 : i64, tpu.core_type = #tpu.core_type<tc>, window_params = [{transform_indices = @transform_0, window_bounds = array<i64: 512, 128>}, {pipeline_mode = #tpu.pipeline_mode<synchronous>, transform_indices = @transform_1, window_bounds = array<i64: 128, 128>}, {pipeline_mode = #tpu.pipeline_mode<synchronous>, transform_indices = @transform_2, window_bounds = array<i64: 1, 128>}, {pipeline_mode = #tpu.pipeline_mode<synchronous>, transform_indices = @transform_3, window_bounds = array<i64: 1, 128>}, {pipeline_mode = #tpu.pipeline_mode<synchronous>, transform_indices = @transform_4, window_bounds = array<i64: 512, 128>}]} {
    %c0 = arith.constant 0 : index
    %c0_0 = arith.constant 0 : index
    %0 = vector.load %arg1[%c0, %c0_0] : memref<512x128xbf16, #tpu.memory_space<vmem>>, vector<512x128xbf16>
    %c0_1 = arith.constant 0 : index
    %c0_2 = arith.constant 0 : index
    %1 = vector.load %arg2[%c0_1, %c0_2] : memref<128x128xbf16, #tpu.memory_space<vmem>>, vector<128x128xbf16>
    %cst = arith.constant dense<0.000000e+00> : vector<512x128xf32>
    %2 = tpu.matmul %0, %1, %cst {dimension_numbers = #tpu.dot_dimension_numbers<[1], [0], [0], [1], [0, 0, 1, 1], [], []>} : vector<512x128xbf16>, vector<128x128xbf16>, vector<512x128xf32> -> vector<512x128xf32>
    %c512_i32 = arith.constant 512 : i32
    %3 = arith.muli %arg0, %c512_i32 : i32
    %4 = tpu.assume_multiple %3, 512 : i32
    %5 = arith.index_cast %4 : i32 to index
    %c0_3 = arith.constant 0 : index
    %6 = vector.load %arg5[%5, %c0_3] : memref<512x128xf32, #tpu.memory_space<vmem>>, vector<512x128xf32>
    tpu.vector_store %arg5[%5, %c0_3], %2 {strides = array<i32>} : memref<512x128xf32, #tpu.memory_space<vmem>>, vector<512x128xf32>,
    %c0_i32 = arith.constant 0 : i32
    %7 = arith.cmpi eq, %arg0, %c0_i32 : i32
    %8 = arith.extui %7 : i1 to i32
    %c0_i32_4 = arith.constant 0 : i32
    %9 = arith.cmpi ne, %8, %c0_i32_4 : i32
    scf.if %9 {
      %c0_5 = arith.constant 0 : index
      %c0_6 = arith.constant 0 : index
      %10 = vector.load %arg5[%c0_5, %c0_6] : memref<512x128xf32, #tpu.memory_space<vmem>>, vector<512x128xf32>
      %cst_7 = arith.constant dense<0.000000e+00> : vector<128xf32>
      %11 = vector.multi_reduction <add>, %10, %cst_7 [0] : vector<512x128xf32> to vector<128xf32>
      %12 = vector.shape_cast %11 : vector<128xf32> to vector<1x128xf32>
      %cst_8 = arith.constant 0.001953125 : f32
      %13 = vector.broadcast %cst_8 : f32 to vector<1x128xf32>
      %14 = arith.mulf %12, %13 : vector<1x128xf32>
      %15 = vector.broadcast %14 : vector<1x128xf32> to vector<512x128xf32>
      %16 = arith.subf %10, %15 : vector<512x128xf32>
      %17 = arith.mulf %16, %16 : vector<512x128xf32>
      %cst_9 = arith.constant dense<0.000000e+00> : vector<128xf32>
      %18 = vector.multi_reduction <add>, %17, %cst_9 [0] : vector<512x128xf32> to vector<128xf32>
      %19 = vector.shape_cast %18 : vector<128xf32> to vector<1x128xf32>
      %cst_10 = arith.constant 0.001953125 : f32
      %20 = vector.broadcast %cst_10 : f32 to vector<1x128xf32>
      %21 = arith.mulf %19, %20 : vector<1x128xf32>
      %c0_11 = arith.constant 0 : index
      %c0_12 = arith.constant 0 : index
      %22 = vector.load %arg3[%c0_11, %c0_12] : memref<1x128xf32, #tpu.memory_space<vmem>>, vector<1x128xf32>
      %cst_13 = arith.constant 9.99999974E-6 : f32
      %23 = vector.broadcast %cst_13 : f32 to vector<1x128xf32>
      %24 = arith.addf %21, %23 : vector<1x128xf32>
      %25 = math.rsqrt %24 : vector<1x128xf32>
      %26 = arith.mulf %22, %25 : vector<1x128xf32>
      %27 = vector.broadcast %26 : vector<1x128xf32> to vector<512x128xf32>
      %28 = arith.mulf %16, %27 : vector<512x128xf32>
      %c0_14 = arith.constant 0 : index
      %c0_15 = arith.constant 0 : index
      %29 = vector.load %arg4[%c0_14, %c0_15] : memref<1x128xf32, #tpu.memory_space<vmem>>, vector<1x128xf32>
      %30 = vector.broadcast %29 : vector<1x128xf32> to vector<512x128xf32>
      %31 = arith.addf %28, %30 : vector<512x128xf32>
      %cst_16 = arith.constant 0.000000e+00 : f32
      %32 = vector.broadcast %cst_16 : f32 to vector<512x128xf32>
      %33 = arith.cmpf ogt, %31, %32 : vector<512x128xf32>
      %cst_17 = arith.constant 2.000000e-01 : f32
      %34 = vector.broadcast %cst_17 : f32 to vector<512x128xf32>
      %35 = arith.mulf %34, %31 : vector<512x128xf32>
      %36 = arith.select %33, %31, %35 : vector<512x128xi1>, vector<512x128xf32>
      %c0_18 = arith.constant 0 : index
      %c0_19 = arith.constant 0 : index
      %37 = vector.load %arg5[%c0_18, %c0_19] : memref<512x128xf32, #tpu.memory_space<vmem>>, vector<512x128xf32>
      tpu.vector_store %arg5[%c0_18, %c0_19], %36 {strides = array<i32>} : memref<512x128xf32, #tpu.memory_space<vmem>>, vector<512x128xf32>,
    } else {
    }
    return
  }
  func.func @transform_0(%arg0: i32) -> (i32, i32) {
    %c0_i32 = arith.constant 0 : i32
    %c0_i32_0 = arith.constant 0 : i32
    return %arg0, %c0_i32 : i32, i32
  }
  func.func @transform_1(%arg0: i32) -> (i32, i32) {
    %c0_i32 = arith.constant 0 : i32
    %c0_i32_0 = arith.constant 0 : i32
    %c0_i32_1 = arith.constant 0 : i32
    return %c0_i32, %c0_i32_0 : i32, i32
  }
  func.func @transform_2(%arg0: i32) -> (i32, i32) {
    %c0_i32 = arith.constant 0 : i32
    %c0_i32_0 = arith.constant 0 : i32
    %c0_i32_1 = arith.constant 0 : i32
    return %c0_i32, %c0_i32_0 : i32, i32
  }
  func.func @transform_3(%arg0: i32) -> (i32, i32) {
    %c0_i32 = arith.constant 0 : i32
    %c0_i32_0 = arith.constant 0 : i32
    %c0_i32_1 = arith.constant 0 : i32
    return %c0_i32, %c0_i32_0 : i32, i32
  }
  func.func @transform_4(%arg0: i32) -> (i32, i32) {
    %c0_i32 = arith.constant 0 : i32
    %c0_i32_0 = arith.constant 0 : i32
    %c0_i32_1 = arith.constant 0 : i32
    return %c0_i32, %c0_i32_0 : i32, i32
  }
}

module attributes {stable_mosaic.version = 11 : i64} {
  func.func @_gemm_bn_act_kernel(%arg0: i32, %arg1: memref<128x256xbf16, #tpu.memory_space<vmem>>, %arg2: memref<256x128xbf16, #tpu.memory_space<vmem>>, %arg3: memref<1x128xf32, #tpu.memory_space<vmem>>, %arg4: memref<1x128xf32, #tpu.memory_space<vmem>>, %arg5: memref<128x128xf32, #tpu.memory_space<vmem>>) attributes {dimension_semantics = [#tpu.dimension_semantics<arbitrary>], iteration_bounds = array<i64: 1>, scalar_prefetch = 0 : i64, scratch_operands = 0 : i64, tpu.core_type = #tpu.core_type<tc>, window_params = [{transform_indices = @transform_0, window_bounds = array<i64: 128, 256>}, {pipeline_mode = #tpu.pipeline_mode<synchronous>, transform_indices = @transform_1, window_bounds = array<i64: 256, 128>}, {pipeline_mode = #tpu.pipeline_mode<synchronous>, transform_indices = @transform_2, window_bounds = array<i64: 1, 128>}, {pipeline_mode = #tpu.pipeline_mode<synchronous>, transform_indices = @transform_3, window_bounds = array<i64: 1, 128>}, {pipeline_mode = #tpu.pipeline_mode<synchronous>, transform_indices = @transform_4, window_bounds = array<i64: 128, 128>}]} {
    %c0 = arith.constant 0 : index
    %c0_0 = arith.constant 0 : index
    %0 = vector.load %arg1[%c0, %c0_0] : memref<128x256xbf16, #tpu.memory_space<vmem>>, vector<128x256xbf16>
    %c0_1 = arith.constant 0 : index
    %c0_2 = arith.constant 0 : index
    %1 = vector.load %arg2[%c0_1, %c0_2] : memref<256x128xbf16, #tpu.memory_space<vmem>>, vector<256x128xbf16>
    %cst = arith.constant dense<0.000000e+00> : vector<128x128xf32>
    %2 = tpu.matmul %0, %1, %cst {dimension_numbers = #tpu.dot_dimension_numbers<[1], [0], [0], [1], [0, 0, 1, 1], [], []>} : vector<128x256xbf16>, vector<256x128xbf16>, vector<128x128xf32> -> vector<128x128xf32>
    %c128_i32 = arith.constant 128 : i32
    %3 = arith.muli %arg0, %c128_i32 : i32
    %4 = tpu.assume_multiple %3, 128 : i32
    %5 = arith.index_cast %4 : i32 to index
    %c0_3 = arith.constant 0 : index
    %6 = vector.load %arg5[%5, %c0_3] : memref<128x128xf32, #tpu.memory_space<vmem>>, vector<128x128xf32>
    tpu.vector_store %arg5[%5, %c0_3], %2 {strides = array<i32>} : memref<128x128xf32, #tpu.memory_space<vmem>>, vector<128x128xf32>,
    %c0_i32 = arith.constant 0 : i32
    %7 = arith.cmpi eq, %arg0, %c0_i32 : i32
    %8 = arith.extui %7 : i1 to i32
    %c0_i32_4 = arith.constant 0 : i32
    %9 = arith.cmpi ne, %8, %c0_i32_4 : i32
    scf.if %9 {
      %c0_5 = arith.constant 0 : index
      %c0_6 = arith.constant 0 : index
      %10 = vector.load %arg5[%c0_5, %c0_6] : memref<128x128xf32, #tpu.memory_space<vmem>>, vector<128x128xf32>
      %cst_7 = arith.constant dense<0.000000e+00> : vector<128xf32>
      %11 = vector.multi_reduction <add>, %10, %cst_7 [0] : vector<128x128xf32> to vector<128xf32>
      %12 = vector.shape_cast %11 : vector<128xf32> to vector<1x128xf32>
      %cst_8 = arith.constant 7.812500e-03 : f32
      %13 = vector.broadcast %cst_8 : f32 to vector<1x128xf32>
      %14 = arith.mulf %12, %13 : vector<1x128xf32>
      %15 = vector.broadcast %14 : vector<1x128xf32> to vector<128x128xf32>
      %16 = arith.subf %10, %15 : vector<128x128xf32>
      %17 = arith.mulf %16, %16 : vector<128x128xf32>
      %cst_9 = arith.constant dense<0.000000e+00> : vector<128xf32>
      %18 = vector.multi_reduction <add>, %17, %cst_9 [0] : vector<128x128xf32> to vector<128xf32>
      %19 = vector.shape_cast %18 : vector<128xf32> to vector<1x128xf32>
      %cst_10 = arith.constant 7.812500e-03 : f32
      %20 = vector.broadcast %cst_10 : f32 to vector<1x128xf32>
      %21 = arith.mulf %19, %20 : vector<1x128xf32>
      %c0_11 = arith.constant 0 : index
      %c0_12 = arith.constant 0 : index
      %22 = vector.load %arg3[%c0_11, %c0_12] : memref<1x128xf32, #tpu.memory_space<vmem>>, vector<1x128xf32>
      %cst_13 = arith.constant 9.99999974E-6 : f32
      %23 = vector.broadcast %cst_13 : f32 to vector<1x128xf32>
      %24 = arith.addf %21, %23 : vector<1x128xf32>
      %25 = math.rsqrt %24 : vector<1x128xf32>
      %26 = arith.mulf %22, %25 : vector<1x128xf32>
      %27 = vector.broadcast %26 : vector<1x128xf32> to vector<128x128xf32>
      %28 = arith.mulf %16, %27 : vector<128x128xf32>
      %c0_14 = arith.constant 0 : index
      %c0_15 = arith.constant 0 : index
      %29 = vector.load %arg4[%c0_14, %c0_15] : memref<1x128xf32, #tpu.memory_space<vmem>>, vector<1x128xf32>
      %30 = vector.broadcast %29 : vector<1x128xf32> to vector<128x128xf32>
      %31 = arith.addf %28, %30 : vector<128x128xf32>
      %cst_16 = arith.constant 0.000000e+00 : f32
      %32 = vector.broadcast %cst_16 : f32 to vector<128x128xf32>
      %33 = arith.cmpf ogt, %31, %32 : vector<128x128xf32>
      %cst_17 = arith.constant 2.000000e-01 : f32
      %34 = vector.broadcast %cst_17 : f32 to vector<128x128xf32>
      %35 = arith.mulf %34, %31 : vector<128x128xf32>
      %36 = arith.select %33, %31, %35 : vector<128x128xi1>, vector<128x128xf32>
      %c0_18 = arith.constant 0 : index
      %c0_19 = arith.constant 0 : index
      %37 = vector.load %arg5[%c0_18, %c0_19] : memref<128x128xf32, #tpu.memory_space<vmem>>, vector<128x128xf32>
      tpu.vector_store %arg5[%c0_18, %c0_19], %36 {strides = array<i32>} : memref<128x128xf32, #tpu.memory_space<vmem>>, vector<128x128xf32>,
    } else {
    }
    return
  }
  func.func @transform_0(%arg0: i32) -> (i32, i32) {
    %c0_i32 = arith.constant 0 : i32
    %c0_i32_0 = arith.constant 0 : i32
    return %arg0, %c0_i32 : i32, i32
  }
  func.func @transform_1(%arg0: i32) -> (i32, i32) {
    %c0_i32 = arith.constant 0 : i32
    %c0_i32_0 = arith.constant 0 : i32
    %c0_i32_1 = arith.constant 0 : i32
    return %c0_i32, %c0_i32_0 : i32, i32
  }
  func.func @transform_2(%arg0: i32) -> (i32, i32) {
    %c0_i32 = arith.constant 0 : i32
    %c0_i32_0 = arith.constant 0 : i32
    %c0_i32_1 = arith.constant 0 : i32
    return %c0_i32, %c0_i32_0 : i32, i32
  }
  func.func @transform_3(%arg0: i32) -> (i32, i32) {
    %c0_i32 = arith.constant 0 : i32
    %c0_i32_0 = arith.constant 0 : i32
    %c0_i32_1 = arith.constant 0 : i32
    return %c0_i32, %c0_i32_0 : i32, i32
  }
  func.func @transform_4(%arg0: i32) -> (i32, i32) {
    %c0_i32 = arith.constant 0 : i32
    %c0_i32_0 = arith.constant 0 : i32
    %c0_i32_1 = arith.constant 0 : i32
    return %c0_i32, %c0_i32_0 : i32, i32
  }
}

module attributes {stable_mosaic.version = 11 : i64} {
  func.func @_gemm_bn_act_kernel(%arg0: i32, %arg1: memref<32x512xbf16, #tpu.memory_space<vmem>>, %arg2: memref<512x128xbf16, #tpu.memory_space<vmem>>, %arg3: memref<1x128xf32, #tpu.memory_space<vmem>>, %arg4: memref<1x128xf32, #tpu.memory_space<vmem>>, %arg5: memref<32x128xf32, #tpu.memory_space<vmem>>) attributes {dimension_semantics = [#tpu.dimension_semantics<arbitrary>], iteration_bounds = array<i64: 1>, scalar_prefetch = 0 : i64, scratch_operands = 0 : i64, tpu.core_type = #tpu.core_type<tc>, window_params = [{transform_indices = @transform_0, window_bounds = array<i64: 32, 512>}, {pipeline_mode = #tpu.pipeline_mode<synchronous>, transform_indices = @transform_1, window_bounds = array<i64: 512, 128>}, {pipeline_mode = #tpu.pipeline_mode<synchronous>, transform_indices = @transform_2, window_bounds = array<i64: 1, 128>}, {pipeline_mode = #tpu.pipeline_mode<synchronous>, transform_indices = @transform_3, window_bounds = array<i64: 1, 128>}, {pipeline_mode = #tpu.pipeline_mode<synchronous>, transform_indices = @transform_4, window_bounds = array<i64: 32, 128>}]} {
    %c0 = arith.constant 0 : index
    %c0_0 = arith.constant 0 : index
    %0 = vector.load %arg1[%c0, %c0_0] : memref<32x512xbf16, #tpu.memory_space<vmem>>, vector<32x512xbf16>
    %c0_1 = arith.constant 0 : index
    %c0_2 = arith.constant 0 : index
    %1 = vector.load %arg2[%c0_1, %c0_2] : memref<512x128xbf16, #tpu.memory_space<vmem>>, vector<512x128xbf16>
    %cst = arith.constant dense<0.000000e+00> : vector<32x128xf32>
    %2 = tpu.matmul %0, %1, %cst {dimension_numbers = #tpu.dot_dimension_numbers<[1], [0], [0], [1], [0, 0, 1, 1], [], []>} : vector<32x512xbf16>, vector<512x128xbf16>, vector<32x128xf32> -> vector<32x128xf32>
    %c32_i32 = arith.constant 32 : i32
    %3 = arith.muli %arg0, %c32_i32 : i32
    %4 = tpu.assume_multiple %3, 32 : i32
    %5 = arith.index_cast %4 : i32 to index
    %c0_3 = arith.constant 0 : index
    %6 = vector.load %arg5[%5, %c0_3] : memref<32x128xf32, #tpu.memory_space<vmem>>, vector<32x128xf32>
    tpu.vector_store %arg5[%5, %c0_3], %2 {strides = array<i32>} : memref<32x128xf32, #tpu.memory_space<vmem>>, vector<32x128xf32>,
    %c0_i32 = arith.constant 0 : i32
    %7 = arith.cmpi eq, %arg0, %c0_i32 : i32
    %8 = arith.extui %7 : i1 to i32
    %c0_i32_4 = arith.constant 0 : i32
    %9 = arith.cmpi ne, %8, %c0_i32_4 : i32
    scf.if %9 {
      %c0_5 = arith.constant 0 : index
      %c0_6 = arith.constant 0 : index
      %10 = vector.load %arg5[%c0_5, %c0_6] : memref<32x128xf32, #tpu.memory_space<vmem>>, vector<32x128xf32>
      %cst_7 = arith.constant dense<0.000000e+00> : vector<128xf32>
      %11 = vector.multi_reduction <add>, %10, %cst_7 [0] : vector<32x128xf32> to vector<128xf32>
      %12 = vector.shape_cast %11 : vector<128xf32> to vector<1x128xf32>
      %cst_8 = arith.constant 3.125000e-02 : f32
      %13 = vector.broadcast %cst_8 : f32 to vector<1x128xf32>
      %14 = arith.mulf %12, %13 : vector<1x128xf32>
      %15 = vector.broadcast %14 : vector<1x128xf32> to vector<32x128xf32>
      %16 = arith.subf %10, %15 : vector<32x128xf32>
      %17 = arith.mulf %16, %16 : vector<32x128xf32>
      %cst_9 = arith.constant dense<0.000000e+00> : vector<128xf32>
      %18 = vector.multi_reduction <add>, %17, %cst_9 [0] : vector<32x128xf32> to vector<128xf32>
      %19 = vector.shape_cast %18 : vector<128xf32> to vector<1x128xf32>
      %cst_10 = arith.constant 3.125000e-02 : f32
      %20 = vector.broadcast %cst_10 : f32 to vector<1x128xf32>
      %21 = arith.mulf %19, %20 : vector<1x128xf32>
      %c0_11 = arith.constant 0 : index
      %c0_12 = arith.constant 0 : index
      %22 = vector.load %arg3[%c0_11, %c0_12] : memref<1x128xf32, #tpu.memory_space<vmem>>, vector<1x128xf32>
      %cst_13 = arith.constant 9.99999974E-6 : f32
      %23 = vector.broadcast %cst_13 : f32 to vector<1x128xf32>
      %24 = arith.addf %21, %23 : vector<1x128xf32>
      %25 = math.rsqrt %24 : vector<1x128xf32>
      %26 = arith.mulf %22, %25 : vector<1x128xf32>
      %27 = vector.broadcast %26 : vector<1x128xf32> to vector<32x128xf32>
      %28 = arith.mulf %16, %27 : vector<32x128xf32>
      %c0_14 = arith.constant 0 : index
      %c0_15 = arith.constant 0 : index
      %29 = vector.load %arg4[%c0_14, %c0_15] : memref<1x128xf32, #tpu.memory_space<vmem>>, vector<1x128xf32>
      %30 = vector.broadcast %29 : vector<1x128xf32> to vector<32x128xf32>
      %31 = arith.addf %28, %30 : vector<32x128xf32>
      %cst_16 = arith.constant 0.000000e+00 : f32
      %32 = vector.broadcast %cst_16 : f32 to vector<32x128xf32>
      %33 = arith.cmpf ogt, %31, %32 : vector<32x128xf32>
      %cst_17 = arith.constant 2.000000e-01 : f32
      %34 = vector.broadcast %cst_17 : f32 to vector<32x128xf32>
      %35 = arith.mulf %34, %31 : vector<32x128xf32>
      %36 = arith.select %33, %31, %35 : vector<32x128xi1>, vector<32x128xf32>
      %c0_18 = arith.constant 0 : index
      %c0_19 = arith.constant 0 : index
      %37 = vector.load %arg5[%c0_18, %c0_19] : memref<32x128xf32, #tpu.memory_space<vmem>>, vector<32x128xf32>
      tpu.vector_store %arg5[%c0_18, %c0_19], %36 {strides = array<i32>} : memref<32x128xf32, #tpu.memory_space<vmem>>, vector<32x128xf32>,
    } else {
    }
    return
  }
  func.func @transform_0(%arg0: i32) -> (i32, i32) {
    %c0_i32 = arith.constant 0 : i32
    %c0_i32_0 = arith.constant 0 : i32
    return %arg0, %c0_i32 : i32, i32
  }
  func.func @transform_1(%arg0: i32) -> (i32, i32) {
    %c0_i32 = arith.constant 0 : i32
    %c0_i32_0 = arith.constant 0 : i32
    %c0_i32_1 = arith.constant 0 : i32
    return %c0_i32, %c0_i32_0 : i32, i32
  }
  func.func @transform_2(%arg0: i32) -> (i32, i32) {
    %c0_i32 = arith.constant 0 : i32
    %c0_i32_0 = arith.constant 0 : i32
    %c0_i32_1 = arith.constant 0 : i32
    return %c0_i32, %c0_i32_0 : i32, i32
  }
  func.func @transform_3(%arg0: i32) -> (i32, i32) {
    %c0_i32 = arith.constant 0 : i32
    %c0_i32_0 = arith.constant 0 : i32
    %c0_i32_1 = arith.constant 0 : i32
    return %c0_i32, %c0_i32_0 : i32, i32
  }
  func.func @transform_4(%arg0: i32) -> (i32, i32) {
    %c0_i32 = arith.constant 0 : i32
    %c0_i32_0 = arith.constant 0 : i32
    %c0_i32_1 = arith.constant 0 : i32
    return %c0_i32, %c0_i32_0 : i32, i32
  }
}

module attributes {stable_mosaic.version = 11 : i64} {
  func.func @_gemm_act_kernel(%arg0: i32, %arg1: memref<2x1024xbf16, #tpu.memory_space<vmem>>, %arg2: memref<1024x128xbf16, #tpu.memory_space<vmem>>, %arg3: memref<2x128xf32, #tpu.memory_space<vmem>>) attributes {dimension_semantics = [#tpu.dimension_semantics<parallel>], iteration_bounds = array<i64: 1>, scalar_prefetch = 0 : i64, scratch_operands = 0 : i64, tpu.core_type = #tpu.core_type<tc>, window_params = [{transform_indices = @transform_0, window_bounds = array<i64: 2, 1024>}, {pipeline_mode = #tpu.pipeline_mode<synchronous>, transform_indices = @transform_1, window_bounds = array<i64: 1024, 128>}, {transform_indices = @transform_2, window_bounds = array<i64: 2, 128>}]} {
    %c0 = arith.constant 0 : index
    %c0_0 = arith.constant 0 : index
    %0 = vector.load %arg1[%c0, %c0_0] : memref<2x1024xbf16, #tpu.memory_space<vmem>>, vector<2x1024xbf16>
    %c0_1 = arith.constant 0 : index
    %c0_2 = arith.constant 0 : index
    %1 = vector.load %arg2[%c0_1, %c0_2] : memref<1024x128xbf16, #tpu.memory_space<vmem>>, vector<1024x128xbf16>
    %cst = arith.constant dense<0.000000e+00> : vector<2x128xf32>
    %2 = tpu.matmul %0, %1, %cst {dimension_numbers = #tpu.dot_dimension_numbers<[1], [0], [0], [1], [0, 0, 1, 1], [], []>} : vector<2x1024xbf16>, vector<1024x128xbf16>, vector<2x128xf32> -> vector<2x128xf32>
    %cst_3 = arith.constant 0.000000e+00 : f32
    %3 = vector.broadcast %cst_3 : f32 to vector<2x128xf32>
    %4 = arith.subf %3, %2 : vector<2x128xf32>
    %5 = math.exp %4 : vector<2x128xf32>
    %cst_4 = arith.constant 1.000000e+00 : f32
    %6 = vector.broadcast %cst_4 : f32 to vector<2x128xf32>
    %7 = arith.addf %6, %5 : vector<2x128xf32>
    %8 = tpu.reciprocal %7 {approx = true} : vector<2x128xf32> -> vector<2x128xf32>
    %c0_5 = arith.constant 0 : index
    %c0_6 = arith.constant 0 : index
    %9 = vector.load %arg3[%c0_5, %c0_6] : memref<2x128xf32, #tpu.memory_space<vmem>>, vector<2x128xf32>
    tpu.vector_store %arg3[%c0_5, %c0_6], %8 {strides = array<i32>} : memref<2x128xf32, #tpu.memory_space<vmem>>, vector<2x128xf32>,
    return
  }
  func.func @transform_0(%arg0: i32) -> (i32, i32) {
    %c0_i32 = arith.constant 0 : i32
    %c0_i32_0 = arith.constant 0 : i32
    return %arg0, %c0_i32 : i32, i32
  }
  func.func @transform_1(%arg0: i32) -> (i32, i32) {
    %c0_i32 = arith.constant 0 : i32
    %c0_i32_0 = arith.constant 0 : i32
    %c0_i32_1 = arith.constant 0 : i32
    return %c0_i32, %c0_i32_0 : i32, i32
  }
  func.func @transform_2(%arg0: i32) -> (i32, i32) {
    %c0_i32 = arith.constant 0 : i32
    %c0_i32_0 = arith.constant 0 : i32
    return %arg0, %c0_i32 : i32, i32
  }
}

</mosaic_0001>

<llo_original>
// kernel: discriminator_forward.5
$region0: #{discriminator_forward.5}
  #allocation0 [shape = 'u32[]', space=smem, size = 0x4, offset = 0x4, fixed_abs, tag = 'smem constant byte address 0x4 - core index']
  #allocation1 [shape = 'u32[144,128]{1,0:T(1,128)}', space=vmem, size = 0x12000, scoped, tag = 'internal scratch']
  %s0 = inlined_call_operand.vmem [shape: bf16[2048,48], index: 0, kind: input, shape index: {}]
  %s1 = inlined_call_operand.vmem [shape: bf16[48,128], index: 1, kind: input, shape index: {}]
  %s2 = inlined_call_operand.vmem [shape: f32[2048,128], index: 2, kind: output, shape index: {}]
  %s3 = sld [smem:[#allocation0]]
  $region41: #{discriminator_forward.5} parent=0
    _
  %s5 = ssub.s32 1, %s3
  %s6 = scalar_select 0, %s5, %s3
  loop: start=0, step=1, limit=4
  $region2: #{discriminator_forward.5} parent=0 // loop_pre_header
    _
  $region3: #{discriminator_forward.5} parent=0 // loop_header
    %s8 = sphi 0, %s12
    %p9 = scmp.ge.s32.totalorder %s8, 4
    %s18 = sphi 0, %s20
    %s21 = sphi 0, %s18
    %s22 = sphi 0, %s21
    %s38 = sphi 0, %s22
    %s42 = sphi 0, %s42
    %s44 = sphi 0, %s42
    %s45 = sphi 0, %s44
    %s59 = sphi 0, %s45
    %s65 = sphi 0, %s67
    %s68 = sphi 0, %s65
    %s69 = sphi 0, %s68
    %s85 = sphi 0, %s69
  $region4: #{discriminator_forward.5} parent=0 // loop_header_branch
    %11 = sbr.rel (%p9) target = $region8
  $region5: #{discriminator_forward.5} parent=0 // loop_body
    %s13 = ssub.s32 %s8, 1
    %s14 = ssub.s32 %s8, 2
    %s15 = sadd.s32 %s8, 1
    %s16 = ssub.s32 %s8, %s15
    %p17 = scmp.eq.s32.totalorder %s16, 0
    %s19 = sadd.s32 %s18, 1
    %s20 = scalar_select %p17, %s18, %s19
    %p23 = pneg %p17
    %p24 = scmp.eq.s32.totalorder %s8, 1
    %p25 = por %p23, %p24
    %p26 = scmp.ne.s32.totalorder %s18, %s21
    %p27 = scmp.eq.s32.totalorder %s8, 0
    %p28 = por %p26, %p27
    %p29 = scmp.ne.s32.totalorder %s18, %s21
    %p30 = scmp.eq.s32.totalorder %s13, 1
    %p31 = por %p29, %p30
    %p32 = scmp.ne.s32.totalorder %s21, %s22
    %p33 = scmp.eq.s32.totalorder %s13, 0
    %p34 = por %p32, %p33
    %p35 = scmp.ne.s32.totalorder %s21, %s22
    %p36 = scmp.eq.s32.totalorder %s14, 1
    %p37 = por %p35, %p36
    %p39 = scmp.ne.s32.totalorder %s22, %s38
    %p40 = scmp.eq.s32.totalorder %s14, 0
    %p41 = por %p39, %p40
    %s43 = sadd.s32 %s42, 1
    %p46 = scmp.eq.s32.totalorder %s8, 1
    %p47 = scmp.ne.s32.totalorder %s42, %s44
    %p48 = scmp.eq.s32.totalorder %s8, 0
    %p49 = por %p47, %p48
    %p50 = scmp.ne.s32.totalorder %s42, %s44
    %p51 = scmp.eq.s32.totalorder %s13, 1
    %p52 = por %p50, %p51
    %p53 = scmp.ne.s32.totalorder %s44, %s45
    %p54 = scmp.eq.s32.totalorder %s13, 0
    %p55 = por %p53, %p54
    %p56 = scmp.ne.s32.totalorder %s44, %s45
    %p57 = scmp.eq.s32.totalorder %s14, 1
    %p58 = por %p56, %p57
    %p60 = scmp.ne.s32.totalorder %s45, %s59
    %p61 = scmp.eq.s32.totalorder %s14, 0
    %p62 = por %p60, %p61
    %s63 = ssub.s32 %s8, %s15
    %p64 = scmp.eq.s32.totalorder %s63, 0
    %s66 = sadd.s32 %s65, 1
    %s67 = scalar_select %p64, %s65, %s66
    %p70 = pneg %p64
    %p71 = scmp.eq.s32.totalorder %s8, 1
    %p72 = por %p70, %p71
    %p73 = scmp.ne.s32.totalorder %s65, %s68
    %p74 = scmp.eq.s32.totalorder %s8, 0
    %p75 = por %p73, %p74
    %p76 = scmp.ne.s32.totalorder %s65, %s68
    %p77 = scmp.eq.s32.totalorder %s13, 1
    %p78 = por %p76, %p77
    %p79 = scmp.ne.s32.totalorder %s68, %s69
    %p80 = scmp.eq.s32.totalorder %s13, 0
    %p81 = por %p79, %p80
    %p82 = scmp.ne.s32.totalorder %s68, %s69
    %p83 = scmp.eq.s32.totalorder %s14, 1
    %p84 = por %p82, %p83
    %p86 = scmp.ne.s32.totalorder %s69, %s85
    %p87 = scmp.eq.s32.totalorder %s14, 0
    %p88 = por %p86, %p87
    %p89 = scmp.le.s32.totalorder 1, %s8
    %p90 = scmp.lt.s32.totalorder %s8, 3
    %p91 = pnand %p89, %p90
    %p92 = pneg %p91
    // Predicated region
    $region9: #{discriminator_forward.5} parent=5 // pred_check
      _
    $region10: #{discriminator_forward.5} parent=5 // pred_check_branch
      %94 = sbr.rel (%p91) target = $region12
    $region11: #{discriminator_forward.5} parent=5 // pred_region
      %s95 = ssub.s32 %s8, 1
      // Predicated region
      $region13: #{discriminator_forward.5} parent=11 // pred_check
        %p96 = pneg %p55
      $region14: #{discriminator_forward.5} parent=11 // pred_check_branch
        %98 = sbr.rel (%p96) target = $region16
      $region15: #{discriminator_forward.5} parent=11 // pred_region
        _
      $region16: #{discriminator_forward.5} parent=11 // pred_fallthru
        _
    $region12: #{discriminator_forward.5} parent=5 // pred_fallthru
      _
    %p99 = scmp.lt.s32.totalorder %s8, 2
    // Predicated region
    $region17: #{discriminator_forward.5} parent=5 // pred_check
      %p100 = pneg %p99
    $region18: #{discriminator_forward.5} parent=5 // pred_check_branch
      %102 = sbr.rel (%p100) target = $region20
    $region19: #{discriminator_forward.5} parent=5 // pred_region
      // Predicated region
      $region21: #{discriminator_forward.5} parent=19 // pred_check
        %p103 = pneg %p28
      $region22: #{discriminator_forward.5} parent=19 // pred_check_branch
        %105 = sbr.rel (%p103) target = $region24
      $region23: #{discriminator_forward.5} parent=19 // pred_region
        %s106 = smul.u32 128, %s8
        %p107 = scmp.lt.s32.totalorder %s106, 255
        %s108 = scalar_select %p107, %s106, 255
        %s109 = smul.addr %s108, 4
        %s110 = scalar_lea.vmem %s0, %s109
        %s111 = smul.u32 128, %s8
      $region24: #{discriminator_forward.5} parent=19 // pred_fallthru
        _
    $region20: #{discriminator_forward.5} parent=5 // pred_fallthru
      _
    %p112 = scmp.le.s32.totalorder 1, %s8
    %p113 = scmp.lt.s32.totalorder %s8, 3
    %p114 = pnand %p112, %p113
    %p115 = pneg %p114
    // Predicated region
    $region25: #{discriminator_forward.5} parent=5 // pred_check
      _
    $region26: #{discriminator_forward.5} parent=5 // pred_check_branch
      %117 = sbr.rel (%p114) target = $region28
    $region27: #{discriminator_forward.5} parent=5 // pred_region
      %s118 = ssub.s32 %s8, 1
      %s119 = smul.u32 128, %s13
      %p120 = scmp.lt.s32.totalorder %s119, 255
      %s121 = scalar_select %p120, %s119, 255
      %s122 = smul.addr %s121, 4
      %s123 = scalar_lea.vmem %s0, %s122
      %p124 = pneg %p34
      %p125 = pneg %p31
      %p126 = pneg %p55
      %p127 = pneg %p52
      %p128 = pneg %p81
      %p129 = pneg %p78
      %s130 = smul.u32 128, %s13
      %p131 = scmp.lt.s32.totalorder %s130, 255
      %s132 = scalar_select %p131, %s130, 255
      %s133 = smul.addr %s132, 8
      %s134 = scalar_lea.vmem %s2, %s133
      %s135 = smul.u32 128, %s13
      %p136 = scmp.lt.s32.totalorder %s135, 255
      %s137 = scalar_select %p136, %s135, 255
      %s138 = smul.addr %s137, 4
      %s139 = scalar_lea.vmem %s0, %s138
      %s140 = smul.u32 128, %s13
      %s141 = smul.u32 128, %s13
      %p142 = scmp.lt.s32.totalorder %s141, 255
      %s143 = scalar_select %p142, %s141, 255
      %s144 = smul.addr %s143, 8
      %s145 = scalar_lea.vmem %s2, %s144
      %s146 = smul.u32 128, %s13
      %v148 = vld [vmem:[%s139] sm:$0xf]
      %v149 = vld [vmem:[%s139 + $0x4] sm:$0xf]
      %v150 = vld [vmem:[%s139 + $0x8] sm:$0xf]
      %v151 = vld [vmem:[%s139 + $0xc] sm:$0xf]
      %v152 = vld [vmem:[%s139 + $0x10] sm:$0xf]
      %v153 = vld [vmem:[%s139 + $0x14] sm:$0xf]
      %v154 = vld [vmem:[%s139 + $0x18] sm:$0xf]
      %v155 = vld [vmem:[%s139 + $0x1c] sm:$0xf]
      %v156 = vld [vmem:[%s139 + $0x20] sm:$0xf]
      %v157 = vld [vmem:[%s139 + $0x24] sm:$0xf]
      %v158 = vld [vmem:[%s139 + $0x28] sm:$0xf]
      %v159 = vld [vmem:[%s139 + $0x2c] sm:$0xf]
      %v160 = vld [vmem:[%s139 + $0x30] sm:$0xf]
      %v161 = vld [vmem:[%s139 + $0x34] sm:$0xf]
      %v162 = vld [vmem:[%s139 + $0x38] sm:$0xf]
      %v163 = vld [vmem:[%s139 + $0x3c] sm:$0xf]
      %v164 = vld [vmem:[%s139 + $0x40] sm:$0xf]
      %v165 = vld [vmem:[%s139 + $0x44] sm:$0xf]
      %v166 = vld [vmem:[%s139 + $0x48] sm:$0xf]
      %v167 = vld [vmem:[%s139 + $0x4c] sm:$0xf]
      %v168 = vld [vmem:[%s139 + $0x50] sm:$0xf]
      %v169 = vld [vmem:[%s139 + $0x54] sm:$0xf]
      %v170 = vld [vmem:[%s139 + $0x58] sm:$0xf]
      %v171 = vld [vmem:[%s139 + $0x5c] sm:$0xf]
      %v172 = vld [vmem:[%s139 + $0x60] sm:$0xf]
      %v173 = vld [vmem:[%s139 + $0x64] sm:$0xf]
      %v174 = vld [vmem:[%s139 + $0x68] sm:$0xf]
      %v175 = vld [vmem:[%s139 + $0x6c] sm:$0xf]
      %v176 = vld [vmem:[%s139 + $0x70] sm:$0xf]
      %v177 = vld [vmem:[%s139 + $0x74] sm:$0xf]
      %v178 = vld [vmem:[%s139 + $0x78] sm:$0xf]
      %v179 = vld [vmem:[%s139 + $0x7c] sm:$0xf]
      %v180 = vld [vmem:[%s139 + $0x80] sm:$0xf]
      %v181 = vld [vmem:[%s139 + $0x84] sm:$0xf]
      %v182 = vld [vmem:[%s139 + $0x88] sm:$0xf]
      %v183 = vld [vmem:[%s139 + $0x8c] sm:$0xf]
      %v184 = vld [vmem:[%s139 + $0x90] sm:$0xf]
      %v185 = vld [vmem:[%s139 + $0x94] sm:$0xf]
      %v186 = vld [vmem:[%s139 + $0x98] sm:$0xf]
      %v187 = vld [vmem:[%s139 + $0x9c] sm:$0xf]
      %v188 = vld [vmem:[%s139 + $0xa0] sm:$0xf]
      %v189 = vld [vmem:[%s139 + $0xa4] sm:$0xf]
      %v190 = vld [vmem:[%s139 + $0xa8] sm:$0xf]
      %v191 = vld [vmem:[%s139 + $0xac] sm:$0xf]
      %v192 = vld [vmem:[%s139 + $0xb0] sm:$0xf]
      %v193 = vld [vmem:[%s139 + $0xb4] sm:$0xf]
      %v194 = vld [vmem:[%s139 + $0xb8] sm:$0xf]
      %v195 = vld [vmem:[%s139 + $0xbc] sm:$0xf]
      %v196 = vld [vmem:[%s139 + $0xc0] sm:$0xf]
      %v197 = vld [vmem:[%s139 + $0xc4] sm:$0xf]
      %v198 = vld [vmem:[%s139 + $0xc8] sm:$0xf]
      %v199 = vld [vmem:[%s139 + $0xcc] sm:$0xf]
      %v200 = vld [vmem:[%s139 + $0xd0] sm:$0xf]
      %v201 = vld [vmem:[%s139 + $0xd4] sm:$0xf]
      %v202 = vld [vmem:[%s139 + $0xd8] sm:$0xf]
      %v203 = vld [vmem:[%s139 + $0xdc] sm:$0xf]
      %v204 = vld [vmem:[%s139 + $0xe0] sm:$0xf]
      %v205 = vld [vmem:[%s139 + $0xe4] sm:$0xf]
      %v206 = vld [vmem:[%s139 + $0xe8] sm:$0xf]
      %v207 = vld [vmem:[%s139 + $0xec] sm:$0xf]
      %v208 = vld [vmem:[%s139 + $0xf0] sm:$0xf]
      %v209 = vld [vmem:[%s139 + $0xf4] sm:$0xf]
      %v210 = vld [vmem:[%s139 + $0xf8] sm:$0xf]
      %v211 = vld [vmem:[%s139 + $0xfc] sm:$0xf]
      %v212 = vld [vmem:[%s139 + $0x100] sm:$0xf]
      %v213 = vld [vmem:[%s139 + $0x104] sm:$0xf]
      %v214 = vld [vmem:[%s139 + $0x108] sm:$0xf]
      %v215 = vld [vmem:[%s139 + $0x10c] sm:$0xf]
      %v216 = vld [vmem:[%s139 + $0x110] sm:$0xf]
      %v217 = vld [vmem:[%s139 + $0x114] sm:$0xf]
      %v218 = vld [vmem:[%s139 + $0x118] sm:$0xf]
      %v219 = vld [vmem:[%s139 + $0x11c] sm:$0xf]
      %v220 = vld [vmem:[%s139 + $0x120] sm:$0xf]
      %v221 = vld [vmem:[%s139 + $0x124] sm:$0xf]
      %v222 = vld [vmem:[%s139 + $0x128] sm:$0xf]
      %v223 = vld [vmem:[%s139 + $0x12c] sm:$0xf]
      %v224 = vld [vmem:[%s139 + $0x130] sm:$0xf]
      %v225 = vld [vmem:[%s139 + $0x134] sm:$0xf]
      %v226 = vld [vmem:[%s139 + $0x138] sm:$0xf]
      %v227 = vld [vmem:[%s139 + $0x13c] sm:$0xf]
      %v228 = vld [vmem:[%s139 + $0x140] sm:$0xf]
      %v229 = vld [vmem:[%s139 + $0x144] sm:$0xf]
      %v230 = vld [vmem:[%s139 + $0x148] sm:$0xf]
      %v231 = vld [vmem:[%s139 + $0x14c] sm:$0xf]
      %v232 = vld [vmem:[%s139 + $0x150] sm:$0xf]
      %v233 = vld [vmem:[%s139 + $0x154] sm:$0xf]
      %v234 = vld [vmem:[%s139 + $0x158] sm:$0xf]
      %v235 = vld [vmem:[%s139 + $0x15c] sm:$0xf]
      %v236 = vld [vmem:[%s139 + $0x160] sm:$0xf]
      %v237 = vld [vmem:[%s139 + $0x164] sm:$0xf]
      %v238 = vld [vmem:[%s139 + $0x168] sm:$0xf]
      %v239 = vld [vmem:[%s139 + $0x16c] sm:$0xf]
      %v240 = vld [vmem:[%s139 + $0x170] sm:$0xf]
      %v241 = vld [vmem:[%s139 + $0x174] sm:$0xf]
      %v242 = vld [vmem:[%s139 + $0x178] sm:$0xf]
      %v243 = vld [vmem:[%s139 + $0x17c] sm:$0xf]
      %v244 = vld [vmem:[%s139 + $0x180] sm:$0xf]
      %v245 = vld [vmem:[%s139 + $0x184] sm:$0xf]
      %v246 = vld [vmem:[%s139 + $0x188] sm:$0xf]
      %v247 = vld [vmem:[%s139 + $0x18c] sm:$0xf]
      %v248 = vld [vmem:[%s139 + $0x190] sm:$0xf]
      %v249 = vld [vmem:[%s139 + $0x194] sm:$0xf]
      %v250 = vld [vmem:[%s139 + $0x198] sm:$0xf]
      %v251 = vld [vmem:[%s139 + $0x19c] sm:$0xf]
      %v252 = vld [vmem:[%s139 + $0x1a0] sm:$0xf]
      %v253 = vld [vmem:[%s139 + $0x1a4] sm:$0xf]
      %v254 = vld [vmem:[%s139 + $0x1a8] sm:$0xf]
      %v255 = vld [vmem:[%s139 + $0x1ac] sm:$0xf]
      %v256 = vld [vmem:[%s139 + $0x1b0] sm:$0xf]
      %v257 = vld [vmem:[%s139 + $0x1b4] sm:$0xf]
      %v258 = vld [vmem:[%s139 + $0x1b8] sm:$0xf]
      %v259 = vld [vmem:[%s139 + $0x1bc] sm:$0xf]
      %v260 = vld [vmem:[%s139 + $0x1c0] sm:$0xf]
      %v261 = vld [vmem:[%s139 + $0x1c4] sm:$0xf]
      %v262 = vld [vmem:[%s139 + $0x1c8] sm:$0xf]
      %v263 = vld [vmem:[%s139 + $0x1cc] sm:$0xf]
      %v264 = vld [vmem:[%s139 + $0x1d0] sm:$0xf]
      %v265 = vld [vmem:[%s139 + $0x1d4] sm:$0xf]
      %v266 = vld [vmem:[%s139 + $0x1d8] sm:$0xf]
      %v267 = vld [vmem:[%s139 + $0x1dc] sm:$0xf]
      %v268 = vld [vmem:[%s139 + $0x1e0] sm:$0xf]
      %v269 = vld [vmem:[%s139 + $0x1e4] sm:$0xf]
      %v270 = vld [vmem:[%s139 + $0x1e8] sm:$0xf]
      %v271 = vld [vmem:[%s139 + $0x1ec] sm:$0xf]
      %v272 = vld [vmem:[%s139 + $0x1f0] sm:$0xf]
      %v273 = vld [vmem:[%s139 + $0x1f4] sm:$0xf]
      %v274 = vld [vmem:[%s139 + $0x1f8] sm:$0xf]
      %v275 = vld [vmem:[%s139 + $0x1fc] sm:$0xf]
      %v276 = vld [vmem:[%s1] sm:$0xf]
      %v277 = vld [vmem:[%s1 + $0x4] sm:$0xf]
      %v278 = vld [vmem:[%s1 + $0x8] sm:$0xf]
      %v279 = vld [vmem:[%s1 + $0xc] sm:$0xf]
      %v280 = vld [vmem:[%s1 + $0x10] sm:$0xf]
      %v281 = vld [vmem:[%s1 + $0x14] sm:$0xf]
      %v410 = vunpack.c.l.b16 %v148
      %v411 = vunpack.c.l.b16 %v149
      %v412 = vunpack.c.l.b16 %v150
      %v413 = vunpack.c.l.b16 %v151
      %v414 = vunpack.c.l.b16 %v152
      %v415 = vunpack.c.l.b16 %v153
      %v416 = vunpack.c.l.b16 %v154
      %v417 = vunpack.c.l.b16 %v155
      %v418 = vunpack.c.l.b16 %v156
      %v419 = vunpack.c.l.b16 %v157
      %v420 = vunpack.c.l.b16 %v158
      %v421 = vunpack.c.l.b16 %v159
      %v422 = vunpack.c.l.b16 %v160
      %v423 = vunpack.c.l.b16 %v161
      %v424 = vunpack.c.l.b16 %v162
      %v425 = vunpack.c.l.b16 %v163
      %v426 = vunpack.c.l.b16 %v164
      %v427 = vunpack.c.l.b16 %v165
      %v428 = vunpack.c.l.b16 %v166
      %v429 = vunpack.c.l.b16 %v167
      %v430 = vunpack.c.l.b16 %v168
      %v431 = vunpack.c.l.b16 %v169
      %v432 = vunpack.c.l.b16 %v170
      %v433 = vunpack.c.l.b16 %v171
      %v434 = vunpack.c.l.b16 %v172
      %v435 = vunpack.c.l.b16 %v173
      %v436 = vunpack.c.l.b16 %v174
      %v437 = vunpack.c.l.b16 %v175
      %v438 = vunpack.c.l.b16 %v176
      %v439 = vunpack.c.l.b16 %v177
      %v440 = vunpack.c.l.b16 %v178
      %v441 = vunpack.c.l.b16 %v179
      %v442 = vunpack.c.l.b16 %v180
      %v443 = vunpack.c.l.b16 %v181
      %v444 = vunpack.c.l.b16 %v182
      %v445 = vunpack.c.l.b16 %v183
      %v446 = vunpack.c.l.b16 %v184
      %v447 = vunpack.c.l.b16 %v185
      %v448 = vunpack.c.l.b16 %v186
      %v449 = vunpack.c.l.b16 %v187
      %v450 = vunpack.c.l.b16 %v188
      %v451 = vunpack.c.l.b16 %v189
      %v452 = vunpack.c.l.b16 %v190
      %v453 = vunpack.c.l.b16 %v191
      %v454 = vunpack.c.l.b16 %v192
      %v455 = vunpack.c.l.b16 %v193
      %v456 = vunpack.c.l.b16 %v194
      %v457 = vunpack.c.l.b16 %v195
      %v458 = vunpack.c.l.b16 %v196
      %v459 = vunpack.c.l.b16 %v197
      %v460 = vunpack.c.l.b16 %v198
      %v461 = vunpack.c.l.b16 %v199
      %v462 = vunpack.c.l.b16 %v200
      %v463 = vunpack.c.l.b16 %v201
      %v464 = vunpack.c.l.b16 %v202
      %v465 = vunpack.c.l.b16 %v203
      %v466 = vunpack.c.l.b16 %v204
      %v467 = vunpack.c.l.b16 %v205
      %v468 = vunpack.c.l.b16 %v206
      %v469 = vunpack.c.l.b16 %v207
      %v470 = vunpack.c.l.b16 %v208
      %v471 = vunpack.c.l.b16 %v209
      %v472 = vunpack.c.l.b16 %v210
      %v473 = vunpack.c.l.b16 %v211
      %v474 = vunpack.c.l.b16 %v212
      %v475 = vunpack.c.l.b16 %v213
      %v476 = vunpack.c.l.b16 %v214
      %v477 = vunpack.c.l.b16 %v215
      %v478 = vunpack.c.l.b16 %v216
      %v479 = vunpack.c.l.b16 %v217
      %v480 = vunpack.c.l.b16 %v218
      %v481 = vunpack.c.l.b16 %v219
      %v482 = vunpack.c.l.b16 %v220
      %v483 = vunpack.c.l.b16 %v221
      %v484 = vunpack.c.l.b16 %v222
      %v485 = vunpack.c.l.b16 %v223
      %v486 = vunpack.c.l.b16 %v224
      %v487 = vunpack.c.l.b16 %v225
      %v488 = vunpack.c.l.b16 %v226
      %v489 = vunpack.c.l.b16 %v227
      %v490 = vunpack.c.l.b16 %v228
      %v491 = vunpack.c.l.b16 %v229
      %v492 = vunpack.c.l.b16 %v230
      %v493 = vunpack.c.l.b16 %v231
      %v494 = vunpack.c.l.b16 %v232
      %v495 = vunpack.c.l.b16 %v233
      %v496 = vunpack.c.l.b16 %v234
      %v497 = vunpack.c.l.b16 %v235
      %v498 = vunpack.c.l.b16 %v236
      %v499 = vunpack.c.l.b16 %v237
      %v500 = vunpack.c.l.b16 %v238
      %v501 = vunpack.c.l.b16 %v239
      %v502 = vunpack.c.l.b16 %v240
      %v503 = vunpack.c.l.b16 %v241
      %v504 = vunpack.c.l.b16 %v242
      %v505 = vunpack.c.l.b16 %v243
      %v506 = vunpack.c.l.b16 %v244
      %v507 = vunpack.c.l.b16 %v245
      %v508 = vunpack.c.l.b16 %v246
      %v509 = vunpack.c.l.b16 %v247
      %v510 = vunpack.c.l.b16 %v248
      %v511 = vunpack.c.l.b16 %v249
      %v512 = vunpack.c.l.b16 %v250
      %v513 = vunpack.c.l.b16 %v251
      %v514 = vunpack.c.l.b16 %v252
      %v515 = vunpack.c.l.b16 %v253
      %v516 = vunpack.c.l.b16 %v254
      %v517 = vunpack.c.l.b16 %v255
      %v518 = vunpack.c.l.b16 %v256
      %v519 = vunpack.c.l.b16 %v257
      %v520 = vunpack.c.l.b16 %v258
      %v521 = vunpack.c.l.b16 %v259
      %v522 = vunpack.c.l.b16 %v260
      %v523 = vunpack.c.l.b16 %v261
      %v524 = vunpack.c.l.b16 %v262
      %v525 = vunpack.c.l.b16 %v263
      %v526 = vunpack.c.l.b16 %v264
      %v527 = vunpack.c.l.b16 %v265
      %v528 = vunpack.c.l.b16 %v266
      %v529 = vunpack.c.l.b16 %v267
      %v530 = vunpack.c.l.b16 %v268
      %v531 = vunpack.c.l.b16 %v269
      %v532 = vunpack.c.l.b16 %v270
      %v533 = vunpack.c.l.b16 %v271
      %v534 = vunpack.c.l.b16 %v272
      %v535 = vunpack.c.l.b16 %v273
      %v536 = vunpack.c.l.b16 %v274
      %v537 = vunpack.c.l.b16 %v275
      %v538 = vpack.c.b16 %v411, %v410
      %v539 = vpack.c.b16 %v413, %v412
      %v540 = vpack.c.b16 %v415, %v414
      %v541 = vpack.c.b16 %v417, %v416
      %v542 = vpack.c.b16 %v419, %v418
      %v543 = vpack.c.b16 %v421, %v420
      %v544 = vpack.c.b16 %v423, %v422
      %v545 = vpack.c.b16 %v425, %v424
      %v546 = vpack.c.b16 %v427, %v426
      %v547 = vpack.c.b16 %v429, %v428
      %v548 = vpack.c.b16 %v431, %v430
      %v549 = vpack.c.b16 %v433, %v432
      %v550 = vpack.c.b16 %v435, %v434
      %v551 = vpack.c.b16 %v437, %v436
      %v552 = vpack.c.b16 %v439, %v438
      %v553 = vpack.c.b16 %v441, %v440
      %v554 = vpack.c.b16 %v443, %v442
      %v555 = vpack.c.b16 %v445, %v444
      %v556 = vpack.c.b16 %v447, %v446
      %v557 = vpack.c.b16 %v449, %v448
      %v558 = vpack.c.b16 %v451, %v450
      %v559 = vpack.c.b16 %v453, %v452
      %v560 = vpack.c.b16 %v455, %v454
      %v561 = vpack.c.b16 %v457, %v456
      %v562 = vpack.c.b16 %v459, %v458
      %v563 = vpack.c.b16 %v461, %v460
      %v564 = vpack.c.b16 %v463, %v462
      %v565 = vpack.c.b16 %v465, %v464
      %v566 = vpack.c.b16 %v467, %v466
      %v567 = vpack.c.b16 %v469, %v468
      %v568 = vpack.c.b16 %v471, %v470
      %v569 = vpack.c.b16 %v473, %v472
      %v570 = vpack.c.b16 %v475, %v474
      %v571 = vpack.c.b16 %v477, %v476
      %v572 = vpack.c.b16 %v479, %v478
      %v573 = vpack.c.b16 %v481, %v480
      %v574 = vpack.c.b16 %v483, %v482
      %v575 = vpack.c.b16 %v485, %v484
      %v576 = vpack.c.b16 %v487, %v486
      %v577 = vpack.c.b16 %v489, %v488
      %v578 = vpack.c.b16 %v491, %v490
      %v579 = vpack.c.b16 %v493, %v492
      %v580 = vpack.c.b16 %v495, %v494
      %v581 = vpack.c.b16 %v497, %v496
      %v582 = vpack.c.b16 %v499, %v498
      %v583 = vpack.c.b16 %v501, %v500
      %v584 = vpack.c.b16 %v503, %v502
      %v585 = vpack.c.b16 %v505, %v504
      %v586 = vpack.c.b16 %v507, %v506
      %v587 = vpack.c.b16 %v509, %v508
      %v588 = vpack.c.b16 %v511, %v510
      %v589 = vpack.c.b16 %v513, %v512
      %v590 = vpack.c.b16 %v515, %v514
      %v591 = vpack.c.b16 %v517, %v516
      %v592 = vpack.c.b16 %v519, %v518
      %v593 = vpack.c.b16 %v521, %v520
      %v594 = vpack.c.b16 %v523, %v522
      %v595 = vpack.c.b16 %v525, %v524
      %v596 = vpack.c.b16 %v527, %v526
      %v597 = vpack.c.b16 %v529, %v528
      %v598 = vpack.c.b16 %v531, %v530
      %v599 = vpack.c.b16 %v533, %v532
      %v600 = vpack.c.b16 %v535, %v534
      %v601 = vpack.c.b16 %v537, %v536
      %v608 = vunpack.c.l.b16 %v276
      %v609 = vunpack.c.l.b16 %v277
      %v610 = vunpack.c.l.b16 %v278
      %v611 = vunpack.c.l.b16 %v279
      %v612 = vunpack.c.l.b16 %v280
      %v613 = vunpack.c.l.b16 %v281
      %v614 = vpack.c.b16 %v609, %v608
      %v615 = vpack.c.b16 %v611, %v610
      %v616 = vpack.c.b16 %v613, %v612
      %vm620 = vcmask 392192
      %v622 = vsel %vm620, %v538, 0
      %v625 = vsel %vm620, %v539, 0
      %v628 = vsel %vm620, %v540, 0
      %v631 = vsel %vm620, %v541, 0
      %v634 = vsel %vm620, %v542, 0
      %v637 = vsel %vm620, %v543, 0
      %v640 = vsel %vm620, %v544, 0
      %v643 = vsel %vm620, %v545, 0
      %v646 = vsel %vm620, %v546, 0
      %v649 = vsel %vm620, %v547, 0
      %v652 = vsel %vm620, %v548, 0
      %v655 = vsel %vm620, %v549, 0
      %v658 = vsel %vm620, %v550, 0
      %v661 = vsel %vm620, %v551, 0
      %v664 = vsel %vm620, %v552, 0
      %v667 = vsel %vm620, %v553, 0
      %v670 = vsel %vm620, %v554, 0
      %v673 = vsel %vm620, %v555, 0
      %v676 = vsel %vm620, %v556, 0
      %v679 = vsel %vm620, %v557, 0
      %v682 = vsel %vm620, %v558, 0
      %v685 = vsel %vm620, %v559, 0
      %v688 = vsel %vm620, %v560, 0
      %v691 = vsel %vm620, %v561, 0
      %v694 = vsel %vm620, %v562, 0
      %v697 = vsel %vm620, %v563, 0
      %v700 = vsel %vm620, %v564, 0
      %v703 = vsel %vm620, %v565, 0
      %v706 = vsel %vm620, %v566, 0
      %v709 = vsel %vm620, %v567, 0
      %v712 = vsel %vm620, %v568, 0
      %v715 = vsel %vm620, %v569, 0
      %v718 = vsel %vm620, %v570, 0
      %v721 = vsel %vm620, %v571, 0
      %v724 = vsel %vm620, %v572, 0
      %v727 = vsel %vm620, %v573, 0
      %v730 = vsel %vm620, %v574, 0
      %v733 = vsel %vm620, %v575, 0
      %v736 = vsel %vm620, %v576, 0
      %v739 = vsel %vm620, %v577, 0
      %v742 = vsel %vm620, %v578, 0
      %v745 = vsel %vm620, %v579, 0
      %v748 = vsel %vm620, %v580, 0
      %v751 = vsel %vm620, %v581, 0
      %v754 = vsel %vm620, %v582, 0
      %v757 = vsel %vm620, %v583, 0
      %v760 = vsel %vm620, %v584, 0
      %v763 = vsel %vm620, %v585, 0
      %v766 = vsel %vm620, %v586, 0
      %v769 = vsel %vm620, %v587, 0
      %v772 = vsel %vm620, %v588, 0
      %v775 = vsel %vm620, %v589, 0
      %v778 = vsel %vm620, %v590, 0
      %v781 = vsel %vm620, %v591, 0
      %v784 = vsel %vm620, %v592, 0
      %v787 = vsel %vm620, %v593, 0
      %v790 = vsel %vm620, %v594, 0
      %v793 = vsel %vm620, %v595, 0
      %v796 = vsel %vm620, %v596, 0
      %v799 = vsel %vm620, %v597, 0
      %v802 = vsel %vm620, %v598, 0
      %v805 = vsel %vm620, %v599, 0
      %v808 = vsel %vm620, %v600, 0
      %v811 = vsel %vm620, %v601, 0
      %813 = vmatprep.subr.bf16.mxu0 0
      %814 = vmatpush1.bf16.msra.mxu0 0
      %815 = vmatprep.subr.bf16.mxu0 0
      %816 = vmatpush1.bf16.msra.mxu0 0
      %817 = vmatprep.subr.bf16.mxu0 0
      %818 = vmatpush1.bf16.msra.mxu0 0
      %819 = vmatprep.subr.bf16.mxu0 0
      %820 = vmatpush1.bf16.msra.mxu0 0
      %821 = vmatprep.subr.bf16.mxu0 0
      %822 = vmatpush1.bf16.msra.mxu0 0
      %823 = vmatprep.subr.bf16.mxu0 0
      %824 = vmatpush1.bf16.msra.mxu0 %v616
      %825 = vmatprep.subr.bf16.mxu0 0
      %826 = vmatpush1.bf16.msra.mxu0 %v615
      %827 = vmatprep.subr.bf16.mxu0 0
      %828 = vmatpush1.bf16.msra.mxu0 %v614
      %829 = vmatprep.subr.bf16.mxu0 0
      %830 = vmatpush2.bf16.msra.mxu0 0
      %831 = vmatprep.subr.bf16.mxu0 0
      %832 = vmatpush2.bf16.msra.mxu0 0
      %833 = vmatprep.subr.bf16.mxu0 0
      %834 = vmatpush2.bf16.msra.mxu0 0
      %835 = vmatprep.subr.bf16.mxu0 0
      %836 = vmatpush2.bf16.msra.mxu0 0
      %837 = vmatprep.subr.bf16.mxu0 0
      %838 = vmatpush2.bf16.msra.mxu0 0
      %839 = vmatprep.subr.bf16.mxu0 0
      %840 = vmatpush2.bf16.msra.mxu0 0
      %841 = vmatprep.subr.bf16.mxu0 0
      %842 = vmatpush2.bf16.msra.mxu0 0
      %843 = vmatprep.subr.bf16.mxu0 0
      %844 = vmatpush2.bf16.msra.mxu0 0
      %845 = vmatprep.mubr.bf16.mxu0 0
      %846 = vmatmul.mubr.bf16.gmra.mxu0 %v622
      %v847 = vpop.f32.mrf.mxu0
      %v848 = vadd.f32 0.0, %v847
      %v849 = vpop.f32.mrf.mxu0
      %v850 = vpop.f32.mrf.mxu0
      %v851 = vadd.f32 0.0, %v850
      %v852 = vpop.f32.mrf.mxu0
      %853 = vmatprep.mubr.bf16.mxu0 0
      %854 = vmatmul.mubr.bf16.gmra.mxu0 %v625
      %v855 = vpop.f32.mrf.mxu0
      %v856 = vadd.f32 0.0, %v855
      %v857 = vpop.f32.mrf.mxu0
      %v858 = vpop.f32.mrf.mxu0
      %v859 = vadd.f32 0.0, %v858
      %v860 = vpop.f32.mrf.mxu0
      %861 = vmatprep.mubr.bf16.mxu0 0
      %862 = vmatmul.mubr.bf16.gmra.mxu0 %v628
      %v863 = vpop.f32.mrf.mxu0
      %v864 = vadd.f32 0.0, %v863
      %v865 = vpop.f32.mrf.mxu0
      %v866 = vpop.f32.mrf.mxu0
      %v867 = vadd.f32 0.0, %v866
      %v868 = vpop.f32.mrf.mxu0
      %869 = vmatprep.mubr.bf16.mxu0 0
      %870 = vmatmul.mubr.bf16.gmra.mxu0 %v631
      %v871 = vpop.f32.mrf.mxu0
      %v872 = vadd.f32 0.0, %v871
      %v873 = vpop.f32.mrf.mxu0
      %v874 = vpop.f32.mrf.mxu0
      %v875 = vadd.f32 0.0, %v874
      %v876 = vpop.f32.mrf.mxu0
      %877 = vmatprep.mubr.bf16.mxu0 0
      %878 = vmatmul.mubr.bf16.gmra.mxu0 %v634
      %v879 = vpop.f32.mrf.mxu0
      %v880 = vadd.f32 0.0, %v879
      %v881 = vpop.f32.mrf.mxu0
      %v882 = vpop.f32.mrf.mxu0
      %v883 = vadd.f32 0.0, %v882
      %v884 = vpop.f32.mrf.mxu0
      %885 = vmatprep.mubr.bf16.mxu0 0
      %886 = vmatmul.mubr.bf16.gmra.mxu0 %v637
      %v887 = vpop.f32.mrf.mxu0
      %v888 = vadd.f32 0.0, %v887
      %v889 = vpop.f32.mrf.mxu0
      %v890 = vpop.f32.mrf.mxu0
      %v891 = vadd.f32 0.0, %v890
      %v892 = vpop.f32.mrf.mxu0
      %893 = vmatprep.mubr.bf16.mxu0 0
      %894 = vmatmul.mubr.bf16.gmra.mxu0 %v640
      %v895 = vpop.f32.mrf.mxu0
      %v896 = vadd.f32 0.0, %v895
      %v897 = vpop.f32.mrf.mxu0
      %v898 = vpop.f32.mrf.mxu0
      %v899 = vadd.f32 0.0, %v898
      %v900 = vpop.f32.mrf.mxu0
      %901 = vmatprep.mubr.bf16.mxu0 0
      %902 = vmatmul.mubr.bf16.gmra.mxu0 %v643
      %v903 = vpop.f32.mrf.mxu0
      %v904 = vadd.f32 0.0, %v903
      %v905 = vpop.f32.mrf.mxu0
      %v906 = vpop.f32.mrf.mxu0
      %v907 = vadd.f32 0.0, %v906
      %v908 = vpop.f32.mrf.mxu0
      %909 = vmatprep.mubr.bf16.mxu0 0
      %910 = vmatmul.mubr.bf16.gmra.mxu0 %v646
      %v911 = vpop.f32.mrf.mxu0
      %v912 = vadd.f32 0.0, %v911
      %v913 = vpop.f32.mrf.mxu0
      %v914 = vpop.f32.mrf.mxu0
      %v915 = vadd.f32 0.0, %v914
      %v916 = vpop.f32.mrf.mxu0
      %917 = vmatprep.mubr.bf16.mxu0 0
      %918 = vmatmul.mubr.bf16.gmra.mxu0 %v649
      %v919 = vpop.f32.mrf.mxu0
      %v920 = vadd.f32 0.0, %v919
      %v921 = vpop.f32.mrf.mxu0
      %v922 = vpop.f32.mrf.mxu0
      %v923 = vadd.f32 0.0, %v922
      %v924 = vpop.f32.mrf.mxu0
      %925 = vmatprep.mubr.bf16.mxu0 0
      %926 = vmatmul.mubr.bf16.gmra.mxu0 %v652
      %v927 = vpop.f32.mrf.mxu0
      %v928 = vadd.f32 0.0, %v927
      %v929 = vpop.f32.mrf.mxu0
      %v930 = vpop.f32.mrf.mxu0
      %v931 = vadd.f32 0.0, %v930
      %v932 = vpop.f32.mrf.mxu0
      %933 = vmatprep.mubr.bf16.mxu0 0
      %934 = vmatmul.mubr.bf16.gmra.mxu0 %v655
      %v935 = vpop.f32.mrf.mxu0
      %v936 = vadd.f32 0.0, %v935
      %v937 = vpop.f32.mrf.mxu0
      %v938 = vpop.f32.mrf.mxu0
      %v939 = vadd.f32 0.0, %v938
      %v940 = vpop.f32.mrf.mxu0
      %941 = vmatprep.mubr.bf16.mxu0 0
      %942 = vmatmul.mubr.bf16.gmra.mxu0 %v658
      %v943 = vpop.f32.mrf.mxu0
      %v944 = vadd.f32 0.0, %v943
      %v945 = vpop.f32.mrf.mxu0
      %v946 = vpop.f32.mrf.mxu0
      %v947 = vadd.f32 0.0, %v946
      %v948 = vpop.f32.mrf.mxu0
      %949 = vmatprep.mubr.bf16.mxu0 0
      %950 = vmatmul.mubr.bf16.gmra.mxu0 %v661
      %v951 = vpop.f32.mrf.mxu0
      %v952 = vadd.f32 0.0, %v951
      %v953 = vpop.f32.mrf.mxu0
      %v954 = vpop.f32.mrf.mxu0
      %v955 = vadd.f32 0.0, %v954
      %v956 = vpop.f32.mrf.mxu0
      %957 = vmatprep.mubr.bf16.mxu0 0
      %958 = vmatmul.mubr.bf16.gmra.mxu0 %v664
      %v959 = vpop.f32.mrf.mxu0
      %v960 = vadd.f32 0.0, %v959
      %v961 = vpop.f32.mrf.mxu0
      %v962 = vpop.f32.mrf.mxu0
      %v963 = vadd.f32 0.0, %v962
      %v964 = vpop.f32.mrf.mxu0
      %965 = vmatprep.mubr.bf16.mxu0 0
      %966 = vmatmul.mubr.bf16.gmra.mxu0 %v667
      %v967 = vpop.f32.mrf.mxu0
      %v968 = vadd.f32 0.0, %v967
      %v969 = vpop.f32.mrf.mxu0
      %v970 = vpop.f32.mrf.mxu0
      %v971 = vadd.f32 0.0, %v970
      %v972 = vpop.f32.mrf.mxu0
      %973 = vmatprep.mubr.bf16.mxu0 0
      %974 = vmatmul.mubr.bf16.gmra.mxu0 %v670
      %v975 = vpop.f32.mrf.mxu0
      %v976 = vadd.f32 0.0, %v975
      %v977 = vpop.f32.mrf.mxu0
      %v978 = vpop.f32.mrf.mxu0
      %v979 = vadd.f32 0.0, %v978
      %v980 = vpop.f32.mrf.mxu0
      %981 = vmatprep.mubr.bf16.mxu0 0
      %982 = vmatmul.mubr.bf16.gmra.mxu0 %v673
      %v983 = vpop.f32.mrf.mxu0
      %v984 = vadd.f32 0.0, %v983
      %v985 = vpop.f32.mrf.mxu0
      %v986 = vpop.f32.mrf.mxu0
      %v987 = vadd.f32 0.0, %v986
      %v988 = vpop.f32.mrf.mxu0
      %989 = vmatprep.mubr.bf16.mxu0 0
      %990 = vmatmul.mubr.bf16.gmra.mxu0 %v676
      %v991 = vpop.f32.mrf.mxu0
      %v992 = vadd.f32 0.0, %v991
      %v993 = vpop.f32.mrf.mxu0
      %v994 = vpop.f32.mrf.mxu0
      %v995 = vadd.f32 0.0, %v994
      %v996 = vpop.f32.mrf.mxu0
      %997 = vmatprep.mubr.bf16.mxu0 0
      %998 = vmatmul.mubr.bf16.gmra.mxu0 %v679
      %v999 = vpop.f32.mrf.mxu0
      %v1000 = vadd.f32 0.0, %v999
      %v1001 = vpop.f32.mrf.mxu0
      %v1002 = vpop.f32.mrf.mxu0
      %v1003 = vadd.f32 0.0, %v1002
      %v1004 = vpop.f32.mrf.mxu0
      %1005 = vmatprep.mubr.bf16.mxu0 0
      %1006 = vmatmul.mubr.bf16.gmra.mxu0 %v682
      %v1007 = vpop.f32.mrf.mxu0
      %v1008 = vadd.f32 0.0, %v1007
      %v1009 = vpop.f32.mrf.mxu0
      %v1010 = vpop.f32.mrf.mxu0
      %v1011 = vadd.f32 0.0, %v1010
      %v1012 = vpop.f32.mrf.mxu0
      %1013 = vmatprep.mubr.bf16.mxu0 0
      %1014 = vmatmul.mubr.bf16.gmra.mxu0 %v685
      %v1015 = vpop.f32.mrf.mxu0
      %v1016 = vadd.f32 0.0, %v1015
      %v1017 = vpop.f32.mrf.mxu0
      %v1018 = vpop.f32.mrf.mxu0
      %v1019 = vadd.f32 0.0, %v1018
      %v1020 = vpop.f32.mrf.mxu0
      %1021 = vmatprep.mubr.bf16.mxu0 0
      %1022 = vmatmul.mubr.bf16.gmra.mxu0 %v688
      %v1023 = vpop.f32.mrf.mxu0
      %v1024 = vadd.f32 0.0, %v1023
      %v1025 = vpop.f32.mrf.mxu0
      %v1026 = vpop.f32.mrf.mxu0
      %v1027 = vadd.f32 0.0, %v1026
      %v1028 = vpop.f32.mrf.mxu0
      %1029 = vmatprep.mubr.bf16.mxu0 0
      %1030 = vmatmul.mubr.bf16.gmra.mxu0 %v691
      %v1031 = vpop.f32.mrf.mxu0
      %v1032 = vadd.f32 0.0, %v1031
      %v1033 = vpop.f32.mrf.mxu0
      %v1034 = vpop.f32.mrf.mxu0
      %v1035 = vadd.f32 0.0, %v1034
      %v1036 = vpop.f32.mrf.mxu0
      %1037 = vmatprep.mubr.bf16.mxu0 0
      %1038 = vmatmul.mubr.bf16.gmra.mxu0 %v694
      %v1039 = vpop.f32.mrf.mxu0
      %v1040 = vadd.f32 0.0, %v1039
      %v1041 = vpop.f32.mrf.mxu0
      %v1042 = vpop.f32.mrf.mxu0
      %v1043 = vadd.f32 0.0, %v1042
      %v1044 = vpop.f32.mrf.mxu0
      %1045 = vmatprep.mubr.bf16.mxu0 0
      %1046 = vmatmul.mubr.bf16.gmra.mxu0 %v697
      %v1047 = vpop.f32.mrf.mxu0
      %v1048 = vadd.f32 0.0, %v1047
      %v1049 = vpop.f32.mrf.mxu0
      %v1050 = vpop.f32.mrf.mxu0
      %v1051 = vadd.f32 0.0, %v1050
      %v1052 = vpop.f32.mrf.mxu0
      %1053 = vmatprep.mubr.bf16.mxu0 0
      %1054 = vmatmul.mubr.bf16.gmra.mxu0 %v700
      %v1055 = vpop.f32.mrf.mxu0
      %v1056 = vadd.f32 0.0, %v1055
      %v1057 = vpop.f32.mrf.mxu0
      %v1058 = vpop.f32.mrf.mxu0
      %v1059 = vadd.f32 0.0, %v1058
      %v1060 = vpop.f32.mrf.mxu0
      %1061 = vmatprep.mubr.bf16.mxu0 0
      %1062 = vmatmul.mubr.bf16.gmra.mxu0 %v703
      %v1063 = vpop.f32.mrf.mxu0
      %v1064 = vadd.f32 0.0, %v1063
      %v1065 = vpop.f32.mrf.mxu0
      %v1066 = vpop.f32.mrf.mxu0
      %v1067 = vadd.f32 0.0, %v1066
      %v1068 = vpop.f32.mrf.mxu0
      %1069 = vmatprep.mubr.bf16.mxu0 0
      %1070 = vmatmul.mubr.bf16.gmra.mxu0 %v706
      %v1071 = vpop.f32.mrf.mxu0
      %v1072 = vadd.f32 0.0, %v1071
      %v1073 = vpop.f32.mrf.mxu0
      %v1074 = vpop.f32.mrf.mxu0
      %v1075 = vadd.f32 0.0, %v1074
      %v1076 = vpop.f32.mrf.mxu0
      %1077 = vmatprep.mubr.bf16.mxu0 0
      %1078 = vmatmul.mubr.bf16.gmra.mxu0 %v709
      %v1079 = vpop.f32.mrf.mxu0
      %v1080 = vadd.f32 0.0, %v1079
      %v1081 = vpop.f32.mrf.mxu0
      %v1082 = vpop.f32.mrf.mxu0
      %v1083 = vadd.f32 0.0, %v1082
      %v1084 = vpop.f32.mrf.mxu0
      %1085 = vmatprep.mubr.bf16.mxu0 0
      %1086 = vmatmul.mubr.bf16.gmra.mxu0 %v712
      %v1087 = vpop.f32.mrf.mxu0
      %v1088 = vadd.f32 0.0, %v1087
      %v1089 = vpop.f32.mrf.mxu0
      %v1090 = vpop.f32.mrf.mxu0
      %v1091 = vadd.f32 0.0, %v1090
      %v1092 = vpop.f32.mrf.mxu0
      %1093 = vmatprep.mubr.bf16.mxu0 0
      %1094 = vmatmul.mubr.bf16.gmra.mxu0 %v715
      %v1095 = vpop.f32.mrf.mxu0
      %v1096 = vadd.f32 0.0, %v1095
      %v1097 = vpop.f32.mrf.mxu0
      %v1098 = vpop.f32.mrf.mxu0
      %v1099 = vadd.f32 0.0, %v1098
      %v1100 = vpop.f32.mrf.mxu0
      %1101 = vmatprep.mubr.bf16.mxu0 0
      %1102 = vmatmul.mubr.bf16.gmra.mxu0 %v718
      %v1103 = vpop.f32.mrf.mxu0
      %v1104 = vadd.f32 0.0, %v1103
      %v1105 = vpop.f32.mrf.mxu0
      %v1106 = vpop.f32.mrf.mxu0
      %v1107 = vadd.f32 0.0, %v1106
      %v1108 = vpop.f32.mrf.mxu0
      %1109 = vmatprep.mubr.bf16.mxu0 0
      %1110 = vmatmul.mubr.bf16.gmra.mxu0 %v721
      %v1111 = vpop.f32.mrf.mxu0
      %v1112 = vadd.f32 0.0, %v1111
      %v1113 = vpop.f32.mrf.mxu0
      %v1114 = vpop.f32.mrf.mxu0
      %v1115 = vadd.f32 0.0, %v1114
      %v1116 = vpop.f32.mrf.mxu0
      %1117 = vmatprep.mubr.bf16.mxu0 0
      %1118 = vmatmul.mubr.bf16.gmra.mxu0 %v724
      %v1119 = vpop.f32.mrf.mxu0
      %v1120 = vadd.f32 0.0, %v1119
      %v1121 = vpop.f32.mrf.mxu0
      %v1122 = vpop.f32.mrf.mxu0
      %v1123 = vadd.f32 0.0, %v1122
      %v1124 = vpop.f32.mrf.mxu0
      %1125 = vmatprep.mubr.bf16.mxu0 0
      %1126 = vmatmul.mubr.bf16.gmra.mxu0 %v727
      %v1127 = vpop.f32.mrf.mxu0
      %v1128 = vadd.f32 0.0, %v1127
      %v1129 = vpop.f32.mrf.mxu0
      %v1130 = vpop.f32.mrf.mxu0
      %v1131 = vadd.f32 0.0, %v1130
      %v1132 = vpop.f32.mrf.mxu0
      %1133 = vmatprep.mubr.bf16.mxu0 0
      %1134 = vmatmul.mubr.bf16.gmra.mxu0 %v730
      %v1135 = vpop.f32.mrf.mxu0
      %v1136 = vadd.f32 0.0, %v1135
      %v1137 = vpop.f32.mrf.mxu0
      %v1138 = vpop.f32.mrf.mxu0
      %v1139 = vadd.f32 0.0, %v1138
      %v1140 = vpop.f32.mrf.mxu0
      %1141 = vmatprep.mubr.bf16.mxu0 0
      %1142 = vmatmul.mubr.bf16.gmra.mxu0 %v733
      %v1143 = vpop.f32.mrf.mxu0
      %v1144 = vadd.f32 0.0, %v1143
      %v1145 = vpop.f32.mrf.mxu0
      %v1146 = vpop.f32.mrf.mxu0
      %v1147 = vadd.f32 0.0, %v1146
      %v1148 = vpop.f32.mrf.mxu0
      %1149 = vmatprep.mubr.bf16.mxu0 0
      %1150 = vmatmul.mubr.bf16.gmra.mxu0 %v736
      %v1151 = vpop.f32.mrf.mxu0
      %v1152 = vadd.f32 0.0, %v1151
      %v1153 = vpop.f32.mrf.mxu0
      %v1154 = vpop.f32.mrf.mxu0
      %v1155 = vadd.f32 0.0, %v1154
      %v1156 = vpop.f32.mrf.mxu0
      %1157 = vmatprep.mubr.bf16.mxu0 0
      %1158 = vmatmul.mubr.bf16.gmra.mxu0 %v739
      %v1159 = vpop.f32.mrf.mxu0
      %v1160 = vadd.f32 0.0, %v1159
      %v1161 = vpop.f32.mrf.mxu0
      %v1162 = vpop.f32.mrf.mxu0
      %v1163 = vadd.f32 0.0, %v1162
      %v1164 = vpop.f32.mrf.mxu0
      %1165 = vmatprep.mubr.bf16.mxu0 0
      %1166 = vmatmul.mubr.bf16.gmra.mxu0 %v742
      %v1167 = vpop.f32.mrf.mxu0
      %v1168 = vadd.f32 0.0, %v1167
      %v1169 = vpop.f32.mrf.mxu0
      %v1170 = vpop.f32.mrf.mxu0
      %v1171 = vadd.f32 0.0, %v1170
      %v1172 = vpop.f32.mrf.mxu0
      %1173 = vmatprep.mubr.bf16.mxu0 0
      %1174 = vmatmul.mubr.bf16.gmra.mxu0 %v745
      %v1175 = vpop.f32.mrf.mxu0
      %v1176 = vadd.f32 0.0, %v1175
      %v1177 = vpop.f32.mrf.mxu0
      %v1178 = vpop.f32.mrf.mxu0
      %v1179 = vadd.f32 0.0, %v1178
      %v1180 = vpop.f32.mrf.mxu0
      %1181 = vmatprep.mubr.bf16.mxu0 0
      %1182 = vmatmul.mubr.bf16.gmra.mxu0 %v748
      %v1183 = vpop.f32.mrf.mxu0
      %v1184 = vadd.f32 0.0, %v1183
      %v1185 = vpop.f32.mrf.mxu0
      %v1186 = vpop.f32.mrf.mxu0
      %v1187 = vadd.f32 0.0, %v1186
      %v1188 = vpop.f32.mrf.mxu0
      %1189 = vmatprep.mubr.bf16.mxu0 0
      %1190 = vmatmul.mubr.bf16.gmra.mxu0 %v751
      %v1191 = vpop.f32.mrf.mxu0
      %v1192 = vadd.f32 0.0, %v1191
      %v1193 = vpop.f32.mrf.mxu0
      %v1194 = vpop.f32.mrf.mxu0
      %v1195 = vadd.f32 0.0, %v1194
      %v1196 = vpop.f32.mrf.mxu0
      %1197 = vmatprep.mubr.bf16.mxu0 0
      %1198 = vmatmul.mubr.bf16.gmra.mxu0 %v754
      %v1199 = vpop.f32.mrf.mxu0
      %v1200 = vadd.f32 0.0, %v1199
      %v1201 = vpop.f32.mrf.mxu0
      %v1202 = vpop.f32.mrf.mxu0
      %v1203 = vadd.f32 0.0, %v1202
      %v1204 = vpop.f32.mrf.mxu0
      %1205 = vmatprep.mubr.bf16.mxu0 0
      %1206 = vmatmul.mubr.bf16.gmra.mxu0 %v757
      %v1207 = vpop.f32.mrf.mxu0
      %v1208 = vadd.f32 0.0, %v1207
      %v1209 = vpop.f32.mrf.mxu0
      %v1210 = vpop.f32.mrf.mxu0
      %v1211 = vadd.f32 0.0, %v1210
      %v1212 = vpop.f32.mrf.mxu0
      %1213 = vmatprep.mubr.bf16.mxu0 0
      %1214 = vmatmul.mubr.bf16.gmra.mxu0 %v760
      %v1215 = vpop.f32.mrf.mxu0
      %v1216 = vadd.f32 0.0, %v1215
      %v1217 = vpop.f32.mrf.mxu0
      %v1218 = vpop.f32.mrf.mxu0
      %v1219 = vadd.f32 0.0, %v1218
      %v1220 = vpop.f32.mrf.mxu0
      %1221 = vmatprep.mubr.bf16.mxu0 0
      %1222 = vmatmul.mubr.bf16.gmra.mxu0 %v763
      %v1223 = vpop.f32.mrf.mxu0
      %v1224 = vadd.f32 0.0, %v1223
      %v1225 = vpop.f32.mrf.mxu0
      %v1226 = vpop.f32.mrf.mxu0
      %v1227 = vadd.f32 0.0, %v1226
      %v1228 = vpop.f32.mrf.mxu0
      %1229 = vmatprep.mubr.bf16.mxu0 0
      %1230 = vmatmul.mubr.bf16.gmra.mxu0 %v766
      %v1231 = vpop.f32.mrf.mxu0
      %v1232 = vadd.f32 0.0, %v1231
      %v1233 = vpop.f32.mrf.mxu0
      %v1234 = vpop.f32.mrf.mxu0
      %v1235 = vadd.f32 0.0, %v1234
      %v1236 = vpop.f32.mrf.mxu0
      %1237 = vmatprep.mubr.bf16.mxu0 0
      %1238 = vmatmul.mubr.bf16.gmra.mxu0 %v769
      %v1239 = vpop.f32.mrf.mxu0
      %v1240 = vadd.f32 0.0, %v1239
      %v1241 = vpop.f32.mrf.mxu0
      %v1242 = vpop.f32.mrf.mxu0
      %v1243 = vadd.f32 0.0, %v1242
      %v1244 = vpop.f32.mrf.mxu0
      %1245 = vmatprep.mubr.bf16.mxu0 0
      %1246 = vmatmul.mubr.bf16.gmra.mxu0 %v772
      %v1247 = vpop.f32.mrf.mxu0
      %v1248 = vadd.f32 0.0, %v1247
      %v1249 = vpop.f32.mrf.mxu0
      %v1250 = vpop.f32.mrf.mxu0
      %v1251 = vadd.f32 0.0, %v1250
      %v1252 = vpop.f32.mrf.mxu0
      %1253 = vmatprep.mubr.bf16.mxu0 0
      %1254 = vmatmul.mubr.bf16.gmra.mxu0 %v775
      %v1255 = vpop.f32.mrf.mxu0
      %v1256 = vadd.f32 0.0, %v1255
      %v1257 = vpop.f32.mrf.mxu0
      %v1258 = vpop.f32.mrf.mxu0
      %v1259 = vadd.f32 0.0, %v1258
      %v1260 = vpop.f32.mrf.mxu0
      %1261 = vmatprep.mubr.bf16.mxu0 0
      %1262 = vmatmul.mubr.bf16.gmra.mxu0 %v778
      %v1263 = vpop.f32.mrf.mxu0
      %v1264 = vadd.f32 0.0, %v1263
      %v1265 = vpop.f32.mrf.mxu0
      %v1266 = vpop.f32.mrf.mxu0
      %v1267 = vadd.f32 0.0, %v1266
      %v1268 = vpop.f32.mrf.mxu0
      %1269 = vmatprep.mubr.bf16.mxu0 0
      %1270 = vmatmul.mubr.bf16.gmra.mxu0 %v781
      %v1271 = vpop.f32.mrf.mxu0
      %v1272 = vadd.f32 0.0, %v1271
      %v1273 = vpop.f32.mrf.mxu0
      %v1274 = vpop.f32.mrf.mxu0
      %v1275 = vadd.f32 0.0, %v1274
      %v1276 = vpop.f32.mrf.mxu0
      %1277 = vmatprep.mubr.bf16.mxu0 0
      %1278 = vmatmul.mubr.bf16.gmra.mxu0 %v784
      %v1279 = vpop.f32.mrf.mxu0
      %v1280 = vadd.f32 0.0, %v1279
      %v1281 = vpop.f32.mrf.mxu0
      %v1282 = vpop.f32.mrf.mxu0
      %v1283 = vadd.f32 0.0, %v1282
      %v1284 = vpop.f32.mrf.mxu0
      %1285 = vmatprep.mubr.bf16.mxu0 0
      %1286 = vmatmul.mubr.bf16.gmra.mxu0 %v787
      %v1287 = vpop.f32.mrf.mxu0
      %v1288 = vadd.f32 0.0, %v1287
      %v1289 = vpop.f32.mrf.mxu0
      %v1290 = vpop.f32.mrf.mxu0
      %v1291 = vadd.f32 0.0, %v1290
      %v1292 = vpop.f32.mrf.mxu0
      %1293 = vmatprep.mubr.bf16.mxu0 0
      %1294 = vmatmul.mubr.bf16.gmra.mxu0 %v790
      %v1295 = vpop.f32.mrf.mxu0
      %v1296 = vadd.f32 0.0, %v1295
      %v1297 = vpop.f32.mrf.mxu0
      %v1298 = vpop.f32.mrf.mxu0
      %v1299 = vadd.f32 0.0, %v1298
      %v1300 = vpop.f32.mrf.mxu0
      %1301 = vmatprep.mubr.bf16.mxu0 0
      %1302 = vmatmul.mubr.bf16.gmra.mxu0 %v793
      %v1303 = vpop.f32.mrf.mxu0
      %v1304 = vadd.f32 0.0, %v1303
      %v1305 = vpop.f32.mrf.mxu0
      %v1306 = vpop.f32.mrf.mxu0
      %v1307 = vadd.f32 0.0, %v1306
      %v1308 = vpop.f32.mrf.mxu0
      %1309 = vmatprep.mubr.bf16.mxu0 0
      %1310 = vmatmul.mubr.bf16.gmra.mxu0 %v796
      %v1311 = vpop.f32.mrf.mxu0
      %v1312 = vadd.f32 0.0, %v1311
      %v1313 = vpop.f32.mrf.mxu0
      %v1314 = vpop.f32.mrf.mxu0
      %v1315 = vadd.f32 0.0, %v1314
      %v1316 = vpop.f32.mrf.mxu0
      %1317 = vmatprep.mubr.bf16.mxu0 0
      %1318 = vmatmul.mubr.bf16.gmra.mxu0 %v799
      %v1319 = vpop.f32.mrf.mxu0
      %v1320 = vadd.f32 0.0, %v1319
      %v1321 = vpop.f32.mrf.mxu0
      %v1322 = vpop.f32.mrf.mxu0
      %v1323 = vadd.f32 0.0, %v1322
      %v1324 = vpop.f32.mrf.mxu0
      %1325 = vmatprep.mubr.bf16.mxu0 0
      %1326 = vmatmul.mubr.bf16.gmra.mxu0 %v802
      %v1327 = vpop.f32.mrf.mxu0
      %v1328 = vadd.f32 0.0, %v1327
      %v1329 = vpop.f32.mrf.mxu0
      %v1330 = vpop.f32.mrf.mxu0
      %v1331 = vadd.f32 0.0, %v1330
      %v1332 = vpop.f32.mrf.mxu0
      %1333 = vmatprep.mubr.bf16.mxu0 0
      %1334 = vmatmul.mubr.bf16.gmra.mxu0 %v805
      %v1335 = vpop.f32.mrf.mxu0
      %v1336 = vadd.f32 0.0, %v1335
      %v1337 = vpop.f32.mrf.mxu0
      %v1338 = vpop.f32.mrf.mxu0
      %v1339 = vadd.f32 0.0, %v1338
      %v1340 = vpop.f32.mrf.mxu0
      %1341 = vmatprep.mubr.bf16.mxu0 0
      %1342 = vmatmul.mubr.bf16.gmra.mxu0 %v808
      %v1343 = vpop.f32.mrf.mxu0
      %v1344 = vadd.f32 0.0, %v1343
      %v1345 = vpop.f32.mrf.mxu0
      %v1346 = vpop.f32.mrf.mxu0
      %v1347 = vadd.f32 0.0, %v1346
      %v1348 = vpop.f32.mrf.mxu0
      %1349 = vmatprep.mubr.bf16.mxu0 0
      %1350 = vmatmul.mubr.bf16.gmra.mxu0 %v811
      %v1351 = vpop.f32.mrf.mxu0
      %v1352 = vadd.f32 0.0, %v1351
      %v1353 = vpop.f32.mrf.mxu0
      %v1354 = vpop.f32.mrf.mxu0
      %v1355 = vadd.f32 0.0, %v1354
      %v1356 = vpop.f32.mrf.mxu0
      %1357 = vdwg.mxu0
      %vm1358 = vcmp.gt.f32.partialorder %v848, 0.0
      %vm1359 = vcmp.gt.f32.partialorder %v851, 0.0
      %vm1360 = vcmp.gt.f32.partialorder %v856, 0.0
      %vm1361 = vcmp.gt.f32.partialorder %v859, 0.0
      %vm1362 = vcmp.gt.f32.partialorder %v864, 0.0
      %vm1363 = vcmp.gt.f32.partialorder %v867, 0.0
      %vm1364 = vcmp.gt.f32.partialorder %v872, 0.0
      %vm1365 = vcmp.gt.f32.partialorder %v875, 0.0
      %vm1366 = vcmp.gt.f32.partialorder %v880, 0.0
      %vm1367 = vcmp.gt.f32.partialorder %v883, 0.0
      %vm1368 = vcmp.gt.f32.partialorder %v888, 0.0
      %vm1369 = vcmp.gt.f32.partialorder %v891, 0.0
      %vm1370 = vcmp.gt.f32.partialorder %v896, 0.0
      %vm1371 = vcmp.gt.f32.partialorder %v899, 0.0
      %vm1372 = vcmp.gt.f32.partialorder %v904, 0.0
      %vm1373 = vcmp.gt.f32.partialorder %v907, 0.0
      %vm1374 = vcmp.gt.f32.partialorder %v912, 0.0
      %vm1375 = vcmp.gt.f32.partialorder %v915, 0.0
      %vm1376 = vcmp.gt.f32.partialorder %v920, 0.0
      %vm1377 = vcmp.gt.f32.partialorder %v923, 0.0
      %vm1378 = vcmp.gt.f32.partialorder %v928, 0.0
      %vm1379 = vcmp.gt.f32.partialorder %v931, 0.0
      %vm1380 = vcmp.gt.f32.partialorder %v936, 0.0
      %vm1381 = vcmp.gt.f32.partialorder %v939, 0.0
      %vm1382 = vcmp.gt.f32.partialorder %v944, 0.0
      %vm1383 = vcmp.gt.f32.partialorder %v947, 0.0
      %vm1384 = vcmp.gt.f32.partialorder %v952, 0.0
      %vm1385 = vcmp.gt.f32.partialorder %v955, 0.0
      %vm1386 = vcmp.gt.f32.partialorder %v960, 0.0
      %vm1387 = vcmp.gt.f32.partialorder %v963, 0.0
      %vm1388 = vcmp.gt.f32.partialorder %v968, 0.0
      %vm1389 = vcmp.gt.f32.partialorder %v971, 0.0
      %vm1390 = vcmp.gt.f32.partialorder %v976, 0.0
      %vm1391 = vcmp.gt.f32.partialorder %v979, 0.0
      %vm1392 = vcmp.gt.f32.partialorder %v984, 0.0
      %vm1393 = vcmp.gt.f32.partialorder %v987, 0.0
      %vm1394 = vcmp.gt.f32.partialorder %v992, 0.0
      %vm1395 = vcmp.gt.f32.partialorder %v995, 0.0
      %vm1396 = vcmp.gt.f32.partialorder %v1000, 0.0
      %vm1397 = vcmp.gt.f32.partialorder %v1003, 0.0
      %vm1398 = vcmp.gt.f32.partialorder %v1008, 0.0
      %vm1399 = vcmp.gt.f32.partialorder %v1011, 0.0
      %vm1400 = vcmp.gt.f32.partialorder %v1016, 0.0
      %vm1401 = vcmp.gt.f32.partialorder %v1019, 0.0
      %vm1402 = vcmp.gt.f32.partialorder %v1024, 0.0
      %vm1403 = vcmp.gt.f32.partialorder %v1027, 0.0
      %vm1404 = vcmp.gt.f32.partialorder %v1032, 0.0
      %vm1405 = vcmp.gt.f32.partialorder %v1035, 0.0
      %vm1406 = vcmp.gt.f32.partialorder %v1040, 0.0
      %vm1407 = vcmp.gt.f32.partialorder %v1043, 0.0
      %vm1408 = vcmp.gt.f32.partialorder %v1048, 0.0
      %vm1409 = vcmp.gt.f32.partialorder %v1051, 0.0
      %vm1410 = vcmp.gt.f32.partialorder %v1056, 0.0
      %vm1411 = vcmp.gt.f32.partialorder %v1059, 0.0
      %vm1412 = vcmp.gt.f32.partialorder %v1064, 0.0
      %vm1413 = vcmp.gt.f32.partialorder %v1067, 0.0
      %vm1414 = vcmp.gt.f32.partialorder %v1072, 0.0
      %vm1415 = vcmp.gt.f32.partialorder %v1075, 0.0
      %vm1416 = vcmp.gt.f32.partialorder %v1080, 0.0
      %vm1417 = vcmp.gt.f32.partialorder %v1083, 0.0
      %vm1418 = vcmp.gt.f32.partialorder %v1088, 0.0
      %vm1419 = vcmp.gt.f32.partialorder %v1091, 0.0
      %vm1420 = vcmp.gt.f32.partialorder %v1096, 0.0
      %vm1421 = vcmp.gt.f32.partialorder %v1099, 0.0
      %vm1422 = vcmp.gt.f32.partialorder %v1104, 0.0
      %vm1423 = vcmp.gt.f32.partialorder %v1107, 0.0
      %vm1424 = vcmp.gt.f32.partialorder %v1112, 0.0
      %vm1425 = vcmp.gt.f32.partialorder %v1115, 0.0
      %vm1426 = vcmp.gt.f32.partialorder %v1120, 0.0
      %vm1427 = vcmp.gt.f32.partialorder %v1123, 0.0
      %vm1428 = vcmp.gt.f32.partialorder %v1128, 0.0
      %vm1429 = vcmp.gt.f32.partialorder %v1131, 0.0
      %vm1430 = vcmp.gt.f32.partialorder %v1136, 0.0
      %vm1431 = vcmp.gt.f32.partialorder %v1139, 0.0
      %vm1432 = vcmp.gt.f32.partialorder %v1144, 0.0
      %vm1433 = vcmp.gt.f32.partialorder %v1147, 0.0
      %vm1434 = vcmp.gt.f32.partialorder %v1152, 0.0
      %vm1435 = vcmp.gt.f32.partialorder %v1155, 0.0
      %vm1436 = vcmp.gt.f32.partialorder %v1160, 0.0
      %vm1437 = vcmp.gt.f32.partialorder %v1163, 0.0
      %vm1438 = vcmp.gt.f32.partialorder %v1168, 0.0
      %vm1439 = vcmp.gt.f32.partialorder %v1171, 0.0
      %vm1440 = vcmp.gt.f32.partialorder %v1176, 0.0
      %vm1441 = vcmp.gt.f32.partialorder %v1179, 0.0
      %vm1442 = vcmp.gt.f32.partialorder %v1184, 0.0
      %vm1443 = vcmp.gt.f32.partialorder %v1187, 0.0
      %vm1444 = vcmp.gt.f32.partialorder %v1192, 0.0
      %vm1445 = vcmp.gt.f32.partialorder %v1195, 0.0
      %vm1446 = vcmp.gt.f32.partialorder %v1200, 0.0
      %vm1447 = vcmp.gt.f32.partialorder %v1203, 0.0
      %vm1448 = vcmp.gt.f32.partialorder %v1208, 0.0
      %vm1449 = vcmp.gt.f32.partialorder %v1211, 0.0
      %vm1450 = vcmp.gt.f32.partialorder %v1216, 0.0
      %vm1451 = vcmp.gt.f32.partialorder %v1219, 0.0
      %vm1452 = vcmp.gt.f32.partialorder %v1224, 0.0
      %vm1453 = vcmp.gt.f32.partialorder %v1227, 0.0
      %vm1454 = vcmp.gt.f32.partialorder %v1232, 0.0
      %vm1455 = vcmp.gt.f32.partialorder %v1235, 0.0
      %vm1456 = vcmp.gt.f32.partialorder %v1240, 0.0
      %vm1457 = vcmp.gt.f32.partialorder %v1243, 0.0
      %vm1458 = vcmp.gt.f32.partialorder %v1248, 0.0
      %vm1459 = vcmp.gt.f32.partialorder %v1251, 0.0
      %vm1460 = vcmp.gt.f32.partialorder %v1256, 0.0
      %vm1461 = vcmp.gt.f32.partialorder %v1259, 0.0
      %vm1462 = vcmp.gt.f32.partialorder %v1264, 0.0
      %vm1463 = vcmp.gt.f32.partialorder %v1267, 0.0
      %vm1464 = vcmp.gt.f32.partialorder %v1272, 0.0
      %vm1465 = vcmp.gt.f32.partialorder %v1275, 0.0
      %vm1466 = vcmp.gt.f32.partialorder %v1280, 0.0
      %vm1467 = vcmp.gt.f32.partialorder %v1283, 0.0
      %vm1468 = vcmp.gt.f32.partialorder %v1288, 0.0
      %vm1469 = vcmp.gt.f32.partialorder %v1291, 0.0
      %vm1470 = vcmp.gt.f32.partialorder %v1296, 0.0
      %vm1471 = vcmp.gt.f32.partialorder %v1299, 0.0
      %vm1472 = vcmp.gt.f32.partialorder %v1304, 0.0
      %vm1473 = vcmp.gt.f32.partialorder %v1307, 0.0
      %vm1474 = vcmp.gt.f32.partialorder %v1312, 0.0
      %vm1475 = vcmp.gt.f32.partialorder %v1315, 0.0
      %vm1476 = vcmp.gt.f32.partialorder %v1320, 0.0
      %vm1477 = vcmp.gt.f32.partialorder %v1323, 0.0
      %vm1478 = vcmp.gt.f32.partialorder %v1328, 0.0
      %vm1479 = vcmp.gt.f32.partialorder %v1331, 0.0
      %vm1480 = vcmp.gt.f32.partialorder %v1336, 0.0
      %vm1481 = vcmp.gt.f32.partialorder %v1339, 0.0
      %vm1482 = vcmp.gt.f32.partialorder %v1344, 0.0
      %vm1483 = vcmp.gt.f32.partialorder %v1347, 0.0
      %vm1484 = vcmp.gt.f32.partialorder %v1352, 0.0
      %vm1485 = vcmp.gt.f32.partialorder %v1355, 0.0
      %v1486 = vmul.f32 %v848, 0.2
      %v1487 = vmul.f32 %v851, 0.2
      %v1488 = vmul.f32 %v856, 0.2
      %v1489 = vmul.f32 %v859, 0.2
      %v1490 = vmul.f32 %v864, 0.2
      %v1491 = vmul.f32 %v867, 0.2
      %v1492 = vmul.f32 %v872, 0.2
      %v1493 = vmul.f32 %v875, 0.2
      %v1494 = vmul.f32 %v880, 0.2
      %v1495 = vmul.f32 %v883, 0.2
      %v1496 = vmul.f32 %v888, 0.2
      %v1497 = vmul.f32 %v891, 0.2
      %v1498 = vmul.f32 %v896, 0.2
      %v1499 = vmul.f32 %v899, 0.2
      %v1500 = vmul.f32 %v904, 0.2
      %v1501 = vmul.f32 %v907, 0.2
      %v1502 = vmul.f32 %v912, 0.2
      %v1503 = vmul.f32 %v915, 0.2
      %v1504 = vmul.f32 %v920, 0.2
      %v1505 = vmul.f32 %v923, 0.2
      %v1506 = vmul.f32 %v928, 0.2
      %v1507 = vmul.f32 %v931, 0.2
      %v1508 = vmul.f32 %v936, 0.2
      %v1509 = vmul.f32 %v939, 0.2
      %v1510 = vmul.f32 %v944, 0.2
      %v1511 = vmul.f32 %v947, 0.2
      %v1512 = vmul.f32 %v952, 0.2
      %v1513 = vmul.f32 %v955, 0.2
      %v1514 = vmul.f32 %v960, 0.2
      %v1515 = vmul.f32 %v963, 0.2
      %v1516 = vmul.f32 %v968, 0.2
      %v1517 = vmul.f32 %v971, 0.2
      %v1518 = vmul.f32 %v976, 0.2
      %v1519 = vmul.f32 %v979, 0.2
      %v1520 = vmul.f32 %v984, 0.2
      %v1521 = vmul.f32 %v987, 0.2
      %v1522 = vmul.f32 %v992, 0.2
      %v1523 = vmul.f32 %v995, 0.2
      %v1524 = vmul.f32 %v1000, 0.2
      %v1525 = vmul.f32 %v1003, 0.2
      %v1526 = vmul.f32 %v1008, 0.2
      %v1527 = vmul.f32 %v1011, 0.2
      %v1528 = vmul.f32 %v1016, 0.2
      %v1529 = vmul.f32 %v1019, 0.2
      %v1530 = vmul.f32 %v1024, 0.2
      %v1531 = vmul.f32 %v1027, 0.2
      %v1532 = vmul.f32 %v1032, 0.2
      %v1533 = vmul.f32 %v1035, 0.2
      %v1534 = vmul.f32 %v1040, 0.2
      %v1535 = vmul.f32 %v1043, 0.2
      %v1536 = vmul.f32 %v1048, 0.2
      %v1537 = vmul.f32 %v1051, 0.2
      %v1538 = vmul.f32 %v1056, 0.2
      %v1539 = vmul.f32 %v1059, 0.2
      %v1540 = vmul.f32 %v1064, 0.2
      %v1541 = vmul.f32 %v1067, 0.2
      %v1542 = vmul.f32 %v1072, 0.2
      %v1543 = vmul.f32 %v1075, 0.2
      %v1544 = vmul.f32 %v1080, 0.2
      %v1545 = vmul.f32 %v1083, 0.2
      %v1546 = vmul.f32 %v1088, 0.2
      %v1547 = vmul.f32 %v1091, 0.2
      %v1548 = vmul.f32 %v1096, 0.2
      %v1549 = vmul.f32 %v1099, 0.2
      %v1550 = vmul.f32 %v1104, 0.2
      %v1551 = vmul.f32 %v1107, 0.2
      %v1552 = vmul.f32 %v1112, 0.2
      %v1553 = vmul.f32 %v1115, 0.2
      %v1554 = vmul.f32 %v1120, 0.2
      %v1555 = vmul.f32 %v1123, 0.2
      %v1556 = vmul.f32 %v1128, 0.2
      %v1557 = vmul.f32 %v1131, 0.2
      %v1558 = vmul.f32 %v1136, 0.2
      %v1559 = vmul.f32 %v1139, 0.2
      %v1560 = vmul.f32 %v1144, 0.2
      %v1561 = vmul.f32 %v1147, 0.2
      %v1562 = vmul.f32 %v1152, 0.2
      %v1563 = vmul.f32 %v1155, 0.2
      %v1564 = vmul.f32 %v1160, 0.2
      %v1565 = vmul.f32 %v1163, 0.2
      %v1566 = vmul.f32 %v1168, 0.2
      %v1567 = vmul.f32 %v1171, 0.2
      %v1568 = vmul.f32 %v1176, 0.2
      %v1569 = vmul.f32 %v1179, 0.2
      %v1570 = vmul.f32 %v1184, 0.2
      %v1571 = vmul.f32 %v1187, 0.2
      %v1572 = vmul.f32 %v1192, 0.2
      %v1573 = vmul.f32 %v1195, 0.2
      %v1574 = vmul.f32 %v1200, 0.2
      %v1575 = vmul.f32 %v1203, 0.2
      %v1576 = vmul.f32 %v1208, 0.2
      %v1577 = vmul.f32 %v1211, 0.2
      %v1578 = vmul.f32 %v1216, 0.2
      %v1579 = vmul.f32 %v1219, 0.2
      %v1580 = vmul.f32 %v1224, 0.2
      %v1581 = vmul.f32 %v1227, 0.2
      %v1582 = vmul.f32 %v1232, 0.2
      %v1583 = vmul.f32 %v1235, 0.2
      %v1584 = vmul.f32 %v1240, 0.2
      %v1585 = vmul.f32 %v1243, 0.2
      %v1586 = vmul.f32 %v1248, 0.2
      %v1587 = vmul.f32 %v1251, 0.2
      %v1588 = vmul.f32 %v1256, 0.2
      %v1589 = vmul.f32 %v1259, 0.2
      %v1590 = vmul.f32 %v1264, 0.2
      %v1591 = vmul.f32 %v1267, 0.2
      %v1592 = vmul.f32 %v1272, 0.2
      %v1593 = vmul.f32 %v1275, 0.2
      %v1594 = vmul.f32 %v1280, 0.2
      %v1595 = vmul.f32 %v1283, 0.2
      %v1596 = vmul.f32 %v1288, 0.2
      %v1597 = vmul.f32 %v1291, 0.2
      %v1598 = vmul.f32 %v1296, 0.2
      %v1599 = vmul.f32 %v1299, 0.2
      %v1600 = vmul.f32 %v1304, 0.2
      %v1601 = vmul.f32 %v1307, 0.2
      %v1602 = vmul.f32 %v1312, 0.2
      %v1603 = vmul.f32 %v1315, 0.2
      %v1604 = vmul.f32 %v1320, 0.2
      %v1605 = vmul.f32 %v1323, 0.2
      %v1606 = vmul.f32 %v1328, 0.2
      %v1607 = vmul.f32 %v1331, 0.2
      %v1608 = vmul.f32 %v1336, 0.2
      %v1609 = vmul.f32 %v1339, 0.2
      %v1610 = vmul.f32 %v1344, 0.2
      %v1611 = vmul.f32 %v1347, 0.2
      %v1612 = vmul.f32 %v1352, 0.2
      %v1613 = vmul.f32 %v1355, 0.2
      %v1614 = vsel %vm1358, %v848, %v1486
      %v1615 = vsel %vm1359, %v851, %v1487
      %v1616 = vsel %vm1360, %v856, %v1488
      %v1617 = vsel %vm1361, %v859, %v1489
      %v1618 = vsel %vm1362, %v864, %v1490
      %v1619 = vsel %vm1363, %v867, %v1491
      %v1620 = vsel %vm1364, %v872, %v1492
      %v1621 = vsel %vm1365, %v875, %v1493
      %v1622 = vsel %vm1366, %v880, %v1494
      %v1623 = vsel %vm1367, %v883, %v1495
      %v1624 = vsel %vm1368, %v888, %v1496
      %v1625 = vsel %vm1369, %v891, %v1497
      %v1626 = vsel %vm1370, %v896, %v1498
      %v1627 = vsel %vm1371, %v899, %v1499
      %v1628 = vsel %vm1372, %v904, %v1500
      %v1629 = vsel %vm1373, %v907, %v1501
      %v1630 = vsel %vm1374, %v912, %v1502
      %v1631 = vsel %vm1375, %v915, %v1503
      %v1632 = vsel %vm1376, %v920, %v1504
      %v1633 = vsel %vm1377, %v923, %v1505
      %v1634 = vsel %vm1378, %v928, %v1506
      %v1635 = vsel %vm1379, %v931, %v1507
      %v1636 = vsel %vm1380, %v936, %v1508
      %v1637 = vsel %vm1381, %v939, %v1509
      %v1638 = vsel %vm1382, %v944, %v1510
      %v1639 = vsel %vm1383, %v947, %v1511
      %v1640 = vsel %vm1384, %v952, %v1512
      %v1641 = vsel %vm1385, %v955, %v1513
      %v1642 = vsel %vm1386, %v960, %v1514
      %v1643 = vsel %vm1387, %v963, %v1515
      %v1644 = vsel %vm1388, %v968, %v1516
      %v1645 = vsel %vm1389, %v971, %v1517
      %v1646 = vsel %vm1390, %v976, %v1518
      %v1647 = vsel %vm1391, %v979, %v1519
      %v1648 = vsel %vm1392, %v984, %v1520
      %v1649 = vsel %vm1393, %v987, %v1521
      %v1650 = vsel %vm1394, %v992, %v1522
      %v1651 = vsel %vm1395, %v995, %v1523
      %v1652 = vsel %vm1396, %v1000, %v1524
      %v1653 = vsel %vm1397, %v1003, %v1525
      %v1654 = vsel %vm1398, %v1008, %v1526
      %v1655 = vsel %vm1399, %v1011, %v1527
      %v1656 = vsel %vm1400, %v1016, %v1528
      %v1657 = vsel %vm1401, %v1019, %v1529
      %v1658 = vsel %vm1402, %v1024, %v1530
      %v1659 = vsel %vm1403, %v1027, %v1531
      %v1660 = vsel %vm1404, %v1032, %v1532
      %v1661 = vsel %vm1405, %v1035, %v1533
      %v1662 = vsel %vm1406, %v1040, %v1534
      %v1663 = vsel %vm1407, %v1043, %v1535
      %v1664 = vsel %vm1408, %v1048, %v1536
      %v1665 = vsel %vm1409, %v1051, %v1537
      %v1666 = vsel %vm1410, %v1056, %v1538
      %v1667 = vsel %vm1411, %v1059, %v1539
      %v1668 = vsel %vm1412, %v1064, %v1540
      %v1669 = vsel %vm1413, %v1067, %v1541
      %v1670 = vsel %vm1414, %v1072, %v1542
      %v1671 = vsel %vm1415, %v1075, %v1543
      %v1672 = vsel %vm1416, %v1080, %v1544
      %v1673 = vsel %vm1417, %v1083, %v1545
      %v1674 = vsel %vm1418, %v1088, %v1546
      %v1675 = vsel %vm1419, %v1091, %v1547
      %v1676 = vsel %vm1420, %v1096, %v1548
      %v1677 = vsel %vm1421, %v1099, %v1549
      %v1678 = vsel %vm1422, %v1104, %v1550
      %v1679 = vsel %vm1423, %v1107, %v1551
      %v1680 = vsel %vm1424, %v1112, %v1552
      %v1681 = vsel %vm1425, %v1115, %v1553
      %v1682 = vsel %vm1426, %v1120, %v1554
      %v1683 = vsel %vm1427, %v1123, %v1555
      %v1684 = vsel %vm1428, %v1128, %v1556
      %v1685 = vsel %vm1429, %v1131, %v1557
      %v1686 = vsel %vm1430, %v1136, %v1558
      %v1687 = vsel %vm1431, %v1139, %v1559
      %v1688 = vsel %vm1432, %v1144, %v1560
      %v1689 = vsel %vm1433, %v1147, %v1561
      %v1690 = vsel %vm1434, %v1152, %v1562
      %v1691 = vsel %vm1435, %v1155, %v1563
      %v1692 = vsel %vm1436, %v1160, %v1564
      %v1693 = vsel %vm1437, %v1163, %v1565
      %v1694 = vsel %vm1438, %v1168, %v1566
      %v1695 = vsel %vm1439, %v1171, %v1567
      %v1696 = vsel %vm1440, %v1176, %v1568
      %v1697 = vsel %vm1441, %v1179, %v1569
      %v1698 = vsel %vm1442, %v1184, %v1570
      %v1699 = vsel %vm1443, %v1187, %v1571
      %v1700 = vsel %vm1444, %v1192, %v1572
      %v1701 = vsel %vm1445, %v1195, %v1573
      %v1702 = vsel %vm1446, %v1200, %v1574
      %v1703 = vsel %vm1447, %v1203, %v1575
      %v1704 = vsel %vm1448, %v1208, %v1576
      %v1705 = vsel %vm1449, %v1211, %v1577
      %v1706 = vsel %vm1450, %v1216, %v1578
      %v1707 = vsel %vm1451, %v1219, %v1579
      %v1708 = vsel %vm1452, %v1224, %v1580
      %v1709 = vsel %vm1453, %v1227, %v1581
      %v1710 = vsel %vm1454, %v1232, %v1582
      %v1711 = vsel %vm1455, %v1235, %v1583
      %v1712 = vsel %vm1456, %v1240, %v1584
      %v1713 = vsel %vm1457, %v1243, %v1585
      %v1714 = vsel %vm1458, %v1248, %v1586
      %v1715 = vsel %vm1459, %v1251, %v1587
      %v1716 = vsel %vm1460, %v1256, %v1588
      %v1717 = vsel %vm1461, %v1259, %v1589
      %v1718 = vsel %vm1462, %v1264, %v1590
      %v1719 = vsel %vm1463, %v1267, %v1591
      %v1720 = vsel %vm1464, %v1272, %v1592
      %v1721 = vsel %vm1465, %v1275, %v1593
      %v1722 = vsel %vm1466, %v1280, %v1594
      %v1723 = vsel %vm1467, %v1283, %v1595
      %v1724 = vsel %vm1468, %v1288, %v1596
      %v1725 = vsel %vm1469, %v1291, %v1597
      %v1726 = vsel %vm1470, %v1296, %v1598
      %v1727 = vsel %vm1471, %v1299, %v1599
      %v1728 = vsel %vm1472, %v1304, %v1600
      %v1729 = vsel %vm1473, %v1307, %v1601
      %v1730 = vsel %vm1474, %v1312, %v1602
      %v1731 = vsel %vm1475, %v1315, %v1603
      %v1732 = vsel %vm1476, %v1320, %v1604
      %v1733 = vsel %vm1477, %v1323, %v1605
      %v1734 = vsel %vm1478, %v1328, %v1606
      %v1735 = vsel %vm1479, %v1331, %v1607
      %v1736 = vsel %vm1480, %v1336, %v1608
      %v1737 = vsel %vm1481, %v1339, %v1609
      %v1738 = vsel %vm1482, %v1344, %v1610
      %v1739 = vsel %vm1483, %v1347, %v1611
      %v1740 = vsel %vm1484, %v1352, %v1612
      %v1741 = vsel %vm1485, %v1355, %v1613
      %1742 = vst [vmem:[%s145] sm:$0xff] %v1614
      %1743 = vst [vmem:[%s145 + $0x8] sm:$0xff] %v1615
      %1744 = vst [vmem:[%s145 + $0x10] sm:$0xff] %v1616
      %1745 = vst [vmem:[%s145 + $0x18] sm:$0xff] %v1617
      %1746 = vst [vmem:[%s145 + $0x20] sm:$0xff] %v1618
      %1747 = vst [vmem:[%s145 + $0x28] sm:$0xff] %v1619
      %1748 = vst [vmem:[%s145 + $0x30] sm:$0xff] %v1620
      %1749 = vst [vmem:[%s145 + $0x38] sm:$0xff] %v1621
      %1750 = vst [vmem:[%s145 + $0x40] sm:$0xff] %v1622
      %1751 = vst [vmem:[%s145 + $0x48] sm:$0xff] %v1623
      %1752 = vst [vmem:[%s145 + $0x50] sm:$0xff] %v1624
      %1753 = vst [vmem:[%s145 + $0x58] sm:$0xff] %v1625
      %1754 = vst [vmem:[%s145 + $0x60] sm:$0xff] %v1626
      %1755 = vst [vmem:[%s145 + $0x68] sm:$0xff] %v1627
      %1756 = vst [vmem:[%s145 + $0x70] sm:$0xff] %v1628
      %1757 = vst [vmem:[%s145 + $0x78] sm:$0xff] %v1629
      %1758 = vst [vmem:[%s145 + $0x80] sm:$0xff] %v1630
      %1759 = vst [vmem:[%s145 + $0x88] sm:$0xff] %v1631
      %1760 = vst [vmem:[%s145 + $0x90] sm:$0xff] %v1632
      %1761 = vst [vmem:[%s145 + $0x98] sm:$0xff] %v1633
      %1762 = vst [vmem:[%s145 + $0xa0] sm:$0xff] %v1634
      %1763 = vst [vmem:[%s145 + $0xa8] sm:$0xff] %v1635
      %1764 = vst [vmem:[%s145 + $0xb0] sm:$0xff] %v1636
      %1765 = vst [vmem:[%s145 + $0xb8] sm:$0xff] %v1637
      %1766 = vst [vmem:[%s145 + $0xc0] sm:$0xff] %v1638
      %1767 = vst [vmem:[%s145 + $0xc8] sm:$0xff] %v1639
      %1768 = vst [vmem:[%s145 + $0xd0] sm:$0xff] %v1640
      %1769 = vst [vmem:[%s145 + $0xd8] sm:$0xff] %v1641
      %1770 = vst [vmem:[%s145 + $0xe0] sm:$0xff] %v1642
      %1771 = vst [vmem:[%s145 + $0xe8] sm:$0xff] %v1643
      %1772 = vst [vmem:[%s145 + $0xf0] sm:$0xff] %v1644
      %1773 = vst [vmem:[%s145 + $0xf8] sm:$0xff] %v1645
      %1774 = vst [vmem:[%s145 + $0x100] sm:$0xff] %v1646
      %1775 = vst [vmem:[%s145 + $0x108] sm:$0xff] %v1647
      %1776 = vst [vmem:[%s145 + $0x110] sm:$0xff] %v1648
      %1777 = vst [vmem:[%s145 + $0x118] sm:$0xff] %v1649
      %1778 = vst [vmem:[%s145 + $0x120] sm:$0xff] %v1650
      %1779 = vst [vmem:[%s145 + $0x128] sm:$0xff] %v1651
      %1780 = vst [vmem:[%s145 + $0x130] sm:$0xff] %v1652
      %1781 = vst [vmem:[%s145 + $0x138] sm:$0xff] %v1653
      %1782 = vst [vmem:[%s145 + $0x140] sm:$0xff] %v1654
      %1783 = vst [vmem:[%s145 + $0x148] sm:$0xff] %v1655
      %1784 = vst [vmem:[%s145 + $0x150] sm:$0xff] %v1656
      %1785 = vst [vmem:[%s145 + $0x158] sm:$0xff] %v1657
      %1786 = vst [vmem:[%s145 + $0x160] sm:$0xff] %v1658
      %1787 = vst [vmem:[%s145 + $0x168] sm:$0xff] %v1659
      %1788 = vst [vmem:[%s145 + $0x170] sm:$0xff] %v1660
      %1789 = vst [vmem:[%s145 + $0x178] sm:$0xff] %v1661
      %1790 = vst [vmem:[%s145 + $0x180] sm:$0xff] %v1662
      %1791 = vst [vmem:[%s145 + $0x188] sm:$0xff] %v1663
      %1792 = vst [vmem:[%s145 + $0x190] sm:$0xff] %v1664
      %1793 = vst [vmem:[%s145 + $0x198] sm:$0xff] %v1665
      %1794 = vst [vmem:[%s145 + $0x1a0] sm:$0xff] %v1666
      %1795 = vst [vmem:[%s145 + $0x1a8] sm:$0xff] %v1667
      %1796 = vst [vmem:[%s145 + $0x1b0] sm:$0xff] %v1668
      %1797 = vst [vmem:[%s145 + $0x1b8] sm:$0xff] %v1669
      %1798 = vst [vmem:[%s145 + $0x1c0] sm:$0xff] %v1670
      %1799 = vst [vmem:[%s145 + $0x1c8] sm:$0xff] %v1671
      %1800 = vst [vmem:[%s145 + $0x1d0] sm:$0xff] %v1672
      %1801 = vst [vmem:[%s145 + $0x1d8] sm:$0xff] %v1673
      %1802 = vst [vmem:[%s145 + $0x1e0] sm:$0xff] %v1674
      %1803 = vst [vmem:[%s145 + $0x1e8] sm:$0xff] %v1675
      %1804 = vst [vmem:[%s145 + $0x1f0] sm:$0xff] %v1676
      %1805 = vst [vmem:[%s145 + $0x1f8] sm:$0xff] %v1677
      %1806 = vst [vmem:[%s145 + $0x200] sm:$0xff] %v1678
      %1807 = vst [vmem:[%s145 + $0x208] sm:$0xff] %v1679
      %1808 = vst [vmem:[%s145 + $0x210] sm:$0xff] %v1680
      %1809 = vst [vmem:[%s145 + $0x218] sm:$0xff] %v1681
      %1810 = vst [vmem:[%s145 + $0x220] sm:$0xff] %v1682
      %1811 = vst [vmem:[%s145 + $0x228] sm:$0xff] %v1683
      %1812 = vst [vmem:[%s145 + $0x230] sm:$0xff] %v1684
      %1813 = vst [vmem:[%s145 + $0x238] sm:$0xff] %v1685
      %1814 = vst [vmem:[%s145 + $0x240] sm:$0xff] %v1686
      %1815 = vst [vmem:[%s145 + $0x248] sm:$0xff] %v1687
      %1816 = vst [vmem:[%s145 + $0x250] sm:$0xff] %v1688
      %1817 = vst [vmem:[%s145 + $0x258] sm:$0xff] %v1689
      %1818 = vst [vmem:[%s145 + $0x260] sm:$0xff] %v1690
      %1819 = vst [vmem:[%s145 + $0x268] sm:$0xff] %v1691
      %1820 = vst [vmem:[%s145 + $0x270] sm:$0xff] %v1692
      %1821 = vst [vmem:[%s145 + $0x278] sm:$0xff] %v1693
      %1822 = vst [vmem:[%s145 + $0x280] sm:$0xff] %v1694
      %1823 = vst [vmem:[%s145 + $0x288] sm:$0xff] %v1695
      %1824 = vst [vmem:[%s145 + $0x290] sm:$0xff] %v1696
      %1825 = vst [vmem:[%s145 + $0x298] sm:$0xff] %v1697
      %1826 = vst [vmem:[%s145 + $0x2a0] sm:$0xff] %v1698
      %1827 = vst [vmem:[%s145 + $0x2a8] sm:$0xff] %v1699
      %1828 = vst [vmem:[%s145 + $0x2b0] sm:$0xff] %v1700
      %1829 = vst [vmem:[%s145 + $0x2b8] sm:$0xff] %v1701
      %1830 = vst [vmem:[%s145 + $0x2c0] sm:$0xff] %v1702
      %1831 = vst [vmem:[%s145 + $0x2c8] sm:$0xff] %v1703
      %1832 = vst [vmem:[%s145 + $0x2d0] sm:$0xff] %v1704
      %1833 = vst [vmem:[%s145 + $0x2d8] sm:$0xff] %v1705
      %1834 = vst [vmem:[%s145 + $0x2e0] sm:$0xff] %v1706
      %1835 = vst [vmem:[%s145 + $0x2e8] sm:$0xff] %v1707
      %1836 = vst [vmem:[%s145 + $0x2f0] sm:$0xff] %v1708
      %1837 = vst [vmem:[%s145 + $0x2f8] sm:$0xff] %v1709
      %1838 = vst [vmem:[%s145 + $0x300] sm:$0xff] %v1710
      %1839 = vst [vmem:[%s145 + $0x308] sm:$0xff] %v1711
      %1840 = vst [vmem:[%s145 + $0x310] sm:$0xff] %v1712
      %1841 = vst [vmem:[%s145 + $0x318] sm:$0xff] %v1713
      %1842 = vst [vmem:[%s145 + $0x320] sm:$0xff] %v1714
      %1843 = vst [vmem:[%s145 + $0x328] sm:$0xff] %v1715
      %1844 = vst [vmem:[%s145 + $0x330] sm:$0xff] %v1716
      %1845 = vst [vmem:[%s145 + $0x338] sm:$0xff] %v1717
      %1846 = vst [vmem:[%s145 + $0x340] sm:$0xff] %v1718
      %1847 = vst [vmem:[%s145 + $0x348] sm:$0xff] %v1719
      %1848 = vst [vmem:[%s145 + $0x350] sm:$0xff] %v1720
      %1849 = vst [vmem:[%s145 + $0x358] sm:$0xff] %v1721
      %1850 = vst [vmem:[%s145 + $0x360] sm:$0xff] %v1722
      %1851 = vst [vmem:[%s145 + $0x368] sm:$0xff] %v1723
      %1852 = vst [vmem:[%s145 + $0x370] sm:$0xff] %v1724
      %1853 = vst [vmem:[%s145 + $0x378] sm:$0xff] %v1725
      %1854 = vst [vmem:[%s145 + $0x380] sm:$0xff] %v1726
      %1855 = vst [vmem:[%s145 + $0x388] sm:$0xff] %v1727
      %1856 = vst [vmem:[%s145 + $0x390] sm:$0xff] %v1728
      %1857 = vst [vmem:[%s145 + $0x398] sm:$0xff] %v1729
      %1858 = vst [vmem:[%s145 + $0x3a0] sm:$0xff] %v1730
      %1859 = vst [vmem:[%s145 + $0x3a8] sm:$0xff] %v1731
      %1860 = vst [vmem:[%s145 + $0x3b0] sm:$0xff] %v1732
      %1861 = vst [vmem:[%s145 + $0x3b8] sm:$0xff] %v1733
      %1862 = vst [vmem:[%s145 + $0x3c0] sm:$0xff] %v1734
      %1863 = vst [vmem:[%s145 + $0x3c8] sm:$0xff] %v1735
      %1864 = vst [vmem:[%s145 + $0x3d0] sm:$0xff] %v1736
      %1865 = vst [vmem:[%s145 + $0x3d8] sm:$0xff] %v1737
      %1866 = vst [vmem:[%s145 + $0x3e0] sm:$0xff] %v1738
      %1867 = vst [vmem:[%s145 + $0x3e8] sm:$0xff] %v1739
      %1868 = vst [vmem:[%s145 + $0x3f0] sm:$0xff] %v1740
      %1869 = vst [vmem:[%s145 + $0x3f8] sm:$0xff] %v1741
      %s1870 = smul.u32 128, %s13
      %p1871 = scmp.lt.s32.totalorder %s1870, 255
      %s1872 = scalar_select %p1871, %s1870, 255
      %s1873 = smul.addr %s1872, 8
      %s1874 = scalar_lea.vmem %s2, %s1873
      // Predicated region
      $region29: #{discriminator_forward.5} parent=27 // pred_check
        %p1875 = pneg %p78
      $region30: #{discriminator_forward.5} parent=27 // pred_check_branch
        %1877 = sbr.rel (%p1875) target = $region32
      $region31: #{discriminator_forward.5} parent=27 // pred_region
        %s1878 = smul.u32 128, %s13
      $region32: #{discriminator_forward.5} parent=27 // pred_fallthru
        _
    $region28: #{discriminator_forward.5} parent=5 // pred_fallthru
      _
    %p1879 = scmp.le.s32.totalorder 2, %s8
    // Predicated region
    $region33: #{discriminator_forward.5} parent=5 // pred_check
      %p1880 = pneg %p1879
    $region34: #{discriminator_forward.5} parent=5 // pred_check_branch
      %1882 = sbr.rel (%p1880) target = $region36
    $region35: #{discriminator_forward.5} parent=5 // pred_region
      %s1883 = ssub.s32 %s8, 2
      // Predicated region
      $region37: #{discriminator_forward.5} parent=35 // pred_check
        %p1884 = pneg %p84
      $region38: #{discriminator_forward.5} parent=35 // pred_check_branch
        %1886 = sbr.rel (%p1884) target = $region40
      $region39: #{discriminator_forward.5} parent=35 // pred_region
        %s1887 = smul.u32 128, %s14
        %p1888 = scmp.lt.s32.totalorder %s1887, 255
        %s1889 = scalar_select %p1888, %s1887, 255
        %s1890 = smul.addr %s1889, 8
        %s1891 = scalar_lea.vmem %s2, %s1890
      $region40: #{discriminator_forward.5} parent=35 // pred_fallthru
        _
    $region36: #{discriminator_forward.5} parent=5 // pred_fallthru
      _
  $region6: #{discriminator_forward.5} parent=0 // loop_footer
    %s12 = sadd.s32 1, %s8
  $region7: #{discriminator_forward.5} parent=0 // loop_footer_branch
    %7 = sbr.rel target = $region3
  $region8: #{discriminator_forward.5} parent=0 // loop_exit
    _

// kernel: discriminator_forward.6
$region0: #{discriminator_forward.6}
  #allocation0 [shape = 'u32[]', space=smem, size = 0x4, offset = 0x4, fixed_abs, tag = 'smem constant byte address 0x4 - core index']
  #allocation1 [shape = 'u32[144,128]{1,0:T(1,128)}', space=vmem, size = 0x12000, scoped, tag = 'internal scratch']
  %s0 = inlined_call_operand.vmem [shape: bf16[512,128], index: 0, kind: input, shape index: {}]
  %s1 = inlined_call_operand.vmem [shape: bf16[128,128], index: 1, kind: input, shape index: {}]
  %s2 = inlined_call_operand.vmem [shape: f32[1,128], index: 2, kind: input, shape index: {}]
  %s3 = inlined_call_operand.vmem [shape: f32[1,128], index: 3, kind: input, shape index: {}]
  %s4 = inlined_call_operand.vmem [shape: f32[512,128], index: 4, kind: output, shape index: {}]
  %s5 = sld [smem:[#allocation0]]
  $region30: #{discriminator_forward.6} parent=0
    _
  %s7 = ssub.s32 1, %s5
  %s8 = scalar_select 0, %s7, %s5
  // Predicated region
  $region2: #{discriminator_forward.6} parent=0 // pred_check
    _
  $region3: #{discriminator_forward.6} parent=0 // pred_check_branch
    %10 = sbr.rel (0) target = $region5
  $region4: #{discriminator_forward.6} parent=0 // pred_region
    _
  $region5: #{discriminator_forward.6} parent=0 // pred_fallthru
    _
  // Predicated region
  $region6: #{discriminator_forward.6} parent=0 // pred_check
    _
  $region7: #{discriminator_forward.6} parent=0 // pred_check_branch
    %12 = sbr.rel (0) target = $region9
  $region8: #{discriminator_forward.6} parent=0 // pred_region
    _
  $region9: #{discriminator_forward.6} parent=0 // pred_fallthru
    _
  // Predicated region
  $region10: #{discriminator_forward.6} parent=0 // pred_check
    _
  $region11: #{discriminator_forward.6} parent=0 // pred_check_branch
    %14 = sbr.rel (0) target = $region13
  $region12: #{discriminator_forward.6} parent=0 // pred_region
    _
  $region13: #{discriminator_forward.6} parent=0 // pred_fallthru
    _
  // Predicated region
  $region14: #{discriminator_forward.6} parent=0 // pred_check
    _
  $region15: #{discriminator_forward.6} parent=0 // pred_check_branch
    %16 = sbr.rel (0) target = $region17
  $region16: #{discriminator_forward.6} parent=0 // pred_region
    _
  $region17: #{discriminator_forward.6} parent=0 // pred_fallthru
    _
  %v18 = vld [vmem:[%s0] sm:$0xf]
  %v19 = vld [vmem:[%s0 + $0x4] sm:$0xf]
  %v20 = vld [vmem:[%s0 + $0x8] sm:$0xf]
  %v21 = vld [vmem:[%s0 + $0xc] sm:$0xf]
  %v22 = vld [vmem:[%s0 + $0x10] sm:$0xf]
  %v23 = vld [vmem:[%s0 + $0x14] sm:$0xf]
  %v24 = vld [vmem:[%s0 + $0x18] sm:$0xf]
  %v25 = vld [vmem:[%s0 + $0x1c] sm:$0xf]
  %v26 = vld [vmem:[%s0 + $0x20] sm:$0xf]
  %v27 = vld [vmem:[%s0 + $0x24] sm:$0xf]
  %v28 = vld [vmem:[%s0 + $0x28] sm:$0xf]
  %v29 = vld [vmem:[%s0 + $0x2c] sm:$0xf]
  %v30 = vld [vmem:[%s0 + $0x30] sm:$0xf]
  %v31 = vld [vmem:[%s0 + $0x34] sm:$0xf]
  %v32 = vld [vmem:[%s0 + $0x38] sm:$0xf]
  %v33 = vld [vmem:[%s0 + $0x3c] sm:$0xf]
  %v34 = vld [vmem:[%s0 + $0x40] sm:$0xf]
  %v35 = vld [vmem:[%s0 + $0x44] sm:$0xf]
  %v36 = vld [vmem:[%s0 + $0x48] sm:$0xf]
  %v37 = vld [vmem:[%s0 + $0x4c] sm:$0xf]
  %v38 = vld [vmem:[%s0 + $0x50] sm:$0xf]
  %v39 = vld [vmem:[%s0 + $0x54] sm:$0xf]
  %v40 = vld [vmem:[%s0 + $0x58] sm:$0xf]
  %v41 = vld [vmem:[%s0 + $0x5c] sm:$0xf]
  %v42 = vld [vmem:[%s0 + $0x60] sm:$0xf]
  %v43 = vld [vmem:[%s0 + $0x64] sm:$0xf]
  %v44 = vld [vmem:[%s0 + $0x68] sm:$0xf]
  %v45 = vld [vmem:[%s0 + $0x6c] sm:$0xf]
  %v46 = vld [vmem:[%s0 + $0x70] sm:$0xf]
  %v47 = vld [vmem:[%s0 + $0x74] sm:$0xf]
  %v48 = vld [vmem:[%s0 + $0x78] sm:$0xf]
  %v49 = vld [vmem:[%s0 + $0x7c] sm:$0xf]
  %v50 = vld [vmem:[%s0 + $0x80] sm:$0xf]
  %v51 = vld [vmem:[%s0 + $0x84] sm:$0xf]
  %v52 = vld [vmem:[%s0 + $0x88] sm:$0xf]
  %v53 = vld [vmem:[%s0 + $0x8c] sm:$0xf]
  %v54 = vld [vmem:[%s0 + $0x90] sm:$0xf]
  %v55 = vld [vmem:[%s0 + $0x94] sm:$0xf]
  %v56 = vld [vmem:[%s0 + $0x98] sm:$0xf]
  %v57 = vld [vmem:[%s0 + $0x9c] sm:$0xf]
  %v58 = vld [vmem:[%s0 + $0xa0] sm:$0xf]
  %v59 = vld [vmem:[%s0 + $0xa4] sm:$0xf]
  %v60 = vld [vmem:[%s0 + $0xa8] sm:$0xf]
  %v61 = vld [vmem:[%s0 + $0xac] sm:$0xf]
  %v62 = vld [vmem:[%s0 + $0xb0] sm:$0xf]
  %v63 = vld [vmem:[%s0 + $0xb4] sm:$0xf]
  %v64 = vld [vmem:[%s0 + $0xb8] sm:$0xf]
  %v65 = vld [vmem:[%s0 + $0xbc] sm:$0xf]
  %v66 = vld [vmem:[%s0 + $0xc0] sm:$0xf]
  %v67 = vld [vmem:[%s0 + $0xc4] sm:$0xf]
  %v68 = vld [vmem:[%s0 + $0xc8] sm:$0xf]
  %v69 = vld [vmem:[%s0 + $0xcc] sm:$0xf]
  %v70 = vld [vmem:[%s0 + $0xd0] sm:$0xf]
  %v71 = vld [vmem:[%s0 + $0xd4] sm:$0xf]
  %v72 = vld [vmem:[%s0 + $0xd8] sm:$0xf]
  %v73 = vld [vmem:[%s0 + $0xdc] sm:$0xf]
  %v74 = vld [vmem:[%s0 + $0xe0] sm:$0xf]
  %v75 = vld [vmem:[%s0 + $0xe4] sm:$0xf]
  %v76 = vld [vmem:[%s0 + $0xe8] sm:$0xf]
  %v77 = vld [vmem:[%s0 + $0xec] sm:$0xf]
  %v78 = vld [vmem:[%s0 + $0xf0] sm:$0xf]
  %v79 = vld [vmem:[%s0 + $0xf4] sm:$0xf]
  %v80 = vld [vmem:[%s0 + $0xf8] sm:$0xf]
  %v81 = vld [vmem:[%s0 + $0xfc] sm:$0xf]
  %v82 = vld [vmem:[%s1] sm:$0xf]
  %v83 = vld [vmem:[%s1 + $0x4] sm:$0xf]
  %v84 = vld [vmem:[%s1 + $0x8] sm:$0xf]
  %v85 = vld [vmem:[%s1 + $0xc] sm:$0xf]
  %v86 = vld [vmem:[%s1 + $0x10] sm:$0xf]
  %v87 = vld [vmem:[%s1 + $0x14] sm:$0xf]
  %v88 = vld [vmem:[%s1 + $0x18] sm:$0xf]
  %v89 = vld [vmem:[%s1 + $0x1c] sm:$0xf]
  %v90 = vld [vmem:[%s1 + $0x20] sm:$0xf]
  %v91 = vld [vmem:[%s1 + $0x24] sm:$0xf]
  %v92 = vld [vmem:[%s1 + $0x28] sm:$0xf]
  %v93 = vld [vmem:[%s1 + $0x2c] sm:$0xf]
  %v94 = vld [vmem:[%s1 + $0x30] sm:$0xf]
  %v95 = vld [vmem:[%s1 + $0x34] sm:$0xf]
  %v96 = vld [vmem:[%s1 + $0x38] sm:$0xf]
  %v97 = vld [vmem:[%s1 + $0x3c] sm:$0xf]
  %v162 = vunpack.c.l.b16 %v18
  %v163 = vunpack.c.l.b16 %v19
  %v164 = vunpack.c.l.b16 %v20
  %v165 = vunpack.c.l.b16 %v21
  %v166 = vunpack.c.l.b16 %v22
  %v167 = vunpack.c.l.b16 %v23
  %v168 = vunpack.c.l.b16 %v24
  %v169 = vunpack.c.l.b16 %v25
  %v170 = vunpack.c.l.b16 %v26
  %v171 = vunpack.c.l.b16 %v27
  %v172 = vunpack.c.l.b16 %v28
  %v173 = vunpack.c.l.b16 %v29
  %v174 = vunpack.c.l.b16 %v30
  %v175 = vunpack.c.l.b16 %v31
  %v176 = vunpack.c.l.b16 %v32
  %v177 = vunpack.c.l.b16 %v33
  %v178 = vunpack.c.l.b16 %v34
  %v179 = vunpack.c.l.b16 %v35
  %v180 = vunpack.c.l.b16 %v36
  %v181 = vunpack.c.l.b16 %v37
  %v182 = vunpack.c.l.b16 %v38
  %v183 = vunpack.c.l.b16 %v39
  %v184 = vunpack.c.l.b16 %v40
  %v185 = vunpack.c.l.b16 %v41
  %v186 = vunpack.c.l.b16 %v42
  %v187 = vunpack.c.l.b16 %v43
  %v188 = vunpack.c.l.b16 %v44
  %v189 = vunpack.c.l.b16 %v45
  %v190 = vunpack.c.l.b16 %v46
  %v191 = vunpack.c.l.b16 %v47
  %v192 = vunpack.c.l.b16 %v48
  %v193 = vunpack.c.l.b16 %v49
  %v194 = vunpack.c.l.b16 %v50
  %v195 = vunpack.c.l.b16 %v51
  %v196 = vunpack.c.l.b16 %v52
  %v197 = vunpack.c.l.b16 %v53
  %v198 = vunpack.c.l.b16 %v54
  %v199 = vunpack.c.l.b16 %v55
  %v200 = vunpack.c.l.b16 %v56
  %v201 = vunpack.c.l.b16 %v57
  %v202 = vunpack.c.l.b16 %v58
  %v203 = vunpack.c.l.b16 %v59
  %v204 = vunpack.c.l.b16 %v60
  %v205 = vunpack.c.l.b16 %v61
  %v206 = vunpack.c.l.b16 %v62
  %v207 = vunpack.c.l.b16 %v63
  %v208 = vunpack.c.l.b16 %v64
  %v209 = vunpack.c.l.b16 %v65
  %v210 = vunpack.c.l.b16 %v66
  %v211 = vunpack.c.l.b16 %v67
  %v212 = vunpack.c.l.b16 %v68
  %v213 = vunpack.c.l.b16 %v69
  %v214 = vunpack.c.l.b16 %v70
  %v215 = vunpack.c.l.b16 %v71
  %v216 = vunpack.c.l.b16 %v72
  %v217 = vunpack.c.l.b16 %v73
  %v218 = vunpack.c.l.b16 %v74
  %v219 = vunpack.c.l.b16 %v75
  %v220 = vunpack.c.l.b16 %v76
  %v221 = vunpack.c.l.b16 %v77
  %v222 = vunpack.c.l.b16 %v78
  %v223 = vunpack.c.l.b16 %v79
  %v224 = vunpack.c.l.b16 %v80
  %v225 = vunpack.c.l.b16 %v81
  %v226 = vpack.c.b16 %v163, %v162
  %v227 = vpack.c.b16 %v165, %v164
  %v228 = vpack.c.b16 %v167, %v166
  %v229 = vpack.c.b16 %v169, %v168
  %v230 = vpack.c.b16 %v171, %v170
  %v231 = vpack.c.b16 %v173, %v172
  %v232 = vpack.c.b16 %v175, %v174
  %v233 = vpack.c.b16 %v177, %v176
  %v234 = vpack.c.b16 %v179, %v178
  %v235 = vpack.c.b16 %v181, %v180
  %v236 = vpack.c.b16 %v183, %v182
  %v237 = vpack.c.b16 %v185, %v184
  %v238 = vpack.c.b16 %v187, %v186
  %v239 = vpack.c.b16 %v189, %v188
  %v240 = vpack.c.b16 %v191, %v190
  %v241 = vpack.c.b16 %v193, %v192
  %v242 = vpack.c.b16 %v195, %v194
  %v243 = vpack.c.b16 %v197, %v196
  %v244 = vpack.c.b16 %v199, %v198
  %v245 = vpack.c.b16 %v201, %v200
  %v246 = vpack.c.b16 %v203, %v202
  %v247 = vpack.c.b16 %v205, %v204
  %v248 = vpack.c.b16 %v207, %v206
  %v249 = vpack.c.b16 %v209, %v208
  %v250 = vpack.c.b16 %v211, %v210
  %v251 = vpack.c.b16 %v213, %v212
  %v252 = vpack.c.b16 %v215, %v214
  %v253 = vpack.c.b16 %v217, %v216
  %v254 = vpack.c.b16 %v219, %v218
  %v255 = vpack.c.b16 %v221, %v220
  %v256 = vpack.c.b16 %v223, %v222
  %v257 = vpack.c.b16 %v225, %v224
  %v306 = vunpack.c.l.b16 %v82
  %v307 = vunpack.c.l.b16 %v83
  %v308 = vunpack.c.l.b16 %v84
  %v309 = vunpack.c.l.b16 %v85
  %v310 = vunpack.c.l.b16 %v86
  %v311 = vunpack.c.l.b16 %v87
  %v312 = vunpack.c.l.b16 %v88
  %v313 = vunpack.c.l.b16 %v89
  %v314 = vunpack.c.l.b16 %v90
  %v315 = vunpack.c.l.b16 %v91
  %v316 = vunpack.c.l.b16 %v92
  %v317 = vunpack.c.l.b16 %v93
  %v318 = vunpack.c.l.b16 %v94
  %v319 = vunpack.c.l.b16 %v95
  %v320 = vunpack.c.l.b16 %v96
  %v321 = vunpack.c.l.b16 %v97
  %v322 = vpack.c.b16 %v307, %v306
  %v323 = vpack.c.b16 %v309, %v308
  %v324 = vpack.c.b16 %v311, %v310
  %v325 = vpack.c.b16 %v313, %v312
  %v326 = vpack.c.b16 %v315, %v314
  %v327 = vpack.c.b16 %v317, %v316
  %v328 = vpack.c.b16 %v319, %v318
  %v329 = vpack.c.b16 %v321, %v320
  %338 = vmatprep.subr.bf16.mxu0 0
  %339 = vmatpush1.bf16.msra.mxu0 %v329
  %340 = vmatprep.subr.bf16.mxu0 0
  %341 = vmatpush1.bf16.msra.mxu0 %v328
  %342 = vmatprep.subr.bf16.mxu0 0
  %343 = vmatpush1.bf16.msra.mxu0 %v327
  %344 = vmatprep.subr.bf16.mxu0 0
  %345 = vmatpush1.bf16.msra.mxu0 %v326
  %346 = vmatprep.subr.bf16.mxu0 0
  %347 = vmatpush1.bf16.msra.mxu0 %v325
  %348 = vmatprep.subr.bf16.mxu0 0
  %349 = vmatpush1.bf16.msra.mxu0 %v324
  %350 = vmatprep.subr.bf16.mxu0 0
  %351 = vmatpush1.bf16.msra.mxu0 %v323
  %352 = vmatprep.subr.bf16.mxu0 0
  %353 = vmatpush1.bf16.msra.mxu0 %v322
  %354 = vmatprep.subr.bf16.mxu0 0
  %355 = vmatpush2.bf16.msra.mxu0 0
  %356 = vmatprep.subr.bf16.mxu0 0
  %357 = vmatpush2.bf16.msra.mxu0 0
  %358 = vmatprep.subr.bf16.mxu0 0
  %359 = vmatpush2.bf16.msra.mxu0 0
  %360 = vmatprep.subr.bf16.mxu0 0
  %361 = vmatpush2.bf16.msra.mxu0 0
  %362 = vmatprep.subr.bf16.mxu0 0
  %363 = vmatpush2.bf16.msra.mxu0 0
  %364 = vmatprep.subr.bf16.mxu0 0
  %365 = vmatpush2.bf16.msra.mxu0 0
  %366 = vmatprep.subr.bf16.mxu0 0
  %367 = vmatpush2.bf16.msra.mxu0 0
  %368 = vmatprep.subr.bf16.mxu0 0
  %369 = vmatpush2.bf16.msra.mxu0 0
  %370 = vmatprep.mubr.bf16.mxu0 0
  %371 = vmatmul.mubr.bf16.gmra.mxu0 %v226
  %v372 = vpop.f32.mrf.mxu0
  %v373 = vadd.f32 0.0, %v372
  %v374 = vpop.f32.mrf.mxu0
  %v375 = vpop.f32.mrf.mxu0
  %v376 = vadd.f32 0.0, %v375
  %v377 = vpop.f32.mrf.mxu0
  %378 = vmatprep.mubr.bf16.mxu0 0
  %379 = vmatmul.mubr.bf16.gmra.mxu0 %v227
  %v380 = vpop.f32.mrf.mxu0
  %v381 = vadd.f32 0.0, %v380
  %v382 = vpop.f32.mrf.mxu0
  %v383 = vpop.f32.mrf.mxu0
  %v384 = vadd.f32 0.0, %v383
  %v385 = vpop.f32.mrf.mxu0
  %386 = vmatprep.mubr.bf16.mxu0 0
  %387 = vmatmul.mubr.bf16.gmra.mxu0 %v228
  %v388 = vpop.f32.mrf.mxu0
  %v389 = vadd.f32 0.0, %v388
  %v390 = vpop.f32.mrf.mxu0
  %v391 = vpop.f32.mrf.mxu0
  %v392 = vadd.f32 0.0, %v391
  %v393 = vpop.f32.mrf.mxu0
  %394 = vmatprep.mubr.bf16.mxu0 0
  %395 = vmatmul.mubr.bf16.gmra.mxu0 %v229
  %v396 = vpop.f32.mrf.mxu0
  %v397 = vadd.f32 0.0, %v396
  %v398 = vpop.f32.mrf.mxu0
  %v399 = vpop.f32.mrf.mxu0
  %v400 = vadd.f32 0.0, %v399
  %v401 = vpop.f32.mrf.mxu0
  %402 = vmatprep.mubr.bf16.mxu0 0
  %403 = vmatmul.mubr.bf16.gmra.mxu0 %v230
  %v404 = vpop.f32.mrf.mxu0
  %v405 = vadd.f32 0.0, %v404
  %v406 = vpop.f32.mrf.mxu0
  %v407 = vpop.f32.mrf.mxu0
  %v408 = vadd.f32 0.0, %v407
  %v409 = vpop.f32.mrf.mxu0
  %410 = vmatprep.mubr.bf16.mxu0 0
  %411 = vmatmul.mubr.bf16.gmra.mxu0 %v231
  %v412 = vpop.f32.mrf.mxu0
  %v413 = vadd.f32 0.0, %v412
  %v414 = vpop.f32.mrf.mxu0
  %v415 = vpop.f32.mrf.mxu0
  %v416 = vadd.f32 0.0, %v415
  %v417 = vpop.f32.mrf.mxu0
  %418 = vmatprep.mubr.bf16.mxu0 0
  %419 = vmatmul.mubr.bf16.gmra.mxu0 %v232
  %v420 = vpop.f32.mrf.mxu0
  %v421 = vadd.f32 0.0, %v420
  %v422 = vpop.f32.mrf.mxu0
  %v423 = vpop.f32.mrf.mxu0
  %v424 = vadd.f32 0.0, %v423
  %v425 = vpop.f32.mrf.mxu0
  %426 = vmatprep.mubr.bf16.mxu0 0
  %427 = vmatmul.mubr.bf16.gmra.mxu0 %v233
  %v428 = vpop.f32.mrf.mxu0
  %v429 = vadd.f32 0.0, %v428
  %v430 = vpop.f32.mrf.mxu0
  %v431 = vpop.f32.mrf.mxu0
  %v432 = vadd.f32 0.0, %v431
  %v433 = vpop.f32.mrf.mxu0
  %434 = vmatprep.mubr.bf16.mxu0 0
  %435 = vmatmul.mubr.bf16.gmra.mxu0 %v234
  %v436 = vpop.f32.mrf.mxu0
  %v437 = vadd.f32 0.0, %v436
  %v438 = vpop.f32.mrf.mxu0
  %v439 = vpop.f32.mrf.mxu0
  %v440 = vadd.f32 0.0, %v439
  %v441 = vpop.f32.mrf.mxu0
  %442 = vmatprep.mubr.bf16.mxu0 0
  %443 = vmatmul.mubr.bf16.gmra.mxu0 %v235
  %v444 = vpop.f32.mrf.mxu0
  %v445 = vadd.f32 0.0, %v444
  %v446 = vpop.f32.mrf.mxu0
  %v447 = vpop.f32.mrf.mxu0
  %v448 = vadd.f32 0.0, %v447
  %v449 = vpop.f32.mrf.mxu0
  %450 = vmatprep.mubr.bf16.mxu0 0
  %451 = vmatmul.mubr.bf16.gmra.mxu0 %v236
  %v452 = vpop.f32.mrf.mxu0
  %v453 = vadd.f32 0.0, %v452
  %v454 = vpop.f32.mrf.mxu0
  %v455 = vpop.f32.mrf.mxu0
  %v456 = vadd.f32 0.0, %v455
  %v457 = vpop.f32.mrf.mxu0
  %458 = vmatprep.mubr.bf16.mxu0 0
  %459 = vmatmul.mubr.bf16.gmra.mxu0 %v237
  %v460 = vpop.f32.mrf.mxu0
  %v461 = vadd.f32 0.0, %v460
  %v462 = vpop.f32.mrf.mxu0
  %v463 = vpop.f32.mrf.mxu0
  %v464 = vadd.f32 0.0, %v463
  %v465 = vpop.f32.mrf.mxu0
  %466 = vmatprep.mubr.bf16.mxu0 0
  %467 = vmatmul.mubr.bf16.gmra.mxu0 %v238
  %v468 = vpop.f32.mrf.mxu0
  %v469 = vadd.f32 0.0, %v468
  %v470 = vpop.f32.mrf.mxu0
  %v471 = vpop.f32.mrf.mxu0
  %v472 = vadd.f32 0.0, %v471
  %v473 = vpop.f32.mrf.mxu0
  %474 = vmatprep.mubr.bf16.mxu0 0
  %475 = vmatmul.mubr.bf16.gmra.mxu0 %v239
  %v476 = vpop.f32.mrf.mxu0
  %v477 = vadd.f32 0.0, %v476
  %v478 = vpop.f32.mrf.mxu0
  %v479 = vpop.f32.mrf.mxu0
  %v480 = vadd.f32 0.0, %v479
  %v481 = vpop.f32.mrf.mxu0
  %482 = vmatprep.mubr.bf16.mxu0 0
  %483 = vmatmul.mubr.bf16.gmra.mxu0 %v240
  %v484 = vpop.f32.mrf.mxu0
  %v485 = vadd.f32 0.0, %v484
  %v486 = vpop.f32.mrf.mxu0
  %v487 = vpop.f32.mrf.mxu0
  %v488 = vadd.f32 0.0, %v487
  %v489 = vpop.f32.mrf.mxu0
  %490 = vmatprep.mubr.bf16.mxu0 0
  %491 = vmatmul.mubr.bf16.gmra.mxu0 %v241
  %v492 = vpop.f32.mrf.mxu0
  %v493 = vadd.f32 0.0, %v492
  %v494 = vpop.f32.mrf.mxu0
  %v495 = vpop.f32.mrf.mxu0
  %v496 = vadd.f32 0.0, %v495
  %v497 = vpop.f32.mrf.mxu0
  %498 = vmatprep.mubr.bf16.mxu0 0
  %499 = vmatmul.mubr.bf16.gmra.mxu0 %v242
  %v500 = vpop.f32.mrf.mxu0
  %v501 = vadd.f32 0.0, %v500
  %v502 = vpop.f32.mrf.mxu0
  %v503 = vpop.f32.mrf.mxu0
  %v504 = vadd.f32 0.0, %v503
  %v505 = vpop.f32.mrf.mxu0
  %506 = vmatprep.mubr.bf16.mxu0 0
  %507 = vmatmul.mubr.bf16.gmra.mxu0 %v243
  %v508 = vpop.f32.mrf.mxu0
  %v509 = vadd.f32 0.0, %v508
  %v510 = vpop.f32.mrf.mxu0
  %v511 = vpop.f32.mrf.mxu0
  %v512 = vadd.f32 0.0, %v511
  %v513 = vpop.f32.mrf.mxu0
  %514 = vmatprep.mubr.bf16.mxu0 0
  %515 = vmatmul.mubr.bf16.gmra.mxu0 %v244
  %v516 = vpop.f32.mrf.mxu0
  %v517 = vadd.f32 0.0, %v516
  %v518 = vpop.f32.mrf.mxu0
  %v519 = vpop.f32.mrf.mxu0
  %v520 = vadd.f32 0.0, %v519
  %v521 = vpop.f32.mrf.mxu0
  %522 = vmatprep.mubr.bf16.mxu0 0
  %523 = vmatmul.mubr.bf16.gmra.mxu0 %v245
  %v524 = vpop.f32.mrf.mxu0
  %v525 = vadd.f32 0.0, %v524
  %v526 = vpop.f32.mrf.mxu0
  %v527 = vpop.f32.mrf.mxu0
  %v528 = vadd.f32 0.0, %v527
  %v529 = vpop.f32.mrf.mxu0
  %530 = vmatprep.mubr.bf16.mxu0 0
  %531 = vmatmul.mubr.bf16.gmra.mxu0 %v246
  %v532 = vpop.f32.mrf.mxu0
  %v533 = vadd.f32 0.0, %v532
  %v534 = vpop.f32.mrf.mxu0
  %v535 = vpop.f32.mrf.mxu0
  %v536 = vadd.f32 0.0, %v535
  %v537 = vpop.f32.mrf.mxu0
  %538 = vmatprep.mubr.bf16.mxu0 0
  %539 = vmatmul.mubr.bf16.gmra.mxu0 %v247
  %v540 = vpop.f32.mrf.mxu0
  %v541 = vadd.f32 0.0, %v540
  %v542 = vpop.f32.mrf.mxu0
  %v543 = vpop.f32.mrf.mxu0
  %v544 = vadd.f32 0.0, %v543
  %v545 = vpop.f32.mrf.mxu0
  %546 = vmatprep.mubr.bf16.mxu0 0
  %547 = vmatmul.mubr.bf16.gmra.mxu0 %v248
  %v548 = vpop.f32.mrf.mxu0
  %v549 = vadd.f32 0.0, %v548
  %v550 = vpop.f32.mrf.mxu0
  %v551 = vpop.f32.mrf.mxu0
  %v552 = vadd.f32 0.0, %v551
  %v553 = vpop.f32.mrf.mxu0
  %554 = vmatprep.mubr.bf16.mxu0 0
  %555 = vmatmul.mubr.bf16.gmra.mxu0 %v249
  %v556 = vpop.f32.mrf.mxu0
  %v557 = vadd.f32 0.0, %v556
  %v558 = vpop.f32.mrf.mxu0
  %v559 = vpop.f32.mrf.mxu0
  %v560 = vadd.f32 0.0, %v559
  %v561 = vpop.f32.mrf.mxu0
  %562 = vmatprep.mubr.bf16.mxu0 0
  %563 = vmatmul.mubr.bf16.gmra.mxu0 %v250
  %v564 = vpop.f32.mrf.mxu0
  %v565 = vadd.f32 0.0, %v564
  %v566 = vpop.f32.mrf.mxu0
  %v567 = vpop.f32.mrf.mxu0
  %v568 = vadd.f32 0.0, %v567
  %v569 = vpop.f32.mrf.mxu0
  %570 = vmatprep.mubr.bf16.mxu0 0
  %571 = vmatmul.mubr.bf16.gmra.mxu0 %v251
  %v572 = vpop.f32.mrf.mxu0
  %v573 = vadd.f32 0.0, %v572
  %v574 = vpop.f32.mrf.mxu0
  %v575 = vpop.f32.mrf.mxu0
  %v576 = vadd.f32 0.0, %v575
  %v577 = vpop.f32.mrf.mxu0
  %578 = vmatprep.mubr.bf16.mxu0 0
  %579 = vmatmul.mubr.bf16.gmra.mxu0 %v252
  %v580 = vpop.f32.mrf.mxu0
  %v581 = vadd.f32 0.0, %v580
  %v582 = vpop.f32.mrf.mxu0
  %v583 = vpop.f32.mrf.mxu0
  %v584 = vadd.f32 0.0, %v583
  %v585 = vpop.f32.mrf.mxu0
  %586 = vmatprep.mubr.bf16.mxu0 0
  %587 = vmatmul.mubr.bf16.gmra.mxu0 %v253
  %v588 = vpop.f32.mrf.mxu0
  %v589 = vadd.f32 0.0, %v588
  %v590 = vpop.f32.mrf.mxu0
  %v591 = vpop.f32.mrf.mxu0
  %v592 = vadd.f32 0.0, %v591
  %v593 = vpop.f32.mrf.mxu0
  %594 = vmatprep.mubr.bf16.mxu0 0
  %595 = vmatmul.mubr.bf16.gmra.mxu0 %v254
  %v596 = vpop.f32.mrf.mxu0
  %v597 = vadd.f32 0.0, %v596
  %v598 = vpop.f32.mrf.mxu0
  %v599 = vpop.f32.mrf.mxu0
  %v600 = vadd.f32 0.0, %v599
  %v601 = vpop.f32.mrf.mxu0
  %602 = vmatprep.mubr.bf16.mxu0 0
  %603 = vmatmul.mubr.bf16.gmra.mxu0 %v255
  %v604 = vpop.f32.mrf.mxu0
  %v605 = vadd.f32 0.0, %v604
  %v606 = vpop.f32.mrf.mxu0
  %v607 = vpop.f32.mrf.mxu0
  %v608 = vadd.f32 0.0, %v607
  %v609 = vpop.f32.mrf.mxu0
  %610 = vmatprep.mubr.bf16.mxu0 0
  %611 = vmatmul.mubr.bf16.gmra.mxu0 %v256
  %v612 = vpop.f32.mrf.mxu0
  %v613 = vadd.f32 0.0, %v612
  %v614 = vpop.f32.mrf.mxu0
  %v615 = vpop.f32.mrf.mxu0
  %v616 = vadd.f32 0.0, %v615
  %v617 = vpop.f32.mrf.mxu0
  %618 = vmatprep.mubr.bf16.mxu0 0
  %619 = vmatmul.mubr.bf16.gmra.mxu0 %v257
  %v620 = vpop.f32.mrf.mxu0
  %v621 = vadd.f32 0.0, %v620
  %v622 = vpop.f32.mrf.mxu0
  %v623 = vpop.f32.mrf.mxu0
  %v624 = vadd.f32 0.0, %v623
  %v625 = vpop.f32.mrf.mxu0
  %626 = vdwg.mxu0
  %s627 = smul.u32 0, 512
  %s628 = scalar_lea.vmem %s4, %s627
  %629 = vst [vmem:[%s628] sm:$0xff] %v373
  %630 = vst [vmem:[%s628 + $0x8] sm:$0xff] %v376
  %631 = vst [vmem:[%s628 + $0x10] sm:$0xff] %v381
  %632 = vst [vmem:[%s628 + $0x18] sm:$0xff] %v384
  %633 = vst [vmem:[%s628 + $0x20] sm:$0xff] %v389
  %634 = vst [vmem:[%s628 + $0x28] sm:$0xff] %v392
  %635 = vst [vmem:[%s628 + $0x30] sm:$0xff] %v397
  %636 = vst [vmem:[%s628 + $0x38] sm:$0xff] %v400
  %637 = vst [vmem:[%s628 + $0x40] sm:$0xff] %v405
  %638 = vst [vmem:[%s628 + $0x48] sm:$0xff] %v408
  %639 = vst [vmem:[%s628 + $0x50] sm:$0xff] %v413
  %640 = vst [vmem:[%s628 + $0x58] sm:$0xff] %v416
  %641 = vst [vmem:[%s628 + $0x60] sm:$0xff] %v421
  %642 = vst [vmem:[%s628 + $0x68] sm:$0xff] %v424
  %643 = vst [vmem:[%s628 + $0x70] sm:$0xff] %v429
  %644 = vst [vmem:[%s628 + $0x78] sm:$0xff] %v432
  %645 = vst [vmem:[%s628 + $0x80] sm:$0xff] %v437
  %646 = vst [vmem:[%s628 + $0x88] sm:$0xff] %v440
  %647 = vst [vmem:[%s628 + $0x90] sm:$0xff] %v445
  %648 = vst [vmem:[%s628 + $0x98] sm:$0xff] %v448
  %649 = vst [vmem:[%s628 + $0xa0] sm:$0xff] %v453
  %650 = vst [vmem:[%s628 + $0xa8] sm:$0xff] %v456
  %651 = vst [vmem:[%s628 + $0xb0] sm:$0xff] %v461
  %652 = vst [vmem:[%s628 + $0xb8] sm:$0xff] %v464
  %653 = vst [vmem:[%s628 + $0xc0] sm:$0xff] %v469
  %654 = vst [vmem:[%s628 + $0xc8] sm:$0xff] %v472
  %655 = vst [vmem:[%s628 + $0xd0] sm:$0xff] %v477
  %656 = vst [vmem:[%s628 + $0xd8] sm:$0xff] %v480
  %657 = vst [vmem:[%s628 + $0xe0] sm:$0xff] %v485
  %658 = vst [vmem:[%s628 + $0xe8] sm:$0xff] %v488
  %659 = vst [vmem:[%s628 + $0xf0] sm:$0xff] %v493
  %660 = vst [vmem:[%s628 + $0xf8] sm:$0xff] %v496
  %661 = vst [vmem:[%s628 + $0x100] sm:$0xff] %v501
  %662 = vst [vmem:[%s628 + $0x108] sm:$0xff] %v504
  %663 = vst [vmem:[%s628 + $0x110] sm:$0xff] %v509
  %664 = vst [vmem:[%s628 + $0x118] sm:$0xff] %v512
  %665 = vst [vmem:[%s628 + $0x120] sm:$0xff] %v517
  %666 = vst [vmem:[%s628 + $0x128] sm:$0xff] %v520
  %667 = vst [vmem:[%s628 + $0x130] sm:$0xff] %v525
  %668 = vst [vmem:[%s628 + $0x138] sm:$0xff] %v528
  %669 = vst [vmem:[%s628 + $0x140] sm:$0xff] %v533
  %670 = vst [vmem:[%s628 + $0x148] sm:$0xff] %v536
  %671 = vst [vmem:[%s628 + $0x150] sm:$0xff] %v541
  %672 = vst [vmem:[%s628 + $0x158] sm:$0xff] %v544
  %673 = vst [vmem:[%s628 + $0x160] sm:$0xff] %v549
  %674 = vst [vmem:[%s628 + $0x168] sm:$0xff] %v552
  %675 = vst [vmem:[%s628 + $0x170] sm:$0xff] %v557
  %676 = vst [vmem:[%s628 + $0x178] sm:$0xff] %v560
  %677 = vst [vmem:[%s628 + $0x180] sm:$0xff] %v565
  %678 = vst [vmem:[%s628 + $0x188] sm:$0xff] %v568
  %679 = vst [vmem:[%s628 + $0x190] sm:$0xff] %v573
  %680 = vst [vmem:[%s628 + $0x198] sm:$0xff] %v576
  %681 = vst [vmem:[%s628 + $0x1a0] sm:$0xff] %v581
  %682 = vst [vmem:[%s628 + $0x1a8] sm:$0xff] %v584
  %683 = vst [vmem:[%s628 + $0x1b0] sm:$0xff] %v589
  %684 = vst [vmem:[%s628 + $0x1b8] sm:$0xff] %v592
  %685 = vst [vmem:[%s628 + $0x1c0] sm:$0xff] %v597
  %686 = vst [vmem:[%s628 + $0x1c8] sm:$0xff] %v600
  %687 = vst [vmem:[%s628 + $0x1d0] sm:$0xff] %v605
  %688 = vst [vmem:[%s628 + $0x1d8] sm:$0xff] %v608
  %689 = vst [vmem:[%s628 + $0x1e0] sm:$0xff] %v613
  %690 = vst [vmem:[%s628 + $0x1e8] sm:$0xff] %v616
  %691 = vst [vmem:[%s628 + $0x1f0] sm:$0xff] %v621
  %692 = vst [vmem:[%s628 + $0x1f8] sm:$0xff] %v624
  %p693 = scmp.eq.s32.totalorder 0, 0
  // Predicated region
  $region18: #{discriminator_forward.6} parent=0 // pred_check
    %p694 = pneg %p693
  $region19: #{discriminator_forward.6} parent=0 // pred_check_branch
    %696 = sbr.rel (%p694) target = $region21
  $region20: #{discriminator_forward.6} parent=0 // pred_region
    %v697 = vld [vmem:[%s4] sm:$0xff]
    %v698 = vld [vmem:[%s4 + $0x8] sm:$0xff]
    %v699 = vld [vmem:[%s4 + $0x10] sm:$0xff]
    %v700 = vld [vmem:[%s4 + $0x18] sm:$0xff]
    %v701 = vld [vmem:[%s4 + $0x20] sm:$0xff]
    %v702 = vld [vmem:[%s4 + $0x28] sm:$0xff]
    %v703 = vld [vmem:[%s4 + $0x30] sm:$0xff]
    %v704 = vld [vmem:[%s4 + $0x38] sm:$0xff]
    %v705 = vld [vmem:[%s4 + $0x40] sm:$0xff]
    %v706 = vld [vmem:[%s4 + $0x48] sm:$0xff]
    %v707 = vld [vmem:[%s4 + $0x50] sm:$0xff]
    %v708 = vld [vmem:[%s4 + $0x58] sm:$0xff]
    %v709 = vld [vmem:[%s4 + $0x60] sm:$0xff]
    %v710 = vld [vmem:[%s4 + $0x68] sm:$0xff]
    %v711 = vld [vmem:[%s4 + $0x70] sm:$0xff]
    %v712 = vld [vmem:[%s4 + $0x78] sm:$0xff]
    %v713 = vld [vmem:[%s4 + $0x80] sm:$0xff]
    %v714 = vld [vmem:[%s4 + $0x88] sm:$0xff]
    %v715 = vld [vmem:[%s4 + $0x90] sm:$0xff]
    %v716 = vld [vmem:[%s4 + $0x98] sm:$0xff]
    %v717 = vld [vmem:[%s4 + $0xa0] sm:$0xff]
    %v718 = vld [vmem:[%s4 + $0xa8] sm:$0xff]
    %v719 = vld [vmem:[%s4 + $0xb0] sm:$0xff]
    %v720 = vld [vmem:[%s4 + $0xb8] sm:$0xff]
    %v721 = vld [vmem:[%s4 + $0xc0] sm:$0xff]
    %v722 = vld [vmem:[%s4 + $0xc8] sm:$0xff]
    %v723 = vld [vmem:[%s4 + $0xd0] sm:$0xff]
    %v724 = vld [vmem:[%s4 + $0xd8] sm:$0xff]
    %v725 = vld [vmem:[%s4 + $0xe0] sm:$0xff]
    %v726 = vld [vmem:[%s4 + $0xe8] sm:$0xff]
    %v727 = vld [vmem:[%s4 + $0xf0] sm:$0xff]
    %v728 = vld [vmem:[%s4 + $0xf8] sm:$0xff]
    %v729 = vld [vmem:[%s4 + $0x100] sm:$0xff]
    %v730 = vld [vmem:[%s4 + $0x108] sm:$0xff]
    %v731 = vld [vmem:[%s4 + $0x110] sm:$0xff]
    %v732 = vld [vmem:[%s4 + $0x118] sm:$0xff]
    %v733 = vld [vmem:[%s4 + $0x120] sm:$0xff]
    %v734 = vld [vmem:[%s4 + $0x128] sm:$0xff]
    %v735 = vld [vmem:[%s4 + $0x130] sm:$0xff]
    %v736 = vld [vmem:[%s4 + $0x138] sm:$0xff]
    %v737 = vld [vmem:[%s4 + $0x140] sm:$0xff]
    %v738 = vld [vmem:[%s4 + $0x148] sm:$0xff]
    %v739 = vld [vmem:[%s4 + $0x150] sm:$0xff]
    %v740 = vld [vmem:[%s4 + $0x158] sm:$0xff]
    %v741 = vld [vmem:[%s4 + $0x160] sm:$0xff]
    %v742 = vld [vmem:[%s4 + $0x168] sm:$0xff]
    %v743 = vld [vmem:[%s4 + $0x170] sm:$0xff]
    %v744 = vld [vmem:[%s4 + $0x178] sm:$0xff]
    %v745 = vld [vmem:[%s4 + $0x180] sm:$0xff]
    %v746 = vld [vmem:[%s4 + $0x188] sm:$0xff]
    %v747 = vld [vmem:[%s4 + $0x190] sm:$0xff]
    %v748 = vld [vmem:[%s4 + $0x198] sm:$0xff]
    %v749 = vld [vmem:[%s4 + $0x1a0] sm:$0xff]
    %v750 = vld [vmem:[%s4 + $0x1a8] sm:$0xff]
    %v751 = vld [vmem:[%s4 + $0x1b0] sm:$0xff]
    %v752 = vld [vmem:[%s4 + $0x1b8] sm:$0xff]
    %v753 = vld [vmem:[%s4 + $0x1c0] sm:$0xff]
    %v754 = vld [vmem:[%s4 + $0x1c8] sm:$0xff]
    %v755 = vld [vmem:[%s4 + $0x1d0] sm:$0xff]
    %v756 = vld [vmem:[%s4 + $0x1d8] sm:$0xff]
    %v757 = vld [vmem:[%s4 + $0x1e0] sm:$0xff]
    %v758 = vld [vmem:[%s4 + $0x1e8] sm:$0xff]
    %v759 = vld [vmem:[%s4 + $0x1f0] sm:$0xff]
    %v760 = vld [vmem:[%s4 + $0x1f8] sm:$0xff]
    %v761 = vadd.f32 %v697, %v698
    %v762 = vadd.f32 %v761, %v699
    %v763 = vadd.f32 %v762, %v700
    %v764 = vadd.f32 %v763, %v701
    %v765 = vadd.f32 %v764, %v702
    %v766 = vadd.f32 %v765, %v703
    %v767 = vadd.f32 %v766, %v704
    %v768 = vadd.f32 %v767, %v705
    %v769 = vadd.f32 %v768, %v706
    %v770 = vadd.f32 %v769, %v707
    %v771 = vadd.f32 %v770, %v708
    %v772 = vadd.f32 %v771, %v709
    %v773 = vadd.f32 %v772, %v710
    %v774 = vadd.f32 %v773, %v711
    %v775 = vadd.f32 %v774, %v712
    %v776 = vadd.f32 %v775, %v713
    %v777 = vadd.f32 %v776, %v714
    %v778 = vadd.f32 %v777, %v715
    %v779 = vadd.f32 %v778, %v716
    %v780 = vadd.f32 %v779, %v717
    %v781 = vadd.f32 %v780, %v718
    %v782 = vadd.f32 %v781, %v719
    %v783 = vadd.f32 %v782, %v720
    %v784 = vadd.f32 %v783, %v721
    %v785 = vadd.f32 %v784, %v722
    %v786 = vadd.f32 %v785, %v723
    %v787 = vadd.f32 %v786, %v724
    %v788 = vadd.f32 %v787, %v725
    %v789 = vadd.f32 %v788, %v726
    %v790 = vadd.f32 %v789, %v727
    %v791 = vadd.f32 %v790, %v728
    %v792 = vadd.f32 %v791, %v729
    %v793 = vadd.f32 %v792, %v730
    %v794 = vadd.f32 %v793, %v731
    %v795 = vadd.f32 %v794, %v732
    %v796 = vadd.f32 %v795, %v733
    %v797 = vadd.f32 %v796, %v734
    %v798 = vadd.f32 %v797, %v735
    %v799 = vadd.f32 %v798, %v736
    %v800 = vadd.f32 %v799, %v737
    %v801 = vadd.f32 %v800, %v738
    %v802 = vadd.f32 %v801, %v739
    %v803 = vadd.f32 %v802, %v740
    %v804 = vadd.f32 %v803, %v741
    %v805 = vadd.f32 %v804, %v742
    %v806 = vadd.f32 %v805, %v743
    %v807 = vadd.f32 %v806, %v744
    %v808 = vadd.f32 %v807, %v745
    %v809 = vadd.f32 %v808, %v746
    %v810 = vadd.f32 %v809, %v747
    %v811 = vadd.f32 %v810, %v748
    %v812 = vadd.f32 %v811, %v749
    %v813 = vadd.f32 %v812, %v750
    %v814 = vadd.f32 %v813, %v751
    %v815 = vadd.f32 %v814, %v752
    %v816 = vadd.f32 %v815, %v753
    %v817 = vadd.f32 %v816, %v754
    %v818 = vadd.f32 %v817, %v755
    %v819 = vadd.f32 %v818, %v756
    %v820 = vadd.f32 %v819, %v757
    %v821 = vadd.f32 %v820, %v758
    %v822 = vadd.f32 %v821, %v759
    %v823 = vadd.f32 %v822, %v760
    %v824 = vrot.slane %v823, 4
    %v825 = vadd.f32 %v823, %v824
    %v826 = vrot.slane %v825, 2
    %v827 = vadd.f32 %v825, %v826
    %v828 = vrot.slane %v827, 1
    %v829 = vadd.f32 %v827, %v828
    %v830 = vmul.f32 %v829, 0.001953125
    %v831 = vsub.f32 %v697, %v830
    %v832 = vsub.f32 %v698, %v830
    %v833 = vsub.f32 %v699, %v830
    %v834 = vsub.f32 %v700, %v830
    %v835 = vsub.f32 %v701, %v830
    %v836 = vsub.f32 %v702, %v830
    %v837 = vsub.f32 %v703, %v830
    %v838 = vsub.f32 %v704, %v830
    %v839 = vsub.f32 %v705, %v830
    %v840 = vsub.f32 %v706, %v830
    %v841 = vsub.f32 %v707, %v830
    %v842 = vsub.f32 %v708, %v830
    %v843 = vsub.f32 %v709, %v830
    %v844 = vsub.f32 %v710, %v830
    %v845 = vsub.f32 %v711, %v830
    %v846 = vsub.f32 %v712, %v830
    %v847 = vsub.f32 %v713, %v830
    %v848 = vsub.f32 %v714, %v830
    %v849 = vsub.f32 %v715, %v830
    %v850 = vsub.f32 %v716, %v830
    %v851 = vsub.f32 %v717, %v830
    %v852 = vsub.f32 %v718, %v830
    %v853 = vsub.f32 %v719, %v830
    %v854 = vsub.f32 %v720, %v830
    %v855 = vsub.f32 %v721, %v830
    %v856 = vsub.f32 %v722, %v830
    %v857 = vsub.f32 %v723, %v830
    %v858 = vsub.f32 %v724, %v830
    %v859 = vsub.f32 %v725, %v830
    %v860 = vsub.f32 %v726, %v830
    %v861 = vsub.f32 %v727, %v830
    %v862 = vsub.f32 %v728, %v830
    %v863 = vsub.f32 %v729, %v830
    %v864 = vsub.f32 %v730, %v830
    %v865 = vsub.f32 %v731, %v830
    %v866 = vsub.f32 %v732, %v830
    %v867 = vsub.f32 %v733, %v830
    %v868 = vsub.f32 %v734, %v830
    %v869 = vsub.f32 %v735, %v830
    %v870 = vsub.f32 %v736, %v830
    %v871 = vsub.f32 %v737, %v830
    %v872 = vsub.f32 %v738, %v830
    %v873 = vsub.f32 %v739, %v830
    %v874 = vsub.f32 %v740, %v830
    %v875 = vsub.f32 %v741, %v830
    %v876 = vsub.f32 %v742, %v830
    %v877 = vsub.f32 %v743, %v830
    %v878 = vsub.f32 %v744, %v830
    %v879 = vsub.f32 %v745, %v830
    %v880 = vsub.f32 %v746, %v830
    %v881 = vsub.f32 %v747, %v830
    %v882 = vsub.f32 %v748, %v830
    %v883 = vsub.f32 %v749, %v830
    %v884 = vsub.f32 %v750, %v830
    %v885 = vsub.f32 %v751, %v830
    %v886 = vsub.f32 %v752, %v830
    %v887 = vsub.f32 %v753, %v830
    %v888 = vsub.f32 %v754, %v830
    %v889 = vsub.f32 %v755, %v830
    %v890 = vsub.f32 %v756, %v830
    %v891 = vsub.f32 %v757, %v830
    %v892 = vsub.f32 %v758, %v830
    %v893 = vsub.f32 %v759, %v830
    %v894 = vsub.f32 %v760, %v830
    %v895 = vmul.f32 %v831, %v831
    %v896 = vmul.f32 %v832, %v832
    %v897 = vmul.f32 %v833, %v833
    %v898 = vmul.f32 %v834, %v834
    %v899 = vmul.f32 %v835, %v835
    %v900 = vmul.f32 %v836, %v836
    %v901 = vmul.f32 %v837, %v837
    %v902 = vmul.f32 %v838, %v838
    %v903 = vmul.f32 %v839, %v839
    %v904 = vmul.f32 %v840, %v840
    %v905 = vmul.f32 %v841, %v841
    %v906 = vmul.f32 %v842, %v842
    %v907 = vmul.f32 %v843, %v843
    %v908 = vmul.f32 %v844, %v844
    %v909 = vmul.f32 %v845, %v845
    %v910 = vmul.f32 %v846, %v846
    %v911 = vmul.f32 %v847, %v847
    %v912 = vmul.f32 %v848, %v848
    %v913 = vmul.f32 %v849, %v849
    %v914 = vmul.f32 %v850, %v850
    %v915 = vmul.f32 %v851, %v851
    %v916 = vmul.f32 %v852, %v852
    %v917 = vmul.f32 %v853, %v853
    %v918 = vmul.f32 %v854, %v854
    %v919 = vmul.f32 %v855, %v855
    %v920 = vmul.f32 %v856, %v856
    %v921 = vmul.f32 %v857, %v857
    %v922 = vmul.f32 %v858, %v858
    %v923 = vmul.f32 %v859, %v859
    %v924 = vmul.f32 %v860, %v860
    %v925 = vmul.f32 %v861, %v861
    %v926 = vmul.f32 %v862, %v862
    %v927 = vmul.f32 %v863, %v863
    %v928 = vmul.f32 %v864, %v864
    %v929 = vmul.f32 %v865, %v865
    %v930 = vmul.f32 %v866, %v866
    %v931 = vmul.f32 %v867, %v867
    %v932 = vmul.f32 %v868, %v868
    %v933 = vmul.f32 %v869, %v869
    %v934 = vmul.f32 %v870, %v870
    %v935 = vmul.f32 %v871, %v871
    %v936 = vmul.f32 %v872, %v872
    %v937 = vmul.f32 %v873, %v873
    %v938 = vmul.f32 %v874, %v874
    %v939 = vmul.f32 %v875, %v875
    %v940 = vmul.f32 %v876, %v876
    %v941 = vmul.f32 %v877, %v877
    %v942 = vmul.f32 %v878, %v878
    %v943 = vmul.f32 %v879, %v879
    %v944 = vmul.f32 %v880, %v880
    %v945 = vmul.f32 %v881, %v881
    %v946 = vmul.f32 %v882, %v882
    %v947 = vmul.f32 %v883, %v883
    %v948 = vmul.f32 %v884, %v884
    %v949 = vmul.f32 %v885, %v885
    %v950 = vmul.f32 %v886, %v886
    %v951 = vmul.f32 %v887, %v887
    %v952 = vmul.f32 %v888, %v888
    %v953 = vmul.f32 %v889, %v889
    %v954 = vmul.f32 %v890, %v890
    %v955 = vmul.f32 %v891, %v891
    %v956 = vmul.f32 %v892, %v892
    %v957 = vmul.f32 %v893, %v893
    %v958 = vmul.f32 %v894, %v894
    %v959 = vadd.f32 %v895, %v896
    %v960 = vadd.f32 %v959, %v897
    %v961 = vadd.f32 %v960, %v898
    %v962 = vadd.f32 %v961, %v899
    %v963 = vadd.f32 %v962, %v900
    %v964 = vadd.f32 %v963, %v901
    %v965 = vadd.f32 %v964, %v902
    %v966 = vadd.f32 %v965, %v903
    %v967 = vadd.f32 %v966, %v904
    %v968 = vadd.f32 %v967, %v905
    %v969 = vadd.f32 %v968, %v906
    %v970 = vadd.f32 %v969, %v907
    %v971 = vadd.f32 %v970, %v908
    %v972 = vadd.f32 %v971, %v909
    %v973 = vadd.f32 %v972, %v910
    %v974 = vadd.f32 %v973, %v911
    %v975 = vadd.f32 %v974, %v912
    %v976 = vadd.f32 %v975, %v913
    %v977 = vadd.f32 %v976, %v914
    %v978 = vadd.f32 %v977, %v915
    %v979 = vadd.f32 %v978, %v916
    %v980 = vadd.f32 %v979, %v917
    %v981 = vadd.f32 %v980, %v918
    %v982 = vadd.f32 %v981, %v919
    %v983 = vadd.f32 %v982, %v920
    %v984 = vadd.f32 %v983, %v921
    %v985 = vadd.f32 %v984, %v922
    %v986 = vadd.f32 %v985, %v923
    %v987 = vadd.f32 %v986, %v924
    %v988 = vadd.f32 %v987, %v925
    %v989 = vadd.f32 %v988, %v926
    %v990 = vadd.f32 %v989, %v927
    %v991 = vadd.f32 %v990, %v928
    %v992 = vadd.f32 %v991, %v929
    %v993 = vadd.f32 %v992, %v930
    %v994 = vadd.f32 %v993, %v931
    %v995 = vadd.f32 %v994, %v932
    %v996 = vadd.f32 %v995, %v933
    %v997 = vadd.f32 %v996, %v934
    %v998 = vadd.f32 %v997, %v935
    %v999 = vadd.f32 %v998, %v936
    %v1000 = vadd.f32 %v999, %v937
    %v1001 = vadd.f32 %v1000, %v938
    %v1002 = vadd.f32 %v1001, %v939
    %v1003 = vadd.f32 %v1002, %v940
    %v1004 = vadd.f32 %v1003, %v941
    %v1005 = vadd.f32 %v1004, %v942
    %v1006 = vadd.f32 %v1005, %v943
    %v1007 = vadd.f32 %v1006, %v944
    %v1008 = vadd.f32 %v1007, %v945
    %v1009 = vadd.f32 %v1008, %v946
    %v1010 = vadd.f32 %v1009, %v947
    %v1011 = vadd.f32 %v1010, %v948
    %v1012 = vadd.f32 %v1011, %v949
    %v1013 = vadd.f32 %v1012, %v950
    %v1014 = vadd.f32 %v1013, %v951
    %v1015 = vadd.f32 %v1014, %v952
    %v1016 = vadd.f32 %v1015, %v953
    %v1017 = vadd.f32 %v1016, %v954
    %v1018 = vadd.f32 %v1017, %v955
    %v1019 = vadd.f32 %v1018, %v956
    %v1020 = vadd.f32 %v1019, %v957
    %v1021 = vadd.f32 %v1020, %v958
    %v1022 = vrot.slane %v1021, 4
    %v1023 = vadd.f32 %v1021, %v1022
    %v1024 = vrot.slane %v1023, 2
    %v1025 = vadd.f32 %v1023, %v1024
    %v1026 = vrot.slane %v1025, 1
    %v1027 = vadd.f32 %v1025, %v1026
    %v1028 = vmul.f32 %v1027, 0.001953125
    %v1029 = vld [vmem:[%s2] sm:$0x1]
    %v1030 = vadd.f32 %v1028, 1e-05
    %v1031 = vrsqrt.pop %v1030
    %v1032 = vmul.f32 %v1029, %v1031
    %v1034 = vlaneseq
    %v1035 = vshrl.u32 %v1034, 7
    %v1036 = vsub.s32 0, %v1035
    %v1037 = vrot.slane %v1032, %v1036
    %v1039 = vmul.f32 %v831, %v1037
    %v1040 = vmul.f32 %v832, %v1037
    %v1041 = vmul.f32 %v833, %v1037
    %v1042 = vmul.f32 %v834, %v1037
    %v1043 = vmul.f32 %v835, %v1037
    %v1044 = vmul.f32 %v836, %v1037
    %v1045 = vmul.f32 %v837, %v1037
    %v1046 = vmul.f32 %v838, %v1037
    %v1047 = vmul.f32 %v839, %v1037
    %v1048 = vmul.f32 %v840, %v1037
    %v1049 = vmul.f32 %v841, %v1037
    %v1050 = vmul.f32 %v842, %v1037
    %v1051 = vmul.f32 %v843, %v1037
    %v1052 = vmul.f32 %v844, %v1037
    %v1053 = vmul.f32 %v845, %v1037
    %v1054 = vmul.f32 %v846, %v1037
    %v1055 = vmul.f32 %v847, %v1037
    %v1056 = vmul.f32 %v848, %v1037
    %v1057 = vmul.f32 %v849, %v1037
    %v1058 = vmul.f32 %v850, %v1037
    %v1059 = vmul.f32 %v851, %v1037
    %v1060 = vmul.f32 %v852, %v1037
    %v1061 = vmul.f32 %v853, %v1037
    %v1062 = vmul.f32 %v854, %v1037
    %v1063 = vmul.f32 %v855, %v1037
    %v1064 = vmul.f32 %v856, %v1037
    %v1065 = vmul.f32 %v857, %v1037
    %v1066 = vmul.f32 %v858, %v1037
    %v1067 = vmul.f32 %v859, %v1037
    %v1068 = vmul.f32 %v860, %v1037
    %v1069 = vmul.f32 %v861, %v1037
    %v1070 = vmul.f32 %v862, %v1037
    %v1071 = vmul.f32 %v863, %v1037
    %v1072 = vmul.f32 %v864, %v1037
    %v1073 = vmul.f32 %v865, %v1037
    %v1074 = vmul.f32 %v866, %v1037
    %v1075 = vmul.f32 %v867, %v1037
    %v1076 = vmul.f32 %v868, %v1037
    %v1077 = vmul.f32 %v869, %v1037
    %v1078 = vmul.f32 %v870, %v1037
    %v1079 = vmul.f32 %v871, %v1037
    %v1080 = vmul.f32 %v872, %v1037
    %v1081 = vmul.f32 %v873, %v1037
    %v1082 = vmul.f32 %v874, %v1037
    %v1083 = vmul.f32 %v875, %v1037
    %v1084 = vmul.f32 %v876, %v1037
    %v1085 = vmul.f32 %v877, %v1037
    %v1086 = vmul.f32 %v878, %v1037
    %v1087 = vmul.f32 %v879, %v1037
    %v1088 = vmul.f32 %v880, %v1037
    %v1089 = vmul.f32 %v881, %v1037
    %v1090 = vmul.f32 %v882, %v1037
    %v1091 = vmul.f32 %v883, %v1037
    %v1092 = vmul.f32 %v884, %v1037
    %v1093 = vmul.f32 %v885, %v1037
    %v1094 = vmul.f32 %v886, %v1037
    %v1095 = vmul.f32 %v887, %v1037
    %v1096 = vmul.f32 %v888, %v1037
    %v1097 = vmul.f32 %v889, %v1037
    %v1098 = vmul.f32 %v890, %v1037
    %v1099 = vmul.f32 %v891, %v1037
    %v1100 = vmul.f32 %v892, %v1037
    %v1101 = vmul.f32 %v893, %v1037
    %v1102 = vmul.f32 %v894, %v1037
    %v1103 = vld [vmem:[%s3] sm:$0x1]
    %v1105 = vlaneseq
    %v1106 = vshrl.u32 %v1105, 7
    %v1107 = vsub.s32 0, %v1106
    %v1108 = vrot.slane %v1103, %v1107
    %v1110 = vadd.f32 %v1039, %v1108
    %v1111 = vadd.f32 %v1040, %v1108
    %v1112 = vadd.f32 %v1041, %v1108
    %v1113 = vadd.f32 %v1042, %v1108
    %v1114 = vadd.f32 %v1043, %v1108
    %v1115 = vadd.f32 %v1044, %v1108
    %v1116 = vadd.f32 %v1045, %v1108
    %v1117 = vadd.f32 %v1046, %v1108
    %v1118 = vadd.f32 %v1047, %v1108
    %v1119 = vadd.f32 %v1048, %v1108
    %v1120 = vadd.f32 %v1049, %v1108
    %v1121 = vadd.f32 %v1050, %v1108
    %v1122 = vadd.f32 %v1051, %v1108
    %v1123 = vadd.f32 %v1052, %v1108
    %v1124 = vadd.f32 %v1053, %v1108
    %v1125 = vadd.f32 %v1054, %v1108
    %v1126 = vadd.f32 %v1055, %v1108
    %v1127 = vadd.f32 %v1056, %v1108
    %v1128 = vadd.f32 %v1057, %v1108
    %v1129 = vadd.f32 %v1058, %v1108
    %v1130 = vadd.f32 %v1059, %v1108
    %v1131 = vadd.f32 %v1060, %v1108
    %v1132 = vadd.f32 %v1061, %v1108
    %v1133 = vadd.f32 %v1062, %v1108
    %v1134 = vadd.f32 %v1063, %v1108
    %v1135 = vadd.f32 %v1064, %v1108
    %v1136 = vadd.f32 %v1065, %v1108
    %v1137 = vadd.f32 %v1066, %v1108
    %v1138 = vadd.f32 %v1067, %v1108
    %v1139 = vadd.f32 %v1068, %v1108
    %v1140 = vadd.f32 %v1069, %v1108
    %v1141 = vadd.f32 %v1070, %v1108
    %v1142 = vadd.f32 %v1071, %v1108
    %v1143 = vadd.f32 %v1072, %v1108
    %v1144 = vadd.f32 %v1073, %v1108
    %v1145 = vadd.f32 %v1074, %v1108
    %v1146 = vadd.f32 %v1075, %v1108
    %v1147 = vadd.f32 %v1076, %v1108
    %v1148 = vadd.f32 %v1077, %v1108
    %v1149 = vadd.f32 %v1078, %v1108
    %v1150 = vadd.f32 %v1079, %v1108
    %v1151 = vadd.f32 %v1080, %v1108
    %v1152 = vadd.f32 %v1081, %v1108
    %v1153 = vadd.f32 %v1082, %v1108
    %v1154 = vadd.f32 %v1083, %v1108
    %v1155 = vadd.f32 %v1084, %v1108
    %v1156 = vadd.f32 %v1085, %v1108
    %v1157 = vadd.f32 %v1086, %v1108
    %v1158 = vadd.f32 %v1087, %v1108
    %v1159 = vadd.f32 %v1088, %v1108
    %v1160 = vadd.f32 %v1089, %v1108
    %v1161 = vadd.f32 %v1090, %v1108
    %v1162 = vadd.f32 %v1091, %v1108
    %v1163 = vadd.f32 %v1092, %v1108
    %v1164 = vadd.f32 %v1093, %v1108
    %v1165 = vadd.f32 %v1094, %v1108
    %v1166 = vadd.f32 %v1095, %v1108
    %v1167 = vadd.f32 %v1096, %v1108
    %v1168 = vadd.f32 %v1097, %v1108
    %v1169 = vadd.f32 %v1098, %v1108
    %v1170 = vadd.f32 %v1099, %v1108
    %v1171 = vadd.f32 %v1100, %v1108
    %v1172 = vadd.f32 %v1101, %v1108
    %v1173 = vadd.f32 %v1102, %v1108
    %vm1174 = vcmp.gt.f32.partialorder %v1110, 0.0
    %vm1175 = vcmp.gt.f32.partialorder %v1111, 0.0
    %vm1176 = vcmp.gt.f32.partialorder %v1112, 0.0
    %vm1177 = vcmp.gt.f32.partialorder %v1113, 0.0
    %vm1178 = vcmp.gt.f32.partialorder %v1114, 0.0
    %vm1179 = vcmp.gt.f32.partialorder %v1115, 0.0
    %vm1180 = vcmp.gt.f32.partialorder %v1116, 0.0
    %vm1181 = vcmp.gt.f32.partialorder %v1117, 0.0
    %vm1182 = vcmp.gt.f32.partialorder %v1118, 0.0
    %vm1183 = vcmp.gt.f32.partialorder %v1119, 0.0
    %vm1184 = vcmp.gt.f32.partialorder %v1120, 0.0
    %vm1185 = vcmp.gt.f32.partialorder %v1121, 0.0
    %vm1186 = vcmp.gt.f32.partialorder %v1122, 0.0
    %vm1187 = vcmp.gt.f32.partialorder %v1123, 0.0
    %vm1188 = vcmp.gt.f32.partialorder %v1124, 0.0
    %vm1189 = vcmp.gt.f32.partialorder %v1125, 0.0
    %vm1190 = vcmp.gt.f32.partialorder %v1126, 0.0
    %vm1191 = vcmp.gt.f32.partialorder %v1127, 0.0
    %vm1192 = vcmp.gt.f32.partialorder %v1128, 0.0
    %vm1193 = vcmp.gt.f32.partialorder %v1129, 0.0
    %vm1194 = vcmp.gt.f32.partialorder %v1130, 0.0
    %vm1195 = vcmp.gt.f32.partialorder %v1131, 0.0
    %vm1196 = vcmp.gt.f32.partialorder %v1132, 0.0
    %vm1197 = vcmp.gt.f32.partialorder %v1133, 0.0
    %vm1198 = vcmp.gt.f32.partialorder %v1134, 0.0
    %vm1199 = vcmp.gt.f32.partialorder %v1135, 0.0
    %vm1200 = vcmp.gt.f32.partialorder %v1136, 0.0
    %vm1201 = vcmp.gt.f32.partialorder %v1137, 0.0
    %vm1202 = vcmp.gt.f32.partialorder %v1138, 0.0
    %vm1203 = vcmp.gt.f32.partialorder %v1139, 0.0
    %vm1204 = vcmp.gt.f32.partialorder %v1140, 0.0
    %vm1205 = vcmp.gt.f32.partialorder %v1141, 0.0
    %vm1206 = vcmp.gt.f32.partialorder %v1142, 0.0
    %vm1207 = vcmp.gt.f32.partialorder %v1143, 0.0
    %vm1208 = vcmp.gt.f32.partialorder %v1144, 0.0
    %vm1209 = vcmp.gt.f32.partialorder %v1145, 0.0
    %vm1210 = vcmp.gt.f32.partialorder %v1146, 0.0
    %vm1211 = vcmp.gt.f32.partialorder %v1147, 0.0
    %vm1212 = vcmp.gt.f32.partialorder %v1148, 0.0
    %vm1213 = vcmp.gt.f32.partialorder %v1149, 0.0
    %vm1214 = vcmp.gt.f32.partialorder %v1150, 0.0
    %vm1215 = vcmp.gt.f32.partialorder %v1151, 0.0
    %vm1216 = vcmp.gt.f32.partialorder %v1152, 0.0
    %vm1217 = vcmp.gt.f32.partialorder %v1153, 0.0
    %vm1218 = vcmp.gt.f32.partialorder %v1154, 0.0
    %vm1219 = vcmp.gt.f32.partialorder %v1155, 0.0
    %vm1220 = vcmp.gt.f32.partialorder %v1156, 0.0
    %vm1221 = vcmp.gt.f32.partialorder %v1157, 0.0
    %vm1222 = vcmp.gt.f32.partialorder %v1158, 0.0
    %vm1223 = vcmp.gt.f32.partialorder %v1159, 0.0
    %vm1224 = vcmp.gt.f32.partialorder %v1160, 0.0
    %vm1225 = vcmp.gt.f32.partialorder %v1161, 0.0
    %vm1226 = vcmp.gt.f32.partialorder %v1162, 0.0
    %vm1227 = vcmp.gt.f32.partialorder %v1163, 0.0
    %vm1228 = vcmp.gt.f32.partialorder %v1164, 0.0
    %vm1229 = vcmp.gt.f32.partialorder %v1165, 0.0
    %vm1230 = vcmp.gt.f32.partialorder %v1166, 0.0
    %vm1231 = vcmp.gt.f32.partialorder %v1167, 0.0
    %vm1232 = vcmp.gt.f32.partialorder %v1168, 0.0
    %vm1233 = vcmp.gt.f32.partialorder %v1169, 0.0
    %vm1234 = vcmp.gt.f32.partialorder %v1170, 0.0
    %vm1235 = vcmp.gt.f32.partialorder %v1171, 0.0
    %vm1236 = vcmp.gt.f32.partialorder %v1172, 0.0
    %vm1237 = vcmp.gt.f32.partialorder %v1173, 0.0
    %v1238 = vmul.f32 %v1110, 0.2
    %v1239 = vmul.f32 %v1111, 0.2
    %v1240 = vmul.f32 %v1112, 0.2
    %v1241 = vmul.f32 %v1113, 0.2
    %v1242 = vmul.f32 %v1114, 0.2
    %v1243 = vmul.f32 %v1115, 0.2
    %v1244 = vmul.f32 %v1116, 0.2
    %v1245 = vmul.f32 %v1117, 0.2
    %v1246 = vmul.f32 %v1118, 0.2
    %v1247 = vmul.f32 %v1119, 0.2
    %v1248 = vmul.f32 %v1120, 0.2
    %v1249 = vmul.f32 %v1121, 0.2
    %v1250 = vmul.f32 %v1122, 0.2
    %v1251 = vmul.f32 %v1123, 0.2
    %v1252 = vmul.f32 %v1124, 0.2
    %v1253 = vmul.f32 %v1125, 0.2
    %v1254 = vmul.f32 %v1126, 0.2
    %v1255 = vmul.f32 %v1127, 0.2
    %v1256 = vmul.f32 %v1128, 0.2
    %v1257 = vmul.f32 %v1129, 0.2
    %v1258 = vmul.f32 %v1130, 0.2
    %v1259 = vmul.f32 %v1131, 0.2
    %v1260 = vmul.f32 %v1132, 0.2
    %v1261 = vmul.f32 %v1133, 0.2
    %v1262 = vmul.f32 %v1134, 0.2
    %v1263 = vmul.f32 %v1135, 0.2
    %v1264 = vmul.f32 %v1136, 0.2
    %v1265 = vmul.f32 %v1137, 0.2
    %v1266 = vmul.f32 %v1138, 0.2
    %v1267 = vmul.f32 %v1139, 0.2
    %v1268 = vmul.f32 %v1140, 0.2
    %v1269 = vmul.f32 %v1141, 0.2
    %v1270 = vmul.f32 %v1142, 0.2
    %v1271 = vmul.f32 %v1143, 0.2
    %v1272 = vmul.f32 %v1144, 0.2
    %v1273 = vmul.f32 %v1145, 0.2
    %v1274 = vmul.f32 %v1146, 0.2
    %v1275 = vmul.f32 %v1147, 0.2
    %v1276 = vmul.f32 %v1148, 0.2
    %v1277 = vmul.f32 %v1149, 0.2
    %v1278 = vmul.f32 %v1150, 0.2
    %v1279 = vmul.f32 %v1151, 0.2
    %v1280 = vmul.f32 %v1152, 0.2
    %v1281 = vmul.f32 %v1153, 0.2
    %v1282 = vmul.f32 %v1154, 0.2
    %v1283 = vmul.f32 %v1155, 0.2
    %v1284 = vmul.f32 %v1156, 0.2
    %v1285 = vmul.f32 %v1157, 0.2
    %v1286 = vmul.f32 %v1158, 0.2
    %v1287 = vmul.f32 %v1159, 0.2
    %v1288 = vmul.f32 %v1160, 0.2
    %v1289 = vmul.f32 %v1161, 0.2
    %v1290 = vmul.f32 %v1162, 0.2
    %v1291 = vmul.f32 %v1163, 0.2
    %v1292 = vmul.f32 %v1164, 0.2
    %v1293 = vmul.f32 %v1165, 0.2
    %v1294 = vmul.f32 %v1166, 0.2
    %v1295 = vmul.f32 %v1167, 0.2
    %v1296 = vmul.f32 %v1168, 0.2
    %v1297 = vmul.f32 %v1169, 0.2
    %v1298 = vmul.f32 %v1170, 0.2
    %v1299 = vmul.f32 %v1171, 0.2
    %v1300 = vmul.f32 %v1172, 0.2
    %v1301 = vmul.f32 %v1173, 0.2
    %v1302 = vsel %vm1174, %v1110, %v1238
    %v1303 = vsel %vm1175, %v1111, %v1239
    %v1304 = vsel %vm1176, %v1112, %v1240
    %v1305 = vsel %vm1177, %v1113, %v1241
    %v1306 = vsel %vm1178, %v1114, %v1242
    %v1307 = vsel %vm1179, %v1115, %v1243
    %v1308 = vsel %vm1180, %v1116, %v1244
    %v1309 = vsel %vm1181, %v1117, %v1245
    %v1310 = vsel %vm1182, %v1118, %v1246
    %v1311 = vsel %vm1183, %v1119, %v1247
    %v1312 = vsel %vm1184, %v1120, %v1248
    %v1313 = vsel %vm1185, %v1121, %v1249
    %v1314 = vsel %vm1186, %v1122, %v1250
    %v1315 = vsel %vm1187, %v1123, %v1251
    %v1316 = vsel %vm1188, %v1124, %v1252
    %v1317 = vsel %vm1189, %v1125, %v1253
    %v1318 = vsel %vm1190, %v1126, %v1254
    %v1319 = vsel %vm1191, %v1127, %v1255
    %v1320 = vsel %vm1192, %v1128, %v1256
    %v1321 = vsel %vm1193, %v1129, %v1257
    %v1322 = vsel %vm1194, %v1130, %v1258
    %v1323 = vsel %vm1195, %v1131, %v1259
    %v1324 = vsel %vm1196, %v1132, %v1260
    %v1325 = vsel %vm1197, %v1133, %v1261
    %v1326 = vsel %vm1198, %v1134, %v1262
    %v1327 = vsel %vm1199, %v1135, %v1263
    %v1328 = vsel %vm1200, %v1136, %v1264
    %v1329 = vsel %vm1201, %v1137, %v1265
    %v1330 = vsel %vm1202, %v1138, %v1266
    %v1331 = vsel %vm1203, %v1139, %v1267
    %v1332 = vsel %vm1204, %v1140, %v1268
    %v1333 = vsel %vm1205, %v1141, %v1269
    %v1334 = vsel %vm1206, %v1142, %v1270
    %v1335 = vsel %vm1207, %v1143, %v1271
    %v1336 = vsel %vm1208, %v1144, %v1272
    %v1337 = vsel %vm1209, %v1145, %v1273
    %v1338 = vsel %vm1210, %v1146, %v1274
    %v1339 = vsel %vm1211, %v1147, %v1275
    %v1340 = vsel %vm1212, %v1148, %v1276
    %v1341 = vsel %vm1213, %v1149, %v1277
    %v1342 = vsel %vm1214, %v1150, %v1278
    %v1343 = vsel %vm1215, %v1151, %v1279
    %v1344 = vsel %vm1216, %v1152, %v1280
    %v1345 = vsel %vm1217, %v1153, %v1281
    %v1346 = vsel %vm1218, %v1154, %v1282
    %v1347 = vsel %vm1219, %v1155, %v1283
    %v1348 = vsel %vm1220, %v1156, %v1284
    %v1349 = vsel %vm1221, %v1157, %v1285
    %v1350 = vsel %vm1222, %v1158, %v1286
    %v1351 = vsel %vm1223, %v1159, %v1287
    %v1352 = vsel %vm1224, %v1160, %v1288
    %v1353 = vsel %vm1225, %v1161, %v1289
    %v1354 = vsel %vm1226, %v1162, %v1290
    %v1355 = vsel %vm1227, %v1163, %v1291
    %v1356 = vsel %vm1228, %v1164, %v1292
    %v1357 = vsel %vm1229, %v1165, %v1293
    %v1358 = vsel %vm1230, %v1166, %v1294
    %v1359 = vsel %vm1231, %v1167, %v1295
    %v1360 = vsel %vm1232, %v1168, %v1296
    %v1361 = vsel %vm1233, %v1169, %v1297
    %v1362 = vsel %vm1234, %v1170, %v1298
    %v1363 = vsel %vm1235, %v1171, %v1299
    %v1364 = vsel %vm1236, %v1172, %v1300
    %v1365 = vsel %vm1237, %v1173, %v1301
    %1366 = vst [vmem:[%s4] sm:$0xff] %v1302
    %1367 = vst [vmem:[%s4 + $0x8] sm:$0xff] %v1303
    %1368 = vst [vmem:[%s4 + $0x10] sm:$0xff] %v1304
    %1369 = vst [vmem:[%s4 + $0x18] sm:$0xff] %v1305
    %1370 = vst [vmem:[%s4 + $0x20] sm:$0xff] %v1306
    %1371 = vst [vmem:[%s4 + $0x28] sm:$0xff] %v1307
    %1372 = vst [vmem:[%s4 + $0x30] sm:$0xff] %v1308
    %1373 = vst [vmem:[%s4 + $0x38] sm:$0xff] %v1309
    %1374 = vst [vmem:[%s4 + $0x40] sm:$0xff] %v1310
    %1375 = vst [vmem:[%s4 + $0x48] sm:$0xff] %v1311
    %1376 = vst [vmem:[%s4 + $0x50] sm:$0xff] %v1312
    %1377 = vst [vmem:[%s4 + $0x58] sm:$0xff] %v1313
    %1378 = vst [vmem:[%s4 + $0x60] sm:$0xff] %v1314
    %1379 = vst [vmem:[%s4 + $0x68] sm:$0xff] %v1315
    %1380 = vst [vmem:[%s4 + $0x70] sm:$0xff] %v1316
    %1381 = vst [vmem:[%s4 + $0x78] sm:$0xff] %v1317
    %1382 = vst [vmem:[%s4 + $0x80] sm:$0xff] %v1318
    %1383 = vst [vmem:[%s4 + $0x88] sm:$0xff] %v1319
    %1384 = vst [vmem:[%s4 + $0x90] sm:$0xff] %v1320
    %1385 = vst [vmem:[%s4 + $0x98] sm:$0xff] %v1321
    %1386 = vst [vmem:[%s4 + $0xa0] sm:$0xff] %v1322
    %1387 = vst [vmem:[%s4 + $0xa8] sm:$0xff] %v1323
    %1388 = vst [vmem:[%s4 + $0xb0] sm:$0xff] %v1324
    %1389 = vst [vmem:[%s4 + $0xb8] sm:$0xff] %v1325
    %1390 = vst [vmem:[%s4 + $0xc0] sm:$0xff] %v1326
    %1391 = vst [vmem:[%s4 + $0xc8] sm:$0xff] %v1327
    %1392 = vst [vmem:[%s4 + $0xd0] sm:$0xff] %v1328
    %1393 = vst [vmem:[%s4 + $0xd8] sm:$0xff] %v1329
    %1394 = vst [vmem:[%s4 + $0xe0] sm:$0xff] %v1330
    %1395 = vst [vmem:[%s4 + $0xe8] sm:$0xff] %v1331
    %1396 = vst [vmem:[%s4 + $0xf0] sm:$0xff] %v1332
    %1397 = vst [vmem:[%s4 + $0xf8] sm:$0xff] %v1333
    %1398 = vst [vmem:[%s4 + $0x100] sm:$0xff] %v1334
    %1399 = vst [vmem:[%s4 + $0x108] sm:$0xff] %v1335
    %1400 = vst [vmem:[%s4 + $0x110] sm:$0xff] %v1336
    %1401 = vst [vmem:[%s4 + $0x118] sm:$0xff] %v1337
    %1402 = vst [vmem:[%s4 + $0x120] sm:$0xff] %v1338
    %1403 = vst [vmem:[%s4 + $0x128] sm:$0xff] %v1339
    %1404 = vst [vmem:[%s4 + $0x130] sm:$0xff] %v1340
    %1405 = vst [vmem:[%s4 + $0x138] sm:$0xff] %v1341
    %1406 = vst [vmem:[%s4 + $0x140] sm:$0xff] %v1342
    %1407 = vst [vmem:[%s4 + $0x148] sm:$0xff] %v1343
    %1408 = vst [vmem:[%s4 + $0x150] sm:$0xff] %v1344
    %1409 = vst [vmem:[%s4 + $0x158] sm:$0xff] %v1345
    %1410 = vst [vmem:[%s4 + $0x160] sm:$0xff] %v1346
    %1411 = vst [vmem:[%s4 + $0x168] sm:$0xff] %v1347
    %1412 = vst [vmem:[%s4 + $0x170] sm:$0xff] %v1348
    %1413 = vst [vmem:[%s4 + $0x178] sm:$0xff] %v1349
    %1414 = vst [vmem:[%s4 + $0x180] sm:$0xff] %v1350
    %1415 = vst [vmem:[%s4 + $0x188] sm:$0xff] %v1351
    %1416 = vst [vmem:[%s4 + $0x190] sm:$0xff] %v1352
    %1417 = vst [vmem:[%s4 + $0x198] sm:$0xff] %v1353
    %1418 = vst [vmem:[%s4 + $0x1a0] sm:$0xff] %v1354
    %1419 = vst [vmem:[%s4 + $0x1a8] sm:$0xff] %v1355
    %1420 = vst [vmem:[%s4 + $0x1b0] sm:$0xff] %v1356
    %1421 = vst [vmem:[%s4 + $0x1b8] sm:$0xff] %v1357
    %1422 = vst [vmem:[%s4 + $0x1c0] sm:$0xff] %v1358
    %1423 = vst [vmem:[%s4 + $0x1c8] sm:$0xff] %v1359
    %1424 = vst [vmem:[%s4 + $0x1d0] sm:$0xff] %v1360
    %1425 = vst [vmem:[%s4 + $0x1d8] sm:$0xff] %v1361
    %1426 = vst [vmem:[%s4 + $0x1e0] sm:$0xff] %v1362
    %1427 = vst [vmem:[%s4 + $0x1e8] sm:$0xff] %v1363
    %1428 = vst [vmem:[%s4 + $0x1f0] sm:$0xff] %v1364
    %1429 = vst [vmem:[%s4 + $0x1f8] sm:$0xff] %v1365
  $region21: #{discriminator_forward.6} parent=0 // pred_fallthru
    _
  // Predicated region
  $region22: #{discriminator_forward.6} parent=0 // pred_check
    _
  $region23: #{discriminator_forward.6} parent=0 // pred_check_branch
    %1431 = sbr.rel (0) target = $region25
  $region24: #{discriminator_forward.6} parent=0 // pred_region
    _
  $region25: #{discriminator_forward.6} parent=0 // pred_fallthru
    _
  // Predicated region
  $region26: #{discriminator_forward.6} parent=0 // pred_check
    _
  $region27: #{discriminator_forward.6} parent=0 // pred_check_branch
    %1433 = sbr.rel (0) target = $region29
  $region28: #{discriminator_forward.6} parent=0 // pred_region
    _
  $region29: #{discriminator_forward.6} parent=0 // pred_fallthru
    _

// kernel: discriminator_forward.7
$region0: #{discriminator_forward.7}
  #allocation0 [shape = 'u32[]', space=smem, size = 0x4, offset = 0x4, fixed_abs, tag = 'smem constant byte address 0x4 - core index']
  #allocation1 [shape = 'u32[144,128]{1,0:T(1,128)}', space=vmem, size = 0x12000, scoped, tag = 'internal scratch']
  %s0 = inlined_call_operand.vmem [shape: bf16[128,256], index: 0, kind: input, shape index: {}]
  %s1 = inlined_call_operand.vmem [shape: bf16[256,128], index: 1, kind: input, shape index: {}]
  %s2 = inlined_call_operand.vmem [shape: f32[1,128], index: 2, kind: input, shape index: {}]
  %s3 = inlined_call_operand.vmem [shape: f32[1,128], index: 3, kind: input, shape index: {}]
  %s4 = inlined_call_operand.vmem [shape: f32[128,128], index: 4, kind: output, shape index: {}]
  %s5 = sld [smem:[#allocation0]]
  $region30: #{discriminator_forward.7} parent=0
    _
  %s7 = ssub.s32 1, %s5
  %s8 = scalar_select 0, %s7, %s5
  // Predicated region
  $region2: #{discriminator_forward.7} parent=0 // pred_check
    _
  $region3: #{discriminator_forward.7} parent=0 // pred_check_branch
    %10 = sbr.rel (0) target = $region5
  $region4: #{discriminator_forward.7} parent=0 // pred_region
    _
  $region5: #{discriminator_forward.7} parent=0 // pred_fallthru
    _
  // Predicated region
  $region6: #{discriminator_forward.7} parent=0 // pred_check
    _
  $region7: #{discriminator_forward.7} parent=0 // pred_check_branch
    %12 = sbr.rel (0) target = $region9
  $region8: #{discriminator_forward.7} parent=0 // pred_region
    _
  $region9: #{discriminator_forward.7} parent=0 // pred_fallthru
    _
  // Predicated region
  $region10: #{discriminator_forward.7} parent=0 // pred_check
    _
  $region11: #{discriminator_forward.7} parent=0 // pred_check_branch
    %14 = sbr.rel (0) target = $region13
  $region12: #{discriminator_forward.7} parent=0 // pred_region
    _
  $region13: #{discriminator_forward.7} parent=0 // pred_fallthru
    _
  // Predicated region
  $region14: #{discriminator_forward.7} parent=0 // pred_check
    _
  $region15: #{discriminator_forward.7} parent=0 // pred_check_branch
    %16 = sbr.rel (0) target = $region17
  $region16: #{discriminator_forward.7} parent=0 // pred_region
    _
  $region17: #{discriminator_forward.7} parent=0 // pred_fallthru
    _
  %v18 = vld [vmem:[%s0] sm:$0xff]
  %v19 = vld [vmem:[%s0 + $0x8] sm:$0xff]
  %v20 = vld [vmem:[%s0 + $0x10] sm:$0xff]
  %v21 = vld [vmem:[%s0 + $0x18] sm:$0xff]
  %v22 = vld [vmem:[%s0 + $0x20] sm:$0xff]
  %v23 = vld [vmem:[%s0 + $0x28] sm:$0xff]
  %v24 = vld [vmem:[%s0 + $0x30] sm:$0xff]
  %v25 = vld [vmem:[%s0 + $0x38] sm:$0xff]
  %v26 = vld [vmem:[%s0 + $0x40] sm:$0xff]
  %v27 = vld [vmem:[%s0 + $0x48] sm:$0xff]
  %v28 = vld [vmem:[%s0 + $0x50] sm:$0xff]
  %v29 = vld [vmem:[%s0 + $0x58] sm:$0xff]
  %v30 = vld [vmem:[%s0 + $0x60] sm:$0xff]
  %v31 = vld [vmem:[%s0 + $0x68] sm:$0xff]
  %v32 = vld [vmem:[%s0 + $0x70] sm:$0xff]
  %v33 = vld [vmem:[%s0 + $0x78] sm:$0xff]
  %v34 = vld [vmem:[%s1] sm:$0xf]
  %v35 = vld [vmem:[%s1 + $0x4] sm:$0xf]
  %v36 = vld [vmem:[%s1 + $0x8] sm:$0xf]
  %v37 = vld [vmem:[%s1 + $0xc] sm:$0xf]
  %v38 = vld [vmem:[%s1 + $0x10] sm:$0xf]
  %v39 = vld [vmem:[%s1 + $0x14] sm:$0xf]
  %v40 = vld [vmem:[%s1 + $0x18] sm:$0xf]
  %v41 = vld [vmem:[%s1 + $0x1c] sm:$0xf]
  %v42 = vld [vmem:[%s1 + $0x20] sm:$0xf]
  %v43 = vld [vmem:[%s1 + $0x24] sm:$0xf]
  %v44 = vld [vmem:[%s1 + $0x28] sm:$0xf]
  %v45 = vld [vmem:[%s1 + $0x2c] sm:$0xf]
  %v46 = vld [vmem:[%s1 + $0x30] sm:$0xf]
  %v47 = vld [vmem:[%s1 + $0x34] sm:$0xf]
  %v48 = vld [vmem:[%s1 + $0x38] sm:$0xf]
  %v49 = vld [vmem:[%s1 + $0x3c] sm:$0xf]
  %v50 = vld [vmem:[%s1 + $0x40] sm:$0xf]
  %v51 = vld [vmem:[%s1 + $0x44] sm:$0xf]
  %v52 = vld [vmem:[%s1 + $0x48] sm:$0xf]
  %v53 = vld [vmem:[%s1 + $0x4c] sm:$0xf]
  %v54 = vld [vmem:[%s1 + $0x50] sm:$0xf]
  %v55 = vld [vmem:[%s1 + $0x54] sm:$0xf]
  %v56 = vld [vmem:[%s1 + $0x58] sm:$0xf]
  %v57 = vld [vmem:[%s1 + $0x5c] sm:$0xf]
  %v58 = vld [vmem:[%s1 + $0x60] sm:$0xf]
  %v59 = vld [vmem:[%s1 + $0x64] sm:$0xf]
  %v60 = vld [vmem:[%s1 + $0x68] sm:$0xf]
  %v61 = vld [vmem:[%s1 + $0x6c] sm:$0xf]
  %v62 = vld [vmem:[%s1 + $0x70] sm:$0xf]
  %v63 = vld [vmem:[%s1 + $0x74] sm:$0xf]
  %v64 = vld [vmem:[%s1 + $0x78] sm:$0xf]
  %v65 = vld [vmem:[%s1 + $0x7c] sm:$0xf]
  %v82 = vunpack.c.l.b16 %v18
  %v83 = vunpack.c.h.b16 %v18
  %v84 = vunpack.c.l.b16 %v19
  %v85 = vunpack.c.h.b16 %v19
  %v86 = vunpack.c.l.b16 %v20
  %v87 = vunpack.c.h.b16 %v20
  %v88 = vunpack.c.l.b16 %v21
  %v89 = vunpack.c.h.b16 %v21
  %v90 = vunpack.c.l.b16 %v22
  %v91 = vunpack.c.h.b16 %v22
  %v92 = vunpack.c.l.b16 %v23
  %v93 = vunpack.c.h.b16 %v23
  %v94 = vunpack.c.l.b16 %v24
  %v95 = vunpack.c.h.b16 %v24
  %v96 = vunpack.c.l.b16 %v25
  %v97 = vunpack.c.h.b16 %v25
  %v98 = vunpack.c.l.b16 %v26
  %v99 = vunpack.c.h.b16 %v26
  %v100 = vunpack.c.l.b16 %v27
  %v101 = vunpack.c.h.b16 %v27
  %v102 = vunpack.c.l.b16 %v28
  %v103 = vunpack.c.h.b16 %v28
  %v104 = vunpack.c.l.b16 %v29
  %v105 = vunpack.c.h.b16 %v29
  %v106 = vunpack.c.l.b16 %v30
  %v107 = vunpack.c.h.b16 %v30
  %v108 = vunpack.c.l.b16 %v31
  %v109 = vunpack.c.h.b16 %v31
  %v110 = vunpack.c.l.b16 %v32
  %v111 = vunpack.c.h.b16 %v32
  %v112 = vunpack.c.l.b16 %v33
  %v113 = vunpack.c.h.b16 %v33
  %v114 = vpack.c.b16 %v84, %v82
  %v115 = vpack.c.b16 %v85, %v83
  %v116 = vpack.c.b16 %v88, %v86
  %v117 = vpack.c.b16 %v89, %v87
  %v118 = vpack.c.b16 %v92, %v90
  %v119 = vpack.c.b16 %v93, %v91
  %v120 = vpack.c.b16 %v96, %v94
  %v121 = vpack.c.b16 %v97, %v95
  %v122 = vpack.c.b16 %v100, %v98
  %v123 = vpack.c.b16 %v101, %v99
  %v124 = vpack.c.b16 %v104, %v102
  %v125 = vpack.c.b16 %v105, %v103
  %v126 = vpack.c.b16 %v108, %v106
  %v127 = vpack.c.b16 %v109, %v107
  %v128 = vpack.c.b16 %v112, %v110
  %v129 = vpack.c.b16 %v113, %v111
  %v178 = vunpack.c.l.b16 %v34
  %v179 = vunpack.c.l.b16 %v35
  %v180 = vunpack.c.l.b16 %v36
  %v181 = vunpack.c.l.b16 %v37
  %v182 = vunpack.c.l.b16 %v38
  %v183 = vunpack.c.l.b16 %v39
  %v184 = vunpack.c.l.b16 %v40
  %v185 = vunpack.c.l.b16 %v41
  %v186 = vunpack.c.l.b16 %v42
  %v187 = vunpack.c.l.b16 %v43
  %v188 = vunpack.c.l.b16 %v44
  %v189 = vunpack.c.l.b16 %v45
  %v190 = vunpack.c.l.b16 %v46
  %v191 = vunpack.c.l.b16 %v47
  %v192 = vunpack.c.l.b16 %v48
  %v193 = vunpack.c.l.b16 %v49
  %v194 = vunpack.c.l.b16 %v50
  %v195 = vunpack.c.l.b16 %v51
  %v196 = vunpack.c.l.b16 %v52
  %v197 = vunpack.c.l.b16 %v53
  %v198 = vunpack.c.l.b16 %v54
  %v199 = vunpack.c.l.b16 %v55
  %v200 = vunpack.c.l.b16 %v56
  %v201 = vunpack.c.l.b16 %v57
  %v202 = vunpack.c.l.b16 %v58
  %v203 = vunpack.c.l.b16 %v59
  %v204 = vunpack.c.l.b16 %v60
  %v205 = vunpack.c.l.b16 %v61
  %v206 = vunpack.c.l.b16 %v62
  %v207 = vunpack.c.l.b16 %v63
  %v208 = vunpack.c.l.b16 %v64
  %v209 = vunpack.c.l.b16 %v65
  %v210 = vpack.c.b16 %v179, %v178
  %v211 = vpack.c.b16 %v181, %v180
  %v212 = vpack.c.b16 %v183, %v182
  %v213 = vpack.c.b16 %v185, %v184
  %v214 = vpack.c.b16 %v187, %v186
  %v215 = vpack.c.b16 %v189, %v188
  %v216 = vpack.c.b16 %v191, %v190
  %v217 = vpack.c.b16 %v193, %v192
  %v218 = vpack.c.b16 %v195, %v194
  %v219 = vpack.c.b16 %v197, %v196
  %v220 = vpack.c.b16 %v199, %v198
  %v221 = vpack.c.b16 %v201, %v200
  %v222 = vpack.c.b16 %v203, %v202
  %v223 = vpack.c.b16 %v205, %v204
  %v224 = vpack.c.b16 %v207, %v206
  %v225 = vpack.c.b16 %v209, %v208
  %242 = vmatprep.subr.bf16.mxu0 0
  %243 = vmatpush1.bf16.msra.mxu0 %v217
  %244 = vmatprep.subr.bf16.mxu0 0
  %245 = vmatpush1.bf16.msra.mxu0 %v216
  %246 = vmatprep.subr.bf16.mxu0 0
  %247 = vmatpush1.bf16.msra.mxu0 %v215
  %248 = vmatprep.subr.bf16.mxu0 0
  %249 = vmatpush1.bf16.msra.mxu0 %v214
  %250 = vmatprep.subr.bf16.mxu0 0
  %251 = vmatpush1.bf16.msra.mxu0 %v213
  %252 = vmatprep.subr.bf16.mxu0 0
  %253 = vmatpush1.bf16.msra.mxu0 %v212
  %254 = vmatprep.subr.bf16.mxu0 0
  %255 = vmatpush1.bf16.msra.mxu0 %v211
  %256 = vmatprep.subr.bf16.mxu0 0
  %257 = vmatpush1.bf16.msra.mxu0 %v210
  %258 = vmatprep.subr.bf16.mxu0 0
  %259 = vmatpush2.bf16.msra.mxu0 %v225
  %260 = vmatprep.subr.bf16.mxu0 0
  %261 = vmatpush2.bf16.msra.mxu0 %v224
  %262 = vmatprep.subr.bf16.mxu0 0
  %263 = vmatpush2.bf16.msra.mxu0 %v223
  %264 = vmatprep.subr.bf16.mxu0 0
  %265 = vmatpush2.bf16.msra.mxu0 %v222
  %266 = vmatprep.subr.bf16.mxu0 0
  %267 = vmatpush2.bf16.msra.mxu0 %v221
  %268 = vmatprep.subr.bf16.mxu0 0
  %269 = vmatpush2.bf16.msra.mxu0 %v220
  %270 = vmatprep.subr.bf16.mxu0 0
  %271 = vmatpush2.bf16.msra.mxu0 %v219
  %272 = vmatprep.subr.bf16.mxu0 0
  %273 = vmatpush2.bf16.msra.mxu0 %v218
  %274 = vmatprep.mubr.bf16.mxu0 %v115
  %275 = vmatmul.mubr.bf16.gmra.mxu0 %v114
  %v276 = vpop.f32.mrf.mxu0
  %v277 = vadd.f32 0.0, %v276
  %v278 = vpop.f32.mrf.mxu0
  %v279 = vpop.f32.mrf.mxu0
  %v280 = vadd.f32 0.0, %v279
  %v281 = vpop.f32.mrf.mxu0
  %282 = vmatprep.mubr.bf16.mxu0 %v117
  %283 = vmatmul.mubr.bf16.gmra.mxu0 %v116
  %v284 = vpop.f32.mrf.mxu0
  %v285 = vadd.f32 0.0, %v284
  %v286 = vpop.f32.mrf.mxu0
  %v287 = vpop.f32.mrf.mxu0
  %v288 = vadd.f32 0.0, %v287
  %v289 = vpop.f32.mrf.mxu0
  %290 = vmatprep.mubr.bf16.mxu0 %v119
  %291 = vmatmul.mubr.bf16.gmra.mxu0 %v118
  %v292 = vpop.f32.mrf.mxu0
  %v293 = vadd.f32 0.0, %v292
  %v294 = vpop.f32.mrf.mxu0
  %v295 = vpop.f32.mrf.mxu0
  %v296 = vadd.f32 0.0, %v295
  %v297 = vpop.f32.mrf.mxu0
  %298 = vmatprep.mubr.bf16.mxu0 %v121
  %299 = vmatmul.mubr.bf16.gmra.mxu0 %v120
  %v300 = vpop.f32.mrf.mxu0
  %v301 = vadd.f32 0.0, %v300
  %v302 = vpop.f32.mrf.mxu0
  %v303 = vpop.f32.mrf.mxu0
  %v304 = vadd.f32 0.0, %v303
  %v305 = vpop.f32.mrf.mxu0
  %306 = vmatprep.mubr.bf16.mxu0 %v123
  %307 = vmatmul.mubr.bf16.gmra.mxu0 %v122
  %v308 = vpop.f32.mrf.mxu0
  %v309 = vadd.f32 0.0, %v308
  %v310 = vpop.f32.mrf.mxu0
  %v311 = vpop.f32.mrf.mxu0
  %v312 = vadd.f32 0.0, %v311
  %v313 = vpop.f32.mrf.mxu0
  %314 = vmatprep.mubr.bf16.mxu0 %v125
  %315 = vmatmul.mubr.bf16.gmra.mxu0 %v124
  %v316 = vpop.f32.mrf.mxu0
  %v317 = vadd.f32 0.0, %v316
  %v318 = vpop.f32.mrf.mxu0
  %v319 = vpop.f32.mrf.mxu0
  %v320 = vadd.f32 0.0, %v319
  %v321 = vpop.f32.mrf.mxu0
  %322 = vmatprep.mubr.bf16.mxu0 %v127
  %323 = vmatmul.mubr.bf16.gmra.mxu0 %v126
  %v324 = vpop.f32.mrf.mxu0
  %v325 = vadd.f32 0.0, %v324
  %v326 = vpop.f32.mrf.mxu0
  %v327 = vpop.f32.mrf.mxu0
  %v328 = vadd.f32 0.0, %v327
  %v329 = vpop.f32.mrf.mxu0
  %330 = vmatprep.mubr.bf16.mxu0 %v129
  %331 = vmatmul.mubr.bf16.gmra.mxu0 %v128
  %v332 = vpop.f32.mrf.mxu0
  %v333 = vadd.f32 0.0, %v332
  %v334 = vpop.f32.mrf.mxu0
  %v335 = vpop.f32.mrf.mxu0
  %v336 = vadd.f32 0.0, %v335
  %v337 = vpop.f32.mrf.mxu0
  %338 = vdwg.mxu0
  %s339 = smul.u32 0, 128
  %s340 = scalar_lea.vmem %s4, %s339
  %341 = vst [vmem:[%s340] sm:$0xff] %v277
  %342 = vst [vmem:[%s340 + $0x8] sm:$0xff] %v280
  %343 = vst [vmem:[%s340 + $0x10] sm:$0xff] %v285
  %344 = vst [vmem:[%s340 + $0x18] sm:$0xff] %v288
  %345 = vst [vmem:[%s340 + $0x20] sm:$0xff] %v293
  %346 = vst [vmem:[%s340 + $0x28] sm:$0xff] %v296
  %347 = vst [vmem:[%s340 + $0x30] sm:$0xff] %v301
  %348 = vst [vmem:[%s340 + $0x38] sm:$0xff] %v304
  %349 = vst [vmem:[%s340 + $0x40] sm:$0xff] %v309
  %350 = vst [vmem:[%s340 + $0x48] sm:$0xff] %v312
  %351 = vst [vmem:[%s340 + $0x50] sm:$0xff] %v317
  %352 = vst [vmem:[%s340 + $0x58] sm:$0xff] %v320
  %353 = vst [vmem:[%s340 + $0x60] sm:$0xff] %v325
  %354 = vst [vmem:[%s340 + $0x68] sm:$0xff] %v328
  %355 = vst [vmem:[%s340 + $0x70] sm:$0xff] %v333
  %356 = vst [vmem:[%s340 + $0x78] sm:$0xff] %v336
  %p357 = scmp.eq.s32.totalorder 0, 0
  // Predicated region
  $region18: #{discriminator_forward.7} parent=0 // pred_check
    %p358 = pneg %p357
  $region19: #{discriminator_forward.7} parent=0 // pred_check_branch
    %360 = sbr.rel (%p358) target = $region21
  $region20: #{discriminator_forward.7} parent=0 // pred_region
    %v361 = vld [vmem:[%s4] sm:$0xff]
    %v362 = vld [vmem:[%s4 + $0x8] sm:$0xff]
    %v363 = vld [vmem:[%s4 + $0x10] sm:$0xff]
    %v364 = vld [vmem:[%s4 + $0x18] sm:$0xff]
    %v365 = vld [vmem:[%s4 + $0x20] sm:$0xff]
    %v366 = vld [vmem:[%s4 + $0x28] sm:$0xff]
    %v367 = vld [vmem:[%s4 + $0x30] sm:$0xff]
    %v368 = vld [vmem:[%s4 + $0x38] sm:$0xff]
    %v369 = vld [vmem:[%s4 + $0x40] sm:$0xff]
    %v370 = vld [vmem:[%s4 + $0x48] sm:$0xff]
    %v371 = vld [vmem:[%s4 + $0x50] sm:$0xff]
    %v372 = vld [vmem:[%s4 + $0x58] sm:$0xff]
    %v373 = vld [vmem:[%s4 + $0x60] sm:$0xff]
    %v374 = vld [vmem:[%s4 + $0x68] sm:$0xff]
    %v375 = vld [vmem:[%s4 + $0x70] sm:$0xff]
    %v376 = vld [vmem:[%s4 + $0x78] sm:$0xff]
    %v377 = vadd.f32 %v361, %v362
    %v378 = vadd.f32 %v377, %v363
    %v379 = vadd.f32 %v378, %v364
    %v380 = vadd.f32 %v379, %v365
    %v381 = vadd.f32 %v380, %v366
    %v382 = vadd.f32 %v381, %v367
    %v383 = vadd.f32 %v382, %v368
    %v384 = vadd.f32 %v383, %v369
    %v385 = vadd.f32 %v384, %v370
    %v386 = vadd.f32 %v385, %v371
    %v387 = vadd.f32 %v386, %v372
    %v388 = vadd.f32 %v387, %v373
    %v389 = vadd.f32 %v388, %v374
    %v390 = vadd.f32 %v389, %v375
    %v391 = vadd.f32 %v390, %v376
    %v392 = vrot.slane %v391, 4
    %v393 = vadd.f32 %v391, %v392
    %v394 = vrot.slane %v393, 2
    %v395 = vadd.f32 %v393, %v394
    %v396 = vrot.slane %v395, 1
    %v397 = vadd.f32 %v395, %v396
    %v398 = vmul.f32 %v397, 0.0078125
    %v399 = vsub.f32 %v361, %v398
    %v400 = vsub.f32 %v362, %v398
    %v401 = vsub.f32 %v363, %v398
    %v402 = vsub.f32 %v364, %v398
    %v403 = vsub.f32 %v365, %v398
    %v404 = vsub.f32 %v366, %v398
    %v405 = vsub.f32 %v367, %v398
    %v406 = vsub.f32 %v368, %v398
    %v407 = vsub.f32 %v369, %v398
    %v408 = vsub.f32 %v370, %v398
    %v409 = vsub.f32 %v371, %v398
    %v410 = vsub.f32 %v372, %v398
    %v411 = vsub.f32 %v373, %v398
    %v412 = vsub.f32 %v374, %v398
    %v413 = vsub.f32 %v375, %v398
    %v414 = vsub.f32 %v376, %v398
    %v415 = vmul.f32 %v399, %v399
    %v416 = vmul.f32 %v400, %v400
    %v417 = vmul.f32 %v401, %v401
    %v418 = vmul.f32 %v402, %v402
    %v419 = vmul.f32 %v403, %v403
    %v420 = vmul.f32 %v404, %v404
    %v421 = vmul.f32 %v405, %v405
    %v422 = vmul.f32 %v406, %v406
    %v423 = vmul.f32 %v407, %v407
    %v424 = vmul.f32 %v408, %v408
    %v425 = vmul.f32 %v409, %v409
    %v426 = vmul.f32 %v410, %v410
    %v427 = vmul.f32 %v411, %v411
    %v428 = vmul.f32 %v412, %v412
    %v429 = vmul.f32 %v413, %v413
    %v430 = vmul.f32 %v414, %v414
    %v431 = vadd.f32 %v415, %v416
    %v432 = vadd.f32 %v431, %v417
    %v433 = vadd.f32 %v432, %v418
    %v434 = vadd.f32 %v433, %v419
    %v435 = vadd.f32 %v434, %v420
    %v436 = vadd.f32 %v435, %v421
    %v437 = vadd.f32 %v436, %v422
    %v438 = vadd.f32 %v437, %v423
    %v439 = vadd.f32 %v438, %v424
    %v440 = vadd.f32 %v439, %v425
    %v441 = vadd.f32 %v440, %v426
    %v442 = vadd.f32 %v441, %v427
    %v443 = vadd.f32 %v442, %v428
    %v444 = vadd.f32 %v443, %v429
    %v445 = vadd.f32 %v444, %v430
    %v446 = vrot.slane %v445, 4
    %v447 = vadd.f32 %v445, %v446
    %v448 = vrot.slane %v447, 2
    %v449 = vadd.f32 %v447, %v448
    %v450 = vrot.slane %v449, 1
    %v451 = vadd.f32 %v449, %v450
    %v452 = vmul.f32 %v451, 0.0078125
    %v453 = vld [vmem:[%s2] sm:$0x1]
    %v454 = vadd.f32 %v452, 1e-05
    %v455 = vrsqrt.pop %v454
    %v456 = vmul.f32 %v453, %v455
    %v458 = vlaneseq
    %v459 = vshrl.u32 %v458, 7
    %v460 = vsub.s32 0, %v459
    %v461 = vrot.slane %v456, %v460
    %v463 = vmul.f32 %v399, %v461
    %v464 = vmul.f32 %v400, %v461
    %v465 = vmul.f32 %v401, %v461
    %v466 = vmul.f32 %v402, %v461
    %v467 = vmul.f32 %v403, %v461
    %v468 = vmul.f32 %v404, %v461
    %v469 = vmul.f32 %v405, %v461
    %v470 = vmul.f32 %v406, %v461
    %v471 = vmul.f32 %v407, %v461
    %v472 = vmul.f32 %v408, %v461
    %v473 = vmul.f32 %v409, %v461
    %v474 = vmul.f32 %v410, %v461
    %v475 = vmul.f32 %v411, %v461
    %v476 = vmul.f32 %v412, %v461
    %v477 = vmul.f32 %v413, %v461
    %v478 = vmul.f32 %v414, %v461
    %v479 = vld [vmem:[%s3] sm:$0x1]
    %v481 = vlaneseq
    %v482 = vshrl.u32 %v481, 7
    %v483 = vsub.s32 0, %v482
    %v484 = vrot.slane %v479, %v483
    %v486 = vadd.f32 %v463, %v484
    %v487 = vadd.f32 %v464, %v484
    %v488 = vadd.f32 %v465, %v484
    %v489 = vadd.f32 %v466, %v484
    %v490 = vadd.f32 %v467, %v484
    %v491 = vadd.f32 %v468, %v484
    %v492 = vadd.f32 %v469, %v484
    %v493 = vadd.f32 %v470, %v484
    %v494 = vadd.f32 %v471, %v484
    %v495 = vadd.f32 %v472, %v484
    %v496 = vadd.f32 %v473, %v484
    %v497 = vadd.f32 %v474, %v484
    %v498 = vadd.f32 %v475, %v484
    %v499 = vadd.f32 %v476, %v484
    %v500 = vadd.f32 %v477, %v484
    %v501 = vadd.f32 %v478, %v484
    %vm502 = vcmp.gt.f32.partialorder %v486, 0.0
    %vm503 = vcmp.gt.f32.partialorder %v487, 0.0
    %vm504 = vcmp.gt.f32.partialorder %v488, 0.0
    %vm505 = vcmp.gt.f32.partialorder %v489, 0.0
    %vm506 = vcmp.gt.f32.partialorder %v490, 0.0
    %vm507 = vcmp.gt.f32.partialorder %v491, 0.0
    %vm508 = vcmp.gt.f32.partialorder %v492, 0.0
    %vm509 = vcmp.gt.f32.partialorder %v493, 0.0
    %vm510 = vcmp.gt.f32.partialorder %v494, 0.0
    %vm511 = vcmp.gt.f32.partialorder %v495, 0.0
    %vm512 = vcmp.gt.f32.partialorder %v496, 0.0
    %vm513 = vcmp.gt.f32.partialorder %v497, 0.0
    %vm514 = vcmp.gt.f32.partialorder %v498, 0.0
    %vm515 = vcmp.gt.f32.partialorder %v499, 0.0
    %vm516 = vcmp.gt.f32.partialorder %v500, 0.0
    %vm517 = vcmp.gt.f32.partialorder %v501, 0.0
    %v518 = vmul.f32 %v486, 0.2
    %v519 = vmul.f32 %v487, 0.2
    %v520 = vmul.f32 %v488, 0.2
    %v521 = vmul.f32 %v489, 0.2
    %v522 = vmul.f32 %v490, 0.2
    %v523 = vmul.f32 %v491, 0.2
    %v524 = vmul.f32 %v492, 0.2
    %v525 = vmul.f32 %v493, 0.2
    %v526 = vmul.f32 %v494, 0.2
    %v527 = vmul.f32 %v495, 0.2
    %v528 = vmul.f32 %v496, 0.2
    %v529 = vmul.f32 %v497, 0.2
    %v530 = vmul.f32 %v498, 0.2
    %v531 = vmul.f32 %v499, 0.2
    %v532 = vmul.f32 %v500, 0.2
    %v533 = vmul.f32 %v501, 0.2
    %v534 = vsel %vm502, %v486, %v518
    %v535 = vsel %vm503, %v487, %v519
    %v536 = vsel %vm504, %v488, %v520
    %v537 = vsel %vm505, %v489, %v521
    %v538 = vsel %vm506, %v490, %v522
    %v539 = vsel %vm507, %v491, %v523
    %v540 = vsel %vm508, %v492, %v524
    %v541 = vsel %vm509, %v493, %v525
    %v542 = vsel %vm510, %v494, %v526
    %v543 = vsel %vm511, %v495, %v527
    %v544 = vsel %vm512, %v496, %v528
    %v545 = vsel %vm513, %v497, %v529
    %v546 = vsel %vm514, %v498, %v530
    %v547 = vsel %vm515, %v499, %v531
    %v548 = vsel %vm516, %v500, %v532
    %v549 = vsel %vm517, %v501, %v533
    %550 = vst [vmem:[%s4] sm:$0xff] %v534
    %551 = vst [vmem:[%s4 + $0x8] sm:$0xff] %v535
    %552 = vst [vmem:[%s4 + $0x10] sm:$0xff] %v536
    %553 = vst [vmem:[%s4 + $0x18] sm:$0xff] %v537
    %554 = vst [vmem:[%s4 + $0x20] sm:$0xff] %v538
    %555 = vst [vmem:[%s4 + $0x28] sm:$0xff] %v539
    %556 = vst [vmem:[%s4 + $0x30] sm:$0xff] %v540
    %557 = vst [vmem:[%s4 + $0x38] sm:$0xff] %v541
    %558 = vst [vmem:[%s4 + $0x40] sm:$0xff] %v542
    %559 = vst [vmem:[%s4 + $0x48] sm:$0xff] %v543
    %560 = vst [vmem:[%s4 + $0x50] sm:$0xff] %v544
    %561 = vst [vmem:[%s4 + $0x58] sm:$0xff] %v545
    %562 = vst [vmem:[%s4 + $0x60] sm:$0xff] %v546
    %563 = vst [vmem:[%s4 + $0x68] sm:$0xff] %v547
    %564 = vst [vmem:[%s4 + $0x70] sm:$0xff] %v548
    %565 = vst [vmem:[%s4 + $0x78] sm:$0xff] %v549
  $region21: #{discriminator_forward.7} parent=0 // pred_fallthru
    _
  // Predicated region
  $region22: #{discriminator_forward.7} parent=0 // pred_check
    _
  $region23: #{discriminator_forward.7} parent=0 // pred_check_branch
    %567 = sbr.rel (0) target = $region25
  $region24: #{discriminator_forward.7} parent=0 // pred_region
    _
  $region25: #{discriminator_forward.7} parent=0 // pred_fallthru
    _
  // Predicated region
  $region26: #{discriminator_forward.7} parent=0 // pred_check
    _
  $region27: #{discriminator_forward.7} parent=0 // pred_check_branch
    %569 = sbr.rel (0) target = $region29
  $region28: #{discriminator_forward.7} parent=0 // pred_region
    _
  $region29: #{discriminator_forward.7} parent=0 // pred_fallthru
    _

// kernel: discriminator_forward.8
$region0: #{discriminator_forward.8}
  #allocation0 [shape = 'u32[]', space=smem, size = 0x4, offset = 0x4, fixed_abs, tag = 'smem constant byte address 0x4 - core index']
  #allocation1 [shape = 'u32[144,128]{1,0:T(1,128)}', space=vmem, size = 0x12000, scoped, tag = 'internal scratch']
  %s0 = inlined_call_operand.vmem [shape: bf16[32,512], index: 0, kind: input, shape index: {}]
  %s1 = inlined_call_operand.vmem [shape: bf16[512,128], index: 1, kind: input, shape index: {}]
  %s2 = inlined_call_operand.vmem [shape: f32[1,128], index: 2, kind: input, shape index: {}]
  %s3 = inlined_call_operand.vmem [shape: f32[1,128], index: 3, kind: input, shape index: {}]
  %s4 = inlined_call_operand.vmem [shape: f32[32,128], index: 4, kind: output, shape index: {}]
  %s5 = sld [smem:[#allocation0]]
  $region30: #{discriminator_forward.8} parent=0
    _
  %s7 = ssub.s32 1, %s5
  %s8 = scalar_select 0, %s7, %s5
  // Predicated region
  $region2: #{discriminator_forward.8} parent=0 // pred_check
    _
  $region3: #{discriminator_forward.8} parent=0 // pred_check_branch
    %10 = sbr.rel (0) target = $region5
  $region4: #{discriminator_forward.8} parent=0 // pred_region
    _
  $region5: #{discriminator_forward.8} parent=0 // pred_fallthru
    _
  // Predicated region
  $region6: #{discriminator_forward.8} parent=0 // pred_check
    _
  $region7: #{discriminator_forward.8} parent=0 // pred_check_branch
    %12 = sbr.rel (0) target = $region9
  $region8: #{discriminator_forward.8} parent=0 // pred_region
    _
  $region9: #{discriminator_forward.8} parent=0 // pred_fallthru
    _
  // Predicated region
  $region10: #{discriminator_forward.8} parent=0 // pred_check
    _
  $region11: #{discriminator_forward.8} parent=0 // pred_check_branch
    %14 = sbr.rel (0) target = $region13
  $region12: #{discriminator_forward.8} parent=0 // pred_region
    _
  $region13: #{discriminator_forward.8} parent=0 // pred_fallthru
    _
  // Predicated region
  $region14: #{discriminator_forward.8} parent=0 // pred_check
    _
  $region15: #{discriminator_forward.8} parent=0 // pred_check_branch
    %16 = sbr.rel (0) target = $region17
  $region16: #{discriminator_forward.8} parent=0 // pred_region
    _
  $region17: #{discriminator_forward.8} parent=0 // pred_fallthru
    _
  %v18 = vld [vmem:[%s0] sm:$0xff]
  %v19 = vld [vmem:[%s0 + $0x8] sm:$0xff]
  %v20 = vld [vmem:[%s0 + $0x10] sm:$0xff]
  %v21 = vld [vmem:[%s0 + $0x18] sm:$0xff]
  %v22 = vld [vmem:[%s0 + $0x20] sm:$0xff]
  %v23 = vld [vmem:[%s0 + $0x28] sm:$0xff]
  %v24 = vld [vmem:[%s0 + $0x30] sm:$0xff]
  %v25 = vld [vmem:[%s0 + $0x38] sm:$0xff]
  %v26 = vld [vmem:[%s1] sm:$0xf]
  %v27 = vld [vmem:[%s1 + $0x4] sm:$0xf]
  %v28 = vld [vmem:[%s1 + $0x8] sm:$0xf]
  %v29 = vld [vmem:[%s1 + $0xc] sm:$0xf]
  %v30 = vld [vmem:[%s1 + $0x10] sm:$0xf]
  %v31 = vld [vmem:[%s1 + $0x14] sm:$0xf]
  %v32 = vld [vmem:[%s1 + $0x18] sm:$0xf]
  %v33 = vld [vmem:[%s1 + $0x1c] sm:$0xf]
  %v34 = vld [vmem:[%s1 + $0x20] sm:$0xf]
  %v35 = vld [vmem:[%s1 + $0x24] sm:$0xf]
  %v36 = vld [vmem:[%s1 + $0x28] sm:$0xf]
  %v37 = vld [vmem:[%s1 + $0x2c] sm:$0xf]
  %v38 = vld [vmem:[%s1 + $0x30] sm:$0xf]
  %v39 = vld [vmem:[%s1 + $0x34] sm:$0xf]
  %v40 = vld [vmem:[%s1 + $0x38] sm:$0xf]
  %v41 = vld [vmem:[%s1 + $0x3c] sm:$0xf]
  %v42 = vld [vmem:[%s1 + $0x40] sm:$0xf]
  %v43 = vld [vmem:[%s1 + $0x44] sm:$0xf]
  %v44 = vld [vmem:[%s1 + $0x48] sm:$0xf]
  %v45 = vld [vmem:[%s1 + $0x4c] sm:$0xf]
  %v46 = vld [vmem:[%s1 + $0x50] sm:$0xf]
  %v47 = vld [vmem:[%s1 + $0x54] sm:$0xf]
  %v48 = vld [vmem:[%s1 + $0x58] sm:$0xf]
  %v49 = vld [vmem:[%s1 + $0x5c] sm:$0xf]
  %v50 = vld [vmem:[%s1 + $0x60] sm:$0xf]
  %v51 = vld [vmem:[%s1 + $0x64] sm:$0xf]
  %v52 = vld [vmem:[%s1 + $0x68] sm:$0xf]
  %v53 = vld [vmem:[%s1 + $0x6c] sm:$0xf]
  %v54 = vld [vmem:[%s1 + $0x70] sm:$0xf]
  %v55 = vld [vmem:[%s1 + $0x74] sm:$0xf]
  %v56 = vld [vmem:[%s1 + $0x78] sm:$0xf]
  %v57 = vld [vmem:[%s1 + $0x7c] sm:$0xf]
  %v58 = vld [vmem:[%s1 + $0x80] sm:$0xf]
  %v59 = vld [vmem:[%s1 + $0x84] sm:$0xf]
  %v60 = vld [vmem:[%s1 + $0x88] sm:$0xf]
  %v61 = vld [vmem:[%s1 + $0x8c] sm:$0xf]
  %v62 = vld [vmem:[%s1 + $0x90] sm:$0xf]
  %v63 = vld [vmem:[%s1 + $0x94] sm:$0xf]
  %v64 = vld [vmem:[%s1 + $0x98] sm:$0xf]
  %v65 = vld [vmem:[%s1 + $0x9c] sm:$0xf]
  %v66 = vld [vmem:[%s1 + $0xa0] sm:$0xf]
  %v67 = vld [vmem:[%s1 + $0xa4] sm:$0xf]
  %v68 = vld [vmem:[%s1 + $0xa8] sm:$0xf]
  %v69 = vld [vmem:[%s1 + $0xac] sm:$0xf]
  %v70 = vld [vmem:[%s1 + $0xb0] sm:$0xf]
  %v71 = vld [vmem:[%s1 + $0xb4] sm:$0xf]
  %v72 = vld [vmem:[%s1 + $0xb8] sm:$0xf]
  %v73 = vld [vmem:[%s1 + $0xbc] sm:$0xf]
  %v74 = vld [vmem:[%s1 + $0xc0] sm:$0xf]
  %v75 = vld [vmem:[%s1 + $0xc4] sm:$0xf]
  %v76 = vld [vmem:[%s1 + $0xc8] sm:$0xf]
  %v77 = vld [vmem:[%s1 + $0xcc] sm:$0xf]
  %v78 = vld [vmem:[%s1 + $0xd0] sm:$0xf]
  %v79 = vld [vmem:[%s1 + $0xd4] sm:$0xf]
  %v80 = vld [vmem:[%s1 + $0xd8] sm:$0xf]
  %v81 = vld [vmem:[%s1 + $0xdc] sm:$0xf]
  %v82 = vld [vmem:[%s1 + $0xe0] sm:$0xf]
  %v83 = vld [vmem:[%s1 + $0xe4] sm:$0xf]
  %v84 = vld [vmem:[%s1 + $0xe8] sm:$0xf]
  %v85 = vld [vmem:[%s1 + $0xec] sm:$0xf]
  %v86 = vld [vmem:[%s1 + $0xf0] sm:$0xf]
  %v87 = vld [vmem:[%s1 + $0xf4] sm:$0xf]
  %v88 = vld [vmem:[%s1 + $0xf8] sm:$0xf]
  %v89 = vld [vmem:[%s1 + $0xfc] sm:$0xf]
  %v98 = vunpack.c.l.b16 %v18
  %v99 = vunpack.c.h.b16 %v18
  %v100 = vunpack.c.l.b16 %v19
  %v101 = vunpack.c.h.b16 %v19
  %v102 = vunpack.c.l.b16 %v20
  %v103 = vunpack.c.h.b16 %v20
  %v104 = vunpack.c.l.b16 %v21
  %v105 = vunpack.c.h.b16 %v21
  %v106 = vunpack.c.l.b16 %v22
  %v107 = vunpack.c.h.b16 %v22
  %v108 = vunpack.c.l.b16 %v23
  %v109 = vunpack.c.h.b16 %v23
  %v110 = vunpack.c.l.b16 %v24
  %v111 = vunpack.c.h.b16 %v24
  %v112 = vunpack.c.l.b16 %v25
  %v113 = vunpack.c.h.b16 %v25
  %v114 = vpack.c.b16 %v102, %v98
  %v115 = vpack.c.b16 %v103, %v99
  %v116 = vpack.c.b16 %v104, %v100
  %v117 = vpack.c.b16 %v105, %v101
  %v118 = vpack.c.b16 %v110, %v106
  %v119 = vpack.c.b16 %v111, %v107
  %v120 = vpack.c.b16 %v112, %v108
  %v121 = vpack.c.b16 %v113, %v109
  %v194 = vunpack.c.l.b16 %v26
  %v195 = vunpack.c.l.b16 %v27
  %v196 = vunpack.c.l.b16 %v28
  %v197 = vunpack.c.l.b16 %v29
  %v198 = vunpack.c.l.b16 %v30
  %v199 = vunpack.c.l.b16 %v31
  %v200 = vunpack.c.l.b16 %v32
  %v201 = vunpack.c.l.b16 %v33
  %v202 = vunpack.c.l.b16 %v34
  %v203 = vunpack.c.l.b16 %v35
  %v204 = vunpack.c.l.b16 %v36
  %v205 = vunpack.c.l.b16 %v37
  %v206 = vunpack.c.l.b16 %v38
  %v207 = vunpack.c.l.b16 %v39
  %v208 = vunpack.c.l.b16 %v40
  %v209 = vunpack.c.l.b16 %v41
  %v210 = vunpack.c.l.b16 %v42
  %v211 = vunpack.c.l.b16 %v43
  %v212 = vunpack.c.l.b16 %v44
  %v213 = vunpack.c.l.b16 %v45
  %v214 = vunpack.c.l.b16 %v46
  %v215 = vunpack.c.l.b16 %v47
  %v216 = vunpack.c.l.b16 %v48
  %v217 = vunpack.c.l.b16 %v49
  %v218 = vunpack.c.l.b16 %v50
  %v219 = vunpack.c.l.b16 %v51
  %v220 = vunpack.c.l.b16 %v52
  %v221 = vunpack.c.l.b16 %v53
  %v222 = vunpack.c.l.b16 %v54
  %v223 = vunpack.c.l.b16 %v55
  %v224 = vunpack.c.l.b16 %v56
  %v225 = vunpack.c.l.b16 %v57
  %v226 = vunpack.c.l.b16 %v58
  %v227 = vunpack.c.l.b16 %v59
  %v228 = vunpack.c.l.b16 %v60
  %v229 = vunpack.c.l.b16 %v61
  %v230 = vunpack.c.l.b16 %v62
  %v231 = vunpack.c.l.b16 %v63
  %v232 = vunpack.c.l.b16 %v64
  %v233 = vunpack.c.l.b16 %v65
  %v234 = vunpack.c.l.b16 %v66
  %v235 = vunpack.c.l.b16 %v67
  %v236 = vunpack.c.l.b16 %v68
  %v237 = vunpack.c.l.b16 %v69
  %v238 = vunpack.c.l.b16 %v70
  %v239 = vunpack.c.l.b16 %v71
  %v240 = vunpack.c.l.b16 %v72
  %v241 = vunpack.c.l.b16 %v73
  %v242 = vunpack.c.l.b16 %v74
  %v243 = vunpack.c.l.b16 %v75
  %v244 = vunpack.c.l.b16 %v76
  %v245 = vunpack.c.l.b16 %v77
  %v246 = vunpack.c.l.b16 %v78
  %v247 = vunpack.c.l.b16 %v79
  %v248 = vunpack.c.l.b16 %v80
  %v249 = vunpack.c.l.b16 %v81
  %v250 = vunpack.c.l.b16 %v82
  %v251 = vunpack.c.l.b16 %v83
  %v252 = vunpack.c.l.b16 %v84
  %v253 = vunpack.c.l.b16 %v85
  %v254 = vunpack.c.l.b16 %v86
  %v255 = vunpack.c.l.b16 %v87
  %v256 = vunpack.c.l.b16 %v88
  %v257 = vunpack.c.l.b16 %v89
  %v258 = vpack.c.b16 %v195, %v194
  %v259 = vpack.c.b16 %v197, %v196
  %v260 = vpack.c.b16 %v199, %v198
  %v261 = vpack.c.b16 %v201, %v200
  %v262 = vpack.c.b16 %v203, %v202
  %v263 = vpack.c.b16 %v205, %v204
  %v264 = vpack.c.b16 %v207, %v206
  %v265 = vpack.c.b16 %v209, %v208
  %v266 = vpack.c.b16 %v211, %v210
  %v267 = vpack.c.b16 %v213, %v212
  %v268 = vpack.c.b16 %v215, %v214
  %v269 = vpack.c.b16 %v217, %v216
  %v270 = vpack.c.b16 %v219, %v218
  %v271 = vpack.c.b16 %v221, %v220
  %v272 = vpack.c.b16 %v223, %v222
  %v273 = vpack.c.b16 %v225, %v224
  %v274 = vpack.c.b16 %v227, %v226
  %v275 = vpack.c.b16 %v229, %v228
  %v276 = vpack.c.b16 %v231, %v230
  %v277 = vpack.c.b16 %v233, %v232
  %v278 = vpack.c.b16 %v235, %v234
  %v279 = vpack.c.b16 %v237, %v236
  %v280 = vpack.c.b16 %v239, %v238
  %v281 = vpack.c.b16 %v241, %v240
  %v282 = vpack.c.b16 %v243, %v242
  %v283 = vpack.c.b16 %v245, %v244
  %v284 = vpack.c.b16 %v247, %v246
  %v285 = vpack.c.b16 %v249, %v248
  %v286 = vpack.c.b16 %v251, %v250
  %v287 = vpack.c.b16 %v253, %v252
  %v288 = vpack.c.b16 %v255, %v254
  %v289 = vpack.c.b16 %v257, %v256
  %322 = vmatprep.subr.bf16.mxu0 0
  %323 = vmatpush1.bf16.msra.mxu0 %v265
  %324 = vmatprep.subr.bf16.mxu0 0
  %325 = vmatpush1.bf16.msra.mxu0 %v264
  %326 = vmatprep.subr.bf16.mxu0 0
  %327 = vmatpush1.bf16.msra.mxu0 %v263
  %328 = vmatprep.subr.bf16.mxu0 0
  %329 = vmatpush1.bf16.msra.mxu0 %v262
  %330 = vmatprep.subr.bf16.mxu0 0
  %331 = vmatpush1.bf16.msra.mxu0 %v261
  %332 = vmatprep.subr.bf16.mxu0 0
  %333 = vmatpush1.bf16.msra.mxu0 %v260
  %334 = vmatprep.subr.bf16.mxu0 0
  %335 = vmatpush1.bf16.msra.mxu0 %v259
  %336 = vmatprep.subr.bf16.mxu0 0
  %337 = vmatpush1.bf16.msra.mxu0 %v258
  %338 = vmatprep.subr.bf16.mxu0 0
  %339 = vmatpush2.bf16.msra.mxu0 %v273
  %340 = vmatprep.subr.bf16.mxu0 0
  %341 = vmatpush2.bf16.msra.mxu0 %v272
  %342 = vmatprep.subr.bf16.mxu0 0
  %343 = vmatpush2.bf16.msra.mxu0 %v271
  %344 = vmatprep.subr.bf16.mxu0 0
  %345 = vmatpush2.bf16.msra.mxu0 %v270
  %346 = vmatprep.subr.bf16.mxu0 0
  %347 = vmatpush2.bf16.msra.mxu0 %v269
  %348 = vmatprep.subr.bf16.mxu0 0
  %349 = vmatpush2.bf16.msra.mxu0 %v268
  %350 = vmatprep.subr.bf16.mxu0 0
  %351 = vmatpush2.bf16.msra.mxu0 %v267
  %352 = vmatprep.subr.bf16.mxu0 0
  %353 = vmatpush2.bf16.msra.mxu0 %v266
  %354 = vmatprep.mubr.bf16.mxu0 %v115
  %355 = vmatmul.mubr.bf16.gmra.mxu0 %v114
  %v356 = vpop.f32.mrf.mxu0
  %v357 = vadd.f32 0.0, %v356
  %v358 = vpop.f32.mrf.mxu0
  %v359 = vpop.f32.mrf.mxu0
  %v360 = vadd.f32 0.0, %v359
  %v361 = vpop.f32.mrf.mxu0
  %362 = vmatprep.mubr.bf16.mxu0 %v119
  %363 = vmatmul.mubr.bf16.gmra.mxu0 %v118
  %v364 = vpop.f32.mrf.mxu0
  %v365 = vadd.f32 0.0, %v364
  %v366 = vpop.f32.mrf.mxu0
  %v367 = vpop.f32.mrf.mxu0
  %v368 = vadd.f32 0.0, %v367
  %v369 = vpop.f32.mrf.mxu0
  %370 = vdwg.mxu0
  %371 = vmatprep.subr.bf16.mxu0 0
  %372 = vmatpush1.bf16.msra.mxu0 %v281
  %373 = vmatprep.subr.bf16.mxu0 0
  %374 = vmatpush1.bf16.msra.mxu0 %v280
  %375 = vmatprep.subr.bf16.mxu0 0
  %376 = vmatpush1.bf16.msra.mxu0 %v279
  %377 = vmatprep.subr.bf16.mxu0 0
  %378 = vmatpush1.bf16.msra.mxu0 %v278
  %379 = vmatprep.subr.bf16.mxu0 0
  %380 = vmatpush1.bf16.msra.mxu0 %v277
  %381 = vmatprep.subr.bf16.mxu0 0
  %382 = vmatpush1.bf16.msra.mxu0 %v276
  %383 = vmatprep.subr.bf16.mxu0 0
  %384 = vmatpush1.bf16.msra.mxu0 %v275
  %385 = vmatprep.subr.bf16.mxu0 0
  %386 = vmatpush1.bf16.msra.mxu0 %v274
  %387 = vmatprep.subr.bf16.mxu0 0
  %388 = vmatpush2.bf16.msra.mxu0 %v289
  %389 = vmatprep.subr.bf16.mxu0 0
  %390 = vmatpush2.bf16.msra.mxu0 %v288
  %391 = vmatprep.subr.bf16.mxu0 0
  %392 = vmatpush2.bf16.msra.mxu0 %v287
  %393 = vmatprep.subr.bf16.mxu0 0
  %394 = vmatpush2.bf16.msra.mxu0 %v286
  %395 = vmatprep.subr.bf16.mxu0 0
  %396 = vmatpush2.bf16.msra.mxu0 %v285
  %397 = vmatprep.subr.bf16.mxu0 0
  %398 = vmatpush2.bf16.msra.mxu0 %v284
  %399 = vmatprep.subr.bf16.mxu0 0
  %400 = vmatpush2.bf16.msra.mxu0 %v283
  %401 = vmatprep.subr.bf16.mxu0 0
  %402 = vmatpush2.bf16.msra.mxu0 %v282
  %403 = vmatprep.mubr.bf16.mxu0 %v117
  %404 = vmatmul.mubr.bf16.gmra.mxu0 %v116
  %v405 = vpop.f32.mrf.mxu0
  %v406 = vadd.f32 %v357, %v405
  %v407 = vpop.f32.mrf.mxu0
  %v408 = vpop.f32.mrf.mxu0
  %v409 = vadd.f32 %v360, %v408
  %v410 = vpop.f32.mrf.mxu0
  %411 = vmatprep.mubr.bf16.mxu0 %v121
  %412 = vmatmul.mubr.bf16.gmra.mxu0 %v120
  %v413 = vpop.f32.mrf.mxu0
  %v414 = vadd.f32 %v365, %v413
  %v415 = vpop.f32.mrf.mxu0
  %v416 = vpop.f32.mrf.mxu0
  %v417 = vadd.f32 %v368, %v416
  %v418 = vpop.f32.mrf.mxu0
  %419 = vdwg.mxu0
  %s420 = smul.u32 0, 32
  %s421 = scalar_lea.vmem %s4, %s420
  %422 = vst [vmem:[%s421] sm:$0xff] %v406
  %423 = vst [vmem:[%s421 + $0x8] sm:$0xff] %v409
  %424 = vst [vmem:[%s421 + $0x10] sm:$0xff] %v414
  %425 = vst [vmem:[%s421 + $0x18] sm:$0xff] %v417
  %p426 = scmp.eq.s32.totalorder 0, 0
  // Predicated region
  $region18: #{discriminator_forward.8} parent=0 // pred_check
    %p427 = pneg %p426
  $region19: #{discriminator_forward.8} parent=0 // pred_check_branch
    %429 = sbr.rel (%p427) target = $region21
  $region20: #{discriminator_forward.8} parent=0 // pred_region
    %v430 = vld [vmem:[%s4] sm:$0xff]
    %v431 = vld [vmem:[%s4 + $0x8] sm:$0xff]
    %v432 = vld [vmem:[%s4 + $0x10] sm:$0xff]
    %v433 = vld [vmem:[%s4 + $0x18] sm:$0xff]
    %v434 = vadd.f32 %v430, %v431
    %v435 = vadd.f32 %v434, %v432
    %v436 = vadd.f32 %v435, %v433
    %v437 = vrot.slane %v436, 4
    %v438 = vadd.f32 %v436, %v437
    %v439 = vrot.slane %v438, 2
    %v440 = vadd.f32 %v438, %v439
    %v441 = vrot.slane %v440, 1
    %v442 = vadd.f32 %v440, %v441
    %v443 = vmul.f32 %v442, 0.03125
    %v444 = vsub.f32 %v430, %v443
    %v445 = vsub.f32 %v431, %v443
    %v446 = vsub.f32 %v432, %v443
    %v447 = vsub.f32 %v433, %v443
    %v448 = vmul.f32 %v444, %v444
    %v449 = vmul.f32 %v445, %v445
    %v450 = vmul.f32 %v446, %v446
    %v451 = vmul.f32 %v447, %v447
    %v452 = vadd.f32 %v448, %v449
    %v453 = vadd.f32 %v452, %v450
    %v454 = vadd.f32 %v453, %v451
    %v455 = vrot.slane %v454, 4
    %v456 = vadd.f32 %v454, %v455
    %v457 = vrot.slane %v456, 2
    %v458 = vadd.f32 %v456, %v457
    %v459 = vrot.slane %v458, 1
    %v460 = vadd.f32 %v458, %v459
    %v461 = vmul.f32 %v460, 0.03125
    %v462 = vld [vmem:[%s2] sm:$0x1]
    %v463 = vadd.f32 %v461, 1e-05
    %v464 = vrsqrt.pop %v463
    %v465 = vmul.f32 %v462, %v464
    %v467 = vlaneseq
    %v468 = vshrl.u32 %v467, 7
    %v469 = vsub.s32 0, %v468
    %v470 = vrot.slane %v465, %v469
    %v472 = vmul.f32 %v444, %v470
    %v473 = vmul.f32 %v445, %v470
    %v474 = vmul.f32 %v446, %v470
    %v475 = vmul.f32 %v447, %v470
    %v476 = vld [vmem:[%s3] sm:$0x1]
    %v478 = vlaneseq
    %v479 = vshrl.u32 %v478, 7
    %v480 = vsub.s32 0, %v479
    %v481 = vrot.slane %v476, %v480
    %v483 = vadd.f32 %v472, %v481
    %v484 = vadd.f32 %v473, %v481
    %v485 = vadd.f32 %v474, %v481
    %v486 = vadd.f32 %v475, %v481
    %vm487 = vcmp.gt.f32.partialorder %v483, 0.0
    %vm488 = vcmp.gt.f32.partialorder %v484, 0.0
    %vm489 = vcmp.gt.f32.partialorder %v485, 0.0
    %vm490 = vcmp.gt.f32.partialorder %v486, 0.0
    %v491 = vmul.f32 %v483, 0.2
    %v492 = vmul.f32 %v484, 0.2
    %v493 = vmul.f32 %v485, 0.2
    %v494 = vmul.f32 %v486, 0.2
    %v495 = vsel %vm487, %v483, %v491
    %v496 = vsel %vm488, %v484, %v492
    %v497 = vsel %vm489, %v485, %v493
    %v498 = vsel %vm490, %v486, %v494
    %499 = vst [vmem:[%s4] sm:$0xff] %v495
    %500 = vst [vmem:[%s4 + $0x8] sm:$0xff] %v496
    %501 = vst [vmem:[%s4 + $0x10] sm:$0xff] %v497
    %502 = vst [vmem:[%s4 + $0x18] sm:$0xff] %v498
  $region21: #{discriminator_forward.8} parent=0 // pred_fallthru
    _
  // Predicated region
  $region22: #{discriminator_forward.8} parent=0 // pred_check
    _
  $region23: #{discriminator_forward.8} parent=0 // pred_check_branch
    %504 = sbr.rel (0) target = $region25
  $region24: #{discriminator_forward.8} parent=0 // pred_region
    _
  $region25: #{discriminator_forward.8} parent=0 // pred_fallthru
    _
  // Predicated region
  $region26: #{discriminator_forward.8} parent=0 // pred_check
    _
  $region27: #{discriminator_forward.8} parent=0 // pred_check_branch
    %506 = sbr.rel (0) target = $region29
  $region28: #{discriminator_forward.8} parent=0 // pred_region
    _
  $region29: #{discriminator_forward.8} parent=0 // pred_fallthru
    _

// kernel: discriminator_forward.9
$region0: #{discriminator_forward.9}
  #allocation0 [shape = 'u32[]', space=smem, size = 0x4, offset = 0x4, fixed_abs, tag = 'smem constant byte address 0x4 - core index']
  #allocation1 [shape = 'u32[144,128]{1,0:T(1,128)}', space=vmem, size = 0x12000, scoped, tag = 'internal scratch']
  %s0 = inlined_call_operand.vmem [shape: bf16[2,1024], index: 0, kind: input, shape index: {}]
  %s1 = inlined_call_operand.vmem [shape: bf16[1024,128], index: 1, kind: input, shape index: {}]
  %s2 = inlined_call_operand.vmem [shape: f32[2,128], index: 2, kind: output, shape index: {}]
  %s3 = sld [smem:[#allocation0]]
  $region18: #{discriminator_forward.9} parent=0
    _
  %s5 = ssub.s32 1, %s3
  %s6 = scalar_select 0, %s5, %s3
  // Predicated region
  $region2: #{discriminator_forward.9} parent=0 // pred_check
    _
  $region3: #{discriminator_forward.9} parent=0 // pred_check_branch
    %8 = sbr.rel (0) target = $region5
  $region4: #{discriminator_forward.9} parent=0 // pred_region
    _
  $region5: #{discriminator_forward.9} parent=0 // pred_fallthru
    _
  // Predicated region
  $region6: #{discriminator_forward.9} parent=0 // pred_check
    _
  $region7: #{discriminator_forward.9} parent=0 // pred_check_branch
    %10 = sbr.rel (0) target = $region9
  $region8: #{discriminator_forward.9} parent=0 // pred_region
    _
  $region9: #{discriminator_forward.9} parent=0 // pred_fallthru
    _
  %v12 = vld [vmem:[%s0] sm:$0xff]
  %v13 = vld [vmem:[%s1] sm:$0xf]
  %v14 = vld [vmem:[%s1 + $0x4] sm:$0xf]
  %v15 = vld [vmem:[%s1 + $0x8] sm:$0xf]
  %v16 = vld [vmem:[%s1 + $0xc] sm:$0xf]
  %v17 = vld [vmem:[%s1 + $0x10] sm:$0xf]
  %v18 = vld [vmem:[%s1 + $0x14] sm:$0xf]
  %v19 = vld [vmem:[%s1 + $0x18] sm:$0xf]
  %v20 = vld [vmem:[%s1 + $0x1c] sm:$0xf]
  %v21 = vld [vmem:[%s1 + $0x20] sm:$0xf]
  %v22 = vld [vmem:[%s1 + $0x24] sm:$0xf]
  %v23 = vld [vmem:[%s1 + $0x28] sm:$0xf]
  %v24 = vld [vmem:[%s1 + $0x2c] sm:$0xf]
  %v25 = vld [vmem:[%s1 + $0x30] sm:$0xf]
  %v26 = vld [vmem:[%s1 + $0x34] sm:$0xf]
  %v27 = vld [vmem:[%s1 + $0x38] sm:$0xf]
  %v28 = vld [vmem:[%s1 + $0x3c] sm:$0xf]
  %v29 = vld [vmem:[%s1 + $0x40] sm:$0xf]
  %v30 = vld [vmem:[%s1 + $0x44] sm:$0xf]
  %v31 = vld [vmem:[%s1 + $0x48] sm:$0xf]
  %v32 = vld [vmem:[%s1 + $0x4c] sm:$0xf]
  %v33 = vld [vmem:[%s1 + $0x50] sm:$0xf]
  %v34 = vld [vmem:[%s1 + $0x54] sm:$0xf]
  %v35 = vld [vmem:[%s1 + $0x58] sm:$0xf]
  %v36 = vld [vmem:[%s1 + $0x5c] sm:$0xf]
  %v37 = vld [vmem:[%s1 + $0x60] sm:$0xf]
  %v38 = vld [vmem:[%s1 + $0x64] sm:$0xf]
  %v39 = vld [vmem:[%s1 + $0x68] sm:$0xf]
  %v40 = vld [vmem:[%s1 + $0x6c] sm:$0xf]
  %v41 = vld [vmem:[%s1 + $0x70] sm:$0xf]
  %v42 = vld [vmem:[%s1 + $0x74] sm:$0xf]
  %v43 = vld [vmem:[%s1 + $0x78] sm:$0xf]
  %v44 = vld [vmem:[%s1 + $0x7c] sm:$0xf]
  %v45 = vld [vmem:[%s1 + $0x80] sm:$0xf]
  %v46 = vld [vmem:[%s1 + $0x84] sm:$0xf]
  %v47 = vld [vmem:[%s1 + $0x88] sm:$0xf]
  %v48 = vld [vmem:[%s1 + $0x8c] sm:$0xf]
  %v49 = vld [vmem:[%s1 + $0x90] sm:$0xf]
  %v50 = vld [vmem:[%s1 + $0x94] sm:$0xf]
  %v51 = vld [vmem:[%s1 + $0x98] sm:$0xf]
  %v52 = vld [vmem:[%s1 + $0x9c] sm:$0xf]
  %v53 = vld [vmem:[%s1 + $0xa0] sm:$0xf]
  %v54 = vld [vmem:[%s1 + $0xa4] sm:$0xf]
  %v55 = vld [vmem:[%s1 + $0xa8] sm:$0xf]
  %v56 = vld [vmem:[%s1 + $0xac] sm:$0xf]
  %v57 = vld [vmem:[%s1 + $0xb0] sm:$0xf]
  %v58 = vld [vmem:[%s1 + $0xb4] sm:$0xf]
  %v59 = vld [vmem:[%s1 + $0xb8] sm:$0xf]
  %v60 = vld [vmem:[%s1 + $0xbc] sm:$0xf]
  %v61 = vld [vmem:[%s1 + $0xc0] sm:$0xf]
  %v62 = vld [vmem:[%s1 + $0xc4] sm:$0xf]
  %v63 = vld [vmem:[%s1 + $0xc8] sm:$0xf]
  %v64 = vld [vmem:[%s1 + $0xcc] sm:$0xf]
  %v65 = vld [vmem:[%s1 + $0xd0] sm:$0xf]
  %v66 = vld [vmem:[%s1 + $0xd4] sm:$0xf]
  %v67 = vld [vmem:[%s1 + $0xd8] sm:$0xf]
  %v68 = vld [vmem:[%s1 + $0xdc] sm:$0xf]
  %v69 = vld [vmem:[%s1 + $0xe0] sm:$0xf]
  %v70 = vld [vmem:[%s1 + $0xe4] sm:$0xf]
  %v71 = vld [vmem:[%s1 + $0xe8] sm:$0xf]
  %v72 = vld [vmem:[%s1 + $0xec] sm:$0xf]
  %v73 = vld [vmem:[%s1 + $0xf0] sm:$0xf]
  %v74 = vld [vmem:[%s1 + $0xf4] sm:$0xf]
  %v75 = vld [vmem:[%s1 + $0xf8] sm:$0xf]
  %v76 = vld [vmem:[%s1 + $0xfc] sm:$0xf]
  %v77 = vld [vmem:[%s1 + $0x100] sm:$0xf]
  %v78 = vld [vmem:[%s1 + $0x104] sm:$0xf]
  %v79 = vld [vmem:[%s1 + $0x108] sm:$0xf]
  %v80 = vld [vmem:[%s1 + $0x10c] sm:$0xf]
  %v81 = vld [vmem:[%s1 + $0x110] sm:$0xf]
  %v82 = vld [vmem:[%s1 + $0x114] sm:$0xf]
  %v83 = vld [vmem:[%s1 + $0x118] sm:$0xf]
  %v84 = vld [vmem:[%s1 + $0x11c] sm:$0xf]
  %v85 = vld [vmem:[%s1 + $0x120] sm:$0xf]
  %v86 = vld [vmem:[%s1 + $0x124] sm:$0xf]
  %v87 = vld [vmem:[%s1 + $0x128] sm:$0xf]
  %v88 = vld [vmem:[%s1 + $0x12c] sm:$0xf]
  %v89 = vld [vmem:[%s1 + $0x130] sm:$0xf]
  %v90 = vld [vmem:[%s1 + $0x134] sm:$0xf]
  %v91 = vld [vmem:[%s1 + $0x138] sm:$0xf]
  %v92 = vld [vmem:[%s1 + $0x13c] sm:$0xf]
  %v93 = vld [vmem:[%s1 + $0x140] sm:$0xf]
  %v94 = vld [vmem:[%s1 + $0x144] sm:$0xf]
  %v95 = vld [vmem:[%s1 + $0x148] sm:$0xf]
  %v96 = vld [vmem:[%s1 + $0x14c] sm:$0xf]
  %v97 = vld [vmem:[%s1 + $0x150] sm:$0xf]
  %v98 = vld [vmem:[%s1 + $0x154] sm:$0xf]
  %v99 = vld [vmem:[%s1 + $0x158] sm:$0xf]
  %v100 = vld [vmem:[%s1 + $0x15c] sm:$0xf]
  %v101 = vld [vmem:[%s1 + $0x160] sm:$0xf]
  %v102 = vld [vmem:[%s1 + $0x164] sm:$0xf]
  %v103 = vld [vmem:[%s1 + $0x168] sm:$0xf]
  %v104 = vld [vmem:[%s1 + $0x16c] sm:$0xf]
  %v105 = vld [vmem:[%s1 + $0x170] sm:$0xf]
  %v106 = vld [vmem:[%s1 + $0x174] sm:$0xf]
  %v107 = vld [vmem:[%s1 + $0x178] sm:$0xf]
  %v108 = vld [vmem:[%s1 + $0x17c] sm:$0xf]
  %v109 = vld [vmem:[%s1 + $0x180] sm:$0xf]
  %v110 = vld [vmem:[%s1 + $0x184] sm:$0xf]
  %v111 = vld [vmem:[%s1 + $0x188] sm:$0xf]
  %v112 = vld [vmem:[%s1 + $0x18c] sm:$0xf]
  %v113 = vld [vmem:[%s1 + $0x190] sm:$0xf]
  %v114 = vld [vmem:[%s1 + $0x194] sm:$0xf]
  %v115 = vld [vmem:[%s1 + $0x198] sm:$0xf]
  %v116 = vld [vmem:[%s1 + $0x19c] sm:$0xf]
  %v117 = vld [vmem:[%s1 + $0x1a0] sm:$0xf]
  %v118 = vld [vmem:[%s1 + $0x1a4] sm:$0xf]
  %v119 = vld [vmem:[%s1 + $0x1a8] sm:$0xf]
  %v120 = vld [vmem:[%s1 + $0x1ac] sm:$0xf]
  %v121 = vld [vmem:[%s1 + $0x1b0] sm:$0xf]
  %v122 = vld [vmem:[%s1 + $0x1b4] sm:$0xf]
  %v123 = vld [vmem:[%s1 + $0x1b8] sm:$0xf]
  %v124 = vld [vmem:[%s1 + $0x1bc] sm:$0xf]
  %v125 = vld [vmem:[%s1 + $0x1c0] sm:$0xf]
  %v126 = vld [vmem:[%s1 + $0x1c4] sm:$0xf]
  %v127 = vld [vmem:[%s1 + $0x1c8] sm:$0xf]
  %v128 = vld [vmem:[%s1 + $0x1cc] sm:$0xf]
  %v129 = vld [vmem:[%s1 + $0x1d0] sm:$0xf]
  %v130 = vld [vmem:[%s1 + $0x1d4] sm:$0xf]
  %v131 = vld [vmem:[%s1 + $0x1d8] sm:$0xf]
  %v132 = vld [vmem:[%s1 + $0x1dc] sm:$0xf]
  %v133 = vld [vmem:[%s1 + $0x1e0] sm:$0xf]
  %v134 = vld [vmem:[%s1 + $0x1e4] sm:$0xf]
  %v135 = vld [vmem:[%s1 + $0x1e8] sm:$0xf]
  %v136 = vld [vmem:[%s1 + $0x1ec] sm:$0xf]
  %v137 = vld [vmem:[%s1 + $0x1f0] sm:$0xf]
  %v138 = vld [vmem:[%s1 + $0x1f4] sm:$0xf]
  %v139 = vld [vmem:[%s1 + $0x1f8] sm:$0xf]
  %v140 = vld [vmem:[%s1 + $0x1fc] sm:$0xf]
  %v142 = vcombine.high %v12, %v12
  %v144 = vunpack.c.l.s4 1966171168
  %v145 = vunpack.c.0.s8 %v144
  %v146 = vlaneseq
  %v147 = vshrl.u32 %v146, 7
  %v148 = vsub.s32 %v145, %v147
  %v149 = vrot.slane %v12, %v148
  %v151 = vunpack.c.l.s4 1966171168
  %v152 = vunpack.c.0.s8 %v151
  %v153 = vlaneseq
  %v154 = vshrl.u32 %v153, 7
  %v155 = vsub.s32 %v152, %v154
  %v156 = vrot.slane %v142, %v155
  %v157 = vcombine.high %v149, %v149
  %v158 = vcombine.high %v156, %v156
  %v160 = vunpack.c.l.s4 1966171168
  %v161 = vunpack.c.0.s8 %v160
  %v162 = vlaneseq
  %v163 = vshrl.u32 %v162, 7
  %v164 = vsub.s32 %v161, %v163
  %v165 = vrot.slane %v149, %v164
  %v167 = vunpack.c.l.s4 1966171168
  %v168 = vunpack.c.0.s8 %v167
  %v169 = vlaneseq
  %v170 = vshrl.u32 %v169, 7
  %v171 = vsub.s32 %v168, %v170
  %v172 = vrot.slane %v156, %v171
  %v174 = vunpack.c.l.s4 1966171168
  %v175 = vunpack.c.0.s8 %v174
  %v176 = vlaneseq
  %v177 = vshrl.u32 %v176, 7
  %v178 = vsub.s32 %v175, %v177
  %v179 = vrot.slane %v157, %v178
  %v181 = vunpack.c.l.s4 1966171168
  %v182 = vunpack.c.0.s8 %v181
  %v183 = vlaneseq
  %v184 = vshrl.u32 %v183, 7
  %v185 = vsub.s32 %v182, %v184
  %v186 = vrot.slane %v158, %v185
  %v187 = vcombine.high %v165, %v165
  %v188 = vcombine.high %v172, %v172
  %v189 = vcombine.high %v179, %v179
  %v190 = vcombine.high %v186, %v186
  %v327 = vunpack.c.l.b16 %v13
  %v328 = vunpack.c.l.b16 %v14
  %v329 = vunpack.c.l.b16 %v15
  %v330 = vunpack.c.l.b16 %v16
  %v331 = vunpack.c.l.b16 %v17
  %v332 = vunpack.c.l.b16 %v18
  %v333 = vunpack.c.l.b16 %v19
  %v334 = vunpack.c.l.b16 %v20
  %v335 = vunpack.c.l.b16 %v21
  %v336 = vunpack.c.l.b16 %v22
  %v337 = vunpack.c.l.b16 %v23
  %v338 = vunpack.c.l.b16 %v24
  %v339 = vunpack.c.l.b16 %v25
  %v340 = vunpack.c.l.b16 %v26
  %v341 = vunpack.c.l.b16 %v27
  %v342 = vunpack.c.l.b16 %v28
  %v343 = vunpack.c.l.b16 %v29
  %v344 = vunpack.c.l.b16 %v30
  %v345 = vunpack.c.l.b16 %v31
  %v346 = vunpack.c.l.b16 %v32
  %v347 = vunpack.c.l.b16 %v33
  %v348 = vunpack.c.l.b16 %v34
  %v349 = vunpack.c.l.b16 %v35
  %v350 = vunpack.c.l.b16 %v36
  %v351 = vunpack.c.l.b16 %v37
  %v352 = vunpack.c.l.b16 %v38
  %v353 = vunpack.c.l.b16 %v39
  %v354 = vunpack.c.l.b16 %v40
  %v355 = vunpack.c.l.b16 %v41
  %v356 = vunpack.c.l.b16 %v42
  %v357 = vunpack.c.l.b16 %v43
  %v358 = vunpack.c.l.b16 %v44
  %v359 = vunpack.c.l.b16 %v45
  %v360 = vunpack.c.l.b16 %v46
  %v361 = vunpack.c.l.b16 %v47
  %v362 = vunpack.c.l.b16 %v48
  %v363 = vunpack.c.l.b16 %v49
  %v364 = vunpack.c.l.b16 %v50
  %v365 = vunpack.c.l.b16 %v51
  %v366 = vunpack.c.l.b16 %v52
  %v367 = vunpack.c.l.b16 %v53
  %v368 = vunpack.c.l.b16 %v54
  %v369 = vunpack.c.l.b16 %v55
  %v370 = vunpack.c.l.b16 %v56
  %v371 = vunpack.c.l.b16 %v57
  %v372 = vunpack.c.l.b16 %v58
  %v373 = vunpack.c.l.b16 %v59
  %v374 = vunpack.c.l.b16 %v60
  %v375 = vunpack.c.l.b16 %v61
  %v376 = vunpack.c.l.b16 %v62
  %v377 = vunpack.c.l.b16 %v63
  %v378 = vunpack.c.l.b16 %v64
  %v379 = vunpack.c.l.b16 %v65
  %v380 = vunpack.c.l.b16 %v66
  %v381 = vunpack.c.l.b16 %v67
  %v382 = vunpack.c.l.b16 %v68
  %v383 = vunpack.c.l.b16 %v69
  %v384 = vunpack.c.l.b16 %v70
  %v385 = vunpack.c.l.b16 %v71
  %v386 = vunpack.c.l.b16 %v72
  %v387 = vunpack.c.l.b16 %v73
  %v388 = vunpack.c.l.b16 %v74
  %v389 = vunpack.c.l.b16 %v75
  %v390 = vunpack.c.l.b16 %v76
  %v391 = vunpack.c.l.b16 %v77
  %v392 = vunpack.c.l.b16 %v78
  %v393 = vunpack.c.l.b16 %v79
  %v394 = vunpack.c.l.b16 %v80
  %v395 = vunpack.c.l.b16 %v81
  %v396 = vunpack.c.l.b16 %v82
  %v397 = vunpack.c.l.b16 %v83
  %v398 = vunpack.c.l.b16 %v84
  %v399 = vunpack.c.l.b16 %v85
  %v400 = vunpack.c.l.b16 %v86
  %v401 = vunpack.c.l.b16 %v87
  %v402 = vunpack.c.l.b16 %v88
  %v403 = vunpack.c.l.b16 %v89
  %v404 = vunpack.c.l.b16 %v90
  %v405 = vunpack.c.l.b16 %v91
  %v406 = vunpack.c.l.b16 %v92
  %v407 = vunpack.c.l.b16 %v93
  %v408 = vunpack.c.l.b16 %v94
  %v409 = vunpack.c.l.b16 %v95
  %v410 = vunpack.c.l.b16 %v96
  %v411 = vunpack.c.l.b16 %v97
  %v412 = vunpack.c.l.b16 %v98
  %v413 = vunpack.c.l.b16 %v99
  %v414 = vunpack.c.l.b16 %v100
  %v415 = vunpack.c.l.b16 %v101
  %v416 = vunpack.c.l.b16 %v102
  %v417 = vunpack.c.l.b16 %v103
  %v418 = vunpack.c.l.b16 %v104
  %v419 = vunpack.c.l.b16 %v105
  %v420 = vunpack.c.l.b16 %v106
  %v421 = vunpack.c.l.b16 %v107
  %v422 = vunpack.c.l.b16 %v108
  %v423 = vunpack.c.l.b16 %v109
  %v424 = vunpack.c.l.b16 %v110
  %v425 = vunpack.c.l.b16 %v111
  %v426 = vunpack.c.l.b16 %v112
  %v427 = vunpack.c.l.b16 %v113
  %v428 = vunpack.c.l.b16 %v114
  %v429 = vunpack.c.l.b16 %v115
  %v430 = vunpack.c.l.b16 %v116
  %v431 = vunpack.c.l.b16 %v117
  %v432 = vunpack.c.l.b16 %v118
  %v433 = vunpack.c.l.b16 %v119
  %v434 = vunpack.c.l.b16 %v120
  %v435 = vunpack.c.l.b16 %v121
  %v436 = vunpack.c.l.b16 %v122
  %v437 = vunpack.c.l.b16 %v123
  %v438 = vunpack.c.l.b16 %v124
  %v439 = vunpack.c.l.b16 %v125
  %v440 = vunpack.c.l.b16 %v126
  %v441 = vunpack.c.l.b16 %v127
  %v442 = vunpack.c.l.b16 %v128
  %v443 = vunpack.c.l.b16 %v129
  %v444 = vunpack.c.l.b16 %v130
  %v445 = vunpack.c.l.b16 %v131
  %v446 = vunpack.c.l.b16 %v132
  %v447 = vunpack.c.l.b16 %v133
  %v448 = vunpack.c.l.b16 %v134
  %v449 = vunpack.c.l.b16 %v135
  %v450 = vunpack.c.l.b16 %v136
  %v451 = vunpack.c.l.b16 %v137
  %v452 = vunpack.c.l.b16 %v138
  %v453 = vunpack.c.l.b16 %v139
  %v454 = vunpack.c.l.b16 %v140
  %v455 = vpack.c.b16 %v328, %v327
  %v456 = vpack.c.b16 %v330, %v329
  %v457 = vpack.c.b16 %v332, %v331
  %v458 = vpack.c.b16 %v334, %v333
  %v459 = vpack.c.b16 %v336, %v335
  %v460 = vpack.c.b16 %v338, %v337
  %v461 = vpack.c.b16 %v340, %v339
  %v462 = vpack.c.b16 %v342, %v341
  %v463 = vpack.c.b16 %v344, %v343
  %v464 = vpack.c.b16 %v346, %v345
  %v465 = vpack.c.b16 %v348, %v347
  %v466 = vpack.c.b16 %v350, %v349
  %v467 = vpack.c.b16 %v352, %v351
  %v468 = vpack.c.b16 %v354, %v353
  %v469 = vpack.c.b16 %v356, %v355
  %v470 = vpack.c.b16 %v358, %v357
  %v471 = vpack.c.b16 %v360, %v359
  %v472 = vpack.c.b16 %v362, %v361
  %v473 = vpack.c.b16 %v364, %v363
  %v474 = vpack.c.b16 %v366, %v365
  %v475 = vpack.c.b16 %v368, %v367
  %v476 = vpack.c.b16 %v370, %v369
  %v477 = vpack.c.b16 %v372, %v371
  %v478 = vpack.c.b16 %v374, %v373
  %v479 = vpack.c.b16 %v376, %v375
  %v480 = vpack.c.b16 %v378, %v377
  %v481 = vpack.c.b16 %v380, %v379
  %v482 = vpack.c.b16 %v382, %v381
  %v483 = vpack.c.b16 %v384, %v383
  %v484 = vpack.c.b16 %v386, %v385
  %v485 = vpack.c.b16 %v388, %v387
  %v486 = vpack.c.b16 %v390, %v389
  %v487 = vpack.c.b16 %v392, %v391
  %v488 = vpack.c.b16 %v394, %v393
  %v489 = vpack.c.b16 %v396, %v395
  %v490 = vpack.c.b16 %v398, %v397
  %v491 = vpack.c.b16 %v400, %v399
  %v492 = vpack.c.b16 %v402, %v401
  %v493 = vpack.c.b16 %v404, %v403
  %v494 = vpack.c.b16 %v406, %v405
  %v495 = vpack.c.b16 %v408, %v407
  %v496 = vpack.c.b16 %v410, %v409
  %v497 = vpack.c.b16 %v412, %v411
  %v498 = vpack.c.b16 %v414, %v413
  %v499 = vpack.c.b16 %v416, %v415
  %v500 = vpack.c.b16 %v418, %v417
  %v501 = vpack.c.b16 %v420, %v419
  %v502 = vpack.c.b16 %v422, %v421
  %v503 = vpack.c.b16 %v424, %v423
  %v504 = vpack.c.b16 %v426, %v425
  %v505 = vpack.c.b16 %v428, %v427
  %v506 = vpack.c.b16 %v430, %v429
  %v507 = vpack.c.b16 %v432, %v431
  %v508 = vpack.c.b16 %v434, %v433
  %v509 = vpack.c.b16 %v436, %v435
  %v510 = vpack.c.b16 %v438, %v437
  %v511 = vpack.c.b16 %v440, %v439
  %v512 = vpack.c.b16 %v442, %v441
  %v513 = vpack.c.b16 %v444, %v443
  %v514 = vpack.c.b16 %v446, %v445
  %v515 = vpack.c.b16 %v448, %v447
  %v516 = vpack.c.b16 %v450, %v449
  %v517 = vpack.c.b16 %v452, %v451
  %v518 = vpack.c.b16 %v454, %v453
  %583 = vmatprep.subr.bf16.mxu0 0
  %584 = vmatpush1.bf16.msra.mxu0 %v462
  %585 = vmatprep.subr.bf16.mxu0 0
  %586 = vmatpush1.bf16.msra.mxu0 %v461
  %587 = vmatprep.subr.bf16.mxu0 0
  %588 = vmatpush1.bf16.msra.mxu0 %v460
  %589 = vmatprep.subr.bf16.mxu0 0
  %590 = vmatpush1.bf16.msra.mxu0 %v459
  %591 = vmatprep.subr.bf16.mxu0 0
  %592 = vmatpush1.bf16.msra.mxu0 %v458
  %593 = vmatprep.subr.bf16.mxu0 0
  %594 = vmatpush1.bf16.msra.mxu0 %v457
  %595 = vmatprep.subr.bf16.mxu0 0
  %596 = vmatpush1.bf16.msra.mxu0 %v456
  %597 = vmatprep.subr.bf16.mxu0 0
  %598 = vmatpush1.bf16.msra.mxu0 %v455
  %599 = vmatprep.subr.bf16.mxu0 0
  %600 = vmatpush2.bf16.msra.mxu0 %v470
  %601 = vmatprep.subr.bf16.mxu0 0
  %602 = vmatpush2.bf16.msra.mxu0 %v469
  %603 = vmatprep.subr.bf16.mxu0 0
  %604 = vmatpush2.bf16.msra.mxu0 %v468
  %605 = vmatprep.subr.bf16.mxu0 0
  %606 = vmatpush2.bf16.msra.mxu0 %v467
  %607 = vmatprep.subr.bf16.mxu0 0
  %608 = vmatpush2.bf16.msra.mxu0 %v466
  %609 = vmatprep.subr.bf16.mxu0 0
  %610 = vmatpush2.bf16.msra.mxu0 %v465
  %611 = vmatprep.subr.bf16.mxu0 0
  %612 = vmatpush2.bf16.msra.mxu0 %v464
  %613 = vmatprep.subr.bf16.mxu0 0
  %614 = vmatpush2.bf16.msra.mxu0 %v463
  %615 = vmatprep.mubr.bf16.mxu0 %v179
  %616 = vmatmul.mubr.bf16.gmra.mxu0 %v165
  %v617 = vpop.f32.mrf.mxu0
  %v618 = vadd.f32 0.0, %v617
  %v619 = vpop.f32.mrf.mxu0
  %v620 = vpop.f32.mrf.mxu0
  %v621 = vpop.f32.mrf.mxu0
  %622 = vdwg.mxu0
  %623 = vmatprep.subr.bf16.mxu0 0
  %624 = vmatpush1.bf16.msra.mxu0 %v478
  %625 = vmatprep.subr.bf16.mxu0 0
  %626 = vmatpush1.bf16.msra.mxu0 %v477
  %627 = vmatprep.subr.bf16.mxu0 0
  %628 = vmatpush1.bf16.msra.mxu0 %v476
  %629 = vmatprep.subr.bf16.mxu0 0
  %630 = vmatpush1.bf16.msra.mxu0 %v475
  %631 = vmatprep.subr.bf16.mxu0 0
  %632 = vmatpush1.bf16.msra.mxu0 %v474
  %633 = vmatprep.subr.bf16.mxu0 0
  %634 = vmatpush1.bf16.msra.mxu0 %v473
  %635 = vmatprep.subr.bf16.mxu0 0
  %636 = vmatpush1.bf16.msra.mxu0 %v472
  %637 = vmatprep.subr.bf16.mxu0 0
  %638 = vmatpush1.bf16.msra.mxu0 %v471
  %639 = vmatprep.subr.bf16.mxu0 0
  %640 = vmatpush2.bf16.msra.mxu0 %v486
  %641 = vmatprep.subr.bf16.mxu0 0
  %642 = vmatpush2.bf16.msra.mxu0 %v485
  %643 = vmatprep.subr.bf16.mxu0 0
  %644 = vmatpush2.bf16.msra.mxu0 %v484
  %645 = vmatprep.subr.bf16.mxu0 0
  %646 = vmatpush2.bf16.msra.mxu0 %v483
  %647 = vmatprep.subr.bf16.mxu0 0
  %648 = vmatpush2.bf16.msra.mxu0 %v482
  %649 = vmatprep.subr.bf16.mxu0 0
  %650 = vmatpush2.bf16.msra.mxu0 %v481
  %651 = vmatprep.subr.bf16.mxu0 0
  %652 = vmatpush2.bf16.msra.mxu0 %v480
  %653 = vmatprep.subr.bf16.mxu0 0
  %654 = vmatpush2.bf16.msra.mxu0 %v479
  %655 = vmatprep.mubr.bf16.mxu0 %v189
  %656 = vmatmul.mubr.bf16.gmra.mxu0 %v187
  %v657 = vpop.f32.mrf.mxu0
  %v658 = vadd.f32 %v618, %v657
  %v659 = vpop.f32.mrf.mxu0
  %v660 = vpop.f32.mrf.mxu0
  %v661 = vpop.f32.mrf.mxu0
  %662 = vdwg.mxu0
  %663 = vmatprep.subr.bf16.mxu0 0
  %664 = vmatpush1.bf16.msra.mxu0 %v494
  %665 = vmatprep.subr.bf16.mxu0 0
  %666 = vmatpush1.bf16.msra.mxu0 %v493
  %667 = vmatprep.subr.bf16.mxu0 0
  %668 = vmatpush1.bf16.msra.mxu0 %v492
  %669 = vmatprep.subr.bf16.mxu0 0
  %670 = vmatpush1.bf16.msra.mxu0 %v491
  %671 = vmatprep.subr.bf16.mxu0 0
  %672 = vmatpush1.bf16.msra.mxu0 %v490
  %673 = vmatprep.subr.bf16.mxu0 0
  %674 = vmatpush1.bf16.msra.mxu0 %v489
  %675 = vmatprep.subr.bf16.mxu0 0
  %676 = vmatpush1.bf16.msra.mxu0 %v488
  %677 = vmatprep.subr.bf16.mxu0 0
  %678 = vmatpush1.bf16.msra.mxu0 %v487
  %679 = vmatprep.subr.bf16.mxu0 0
  %680 = vmatpush2.bf16.msra.mxu0 %v502
  %681 = vmatprep.subr.bf16.mxu0 0
  %682 = vmatpush2.bf16.msra.mxu0 %v501
  %683 = vmatprep.subr.bf16.mxu0 0
  %684 = vmatpush2.bf16.msra.mxu0 %v500
  %685 = vmatprep.subr.bf16.mxu0 0
  %686 = vmatpush2.bf16.msra.mxu0 %v499
  %687 = vmatprep.subr.bf16.mxu0 0
  %688 = vmatpush2.bf16.msra.mxu0 %v498
  %689 = vmatprep.subr.bf16.mxu0 0
  %690 = vmatpush2.bf16.msra.mxu0 %v497
  %691 = vmatprep.subr.bf16.mxu0 0
  %692 = vmatpush2.bf16.msra.mxu0 %v496
  %693 = vmatprep.subr.bf16.mxu0 0
  %694 = vmatpush2.bf16.msra.mxu0 %v495
  %695 = vmatprep.mubr.bf16.mxu0 %v186
  %696 = vmatmul.mubr.bf16.gmra.mxu0 %v172
  %v697 = vpop.f32.mrf.mxu0
  %v698 = vadd.f32 %v658, %v697
  %v699 = vpop.f32.mrf.mxu0
  %v700 = vpop.f32.mrf.mxu0
  %v701 = vpop.f32.mrf.mxu0
  %702 = vdwg.mxu0
  %703 = vmatprep.subr.bf16.mxu0 0
  %704 = vmatpush1.bf16.msra.mxu0 %v510
  %705 = vmatprep.subr.bf16.mxu0 0
  %706 = vmatpush1.bf16.msra.mxu0 %v509
  %707 = vmatprep.subr.bf16.mxu0 0
  %708 = vmatpush1.bf16.msra.mxu0 %v508
  %709 = vmatprep.subr.bf16.mxu0 0
  %710 = vmatpush1.bf16.msra.mxu0 %v507
  %711 = vmatprep.subr.bf16.mxu0 0
  %712 = vmatpush1.bf16.msra.mxu0 %v506
  %713 = vmatprep.subr.bf16.mxu0 0
  %714 = vmatpush1.bf16.msra.mxu0 %v505
  %715 = vmatprep.subr.bf16.mxu0 0
  %716 = vmatpush1.bf16.msra.mxu0 %v504
  %717 = vmatprep.subr.bf16.mxu0 0
  %718 = vmatpush1.bf16.msra.mxu0 %v503
  %719 = vmatprep.subr.bf16.mxu0 0
  %720 = vmatpush2.bf16.msra.mxu0 %v518
  %721 = vmatprep.subr.bf16.mxu0 0
  %722 = vmatpush2.bf16.msra.mxu0 %v517
  %723 = vmatprep.subr.bf16.mxu0 0
  %724 = vmatpush2.bf16.msra.mxu0 %v516
  %725 = vmatprep.subr.bf16.mxu0 0
  %726 = vmatpush2.bf16.msra.mxu0 %v515
  %727 = vmatprep.subr.bf16.mxu0 0
  %728 = vmatpush2.bf16.msra.mxu0 %v514
  %729 = vmatprep.subr.bf16.mxu0 0
  %730 = vmatpush2.bf16.msra.mxu0 %v513
  %731 = vmatprep.subr.bf16.mxu0 0
  %732 = vmatpush2.bf16.msra.mxu0 %v512
  %733 = vmatprep.subr.bf16.mxu0 0
  %734 = vmatpush2.bf16.msra.mxu0 %v511
  %735 = vmatprep.mubr.bf16.mxu0 %v190
  %736 = vmatmul.mubr.bf16.gmra.mxu0 %v188
  %v737 = vpop.f32.mrf.mxu0
  %v738 = vadd.f32 %v698, %v737
  %v739 = vpop.f32.mrf.mxu0
  %v740 = vpop.f32.mrf.mxu0
  %v741 = vpop.f32.mrf.mxu0
  %742 = vdwg.mxu0
  %v743 = vsub.f32 0.0, %v738
  %v744 = vmul.f32 %v743, 1.442695
  %v745 = vpow.pop %v744
  %v746 = vadd.f32 %v745, 1.0
  %v747 = vrcp.pop %v746
  %748 = vst [vmem:[%s2] sm:$0x3] %v747
  // Predicated region
  $region10: #{discriminator_forward.9} parent=0 // pred_check
    _
  $region11: #{discriminator_forward.9} parent=0 // pred_check_branch
    %750 = sbr.rel (0) target = $region13
  $region12: #{discriminator_forward.9} parent=0 // pred_region
    _
  $region13: #{discriminator_forward.9} parent=0 // pred_fallthru
    _
  // Predicated region
  $region14: #{discriminator_forward.9} parent=0 // pred_check
    _
  $region15: #{discriminator_forward.9} parent=0 // pred_check_branch
    %752 = sbr.rel (0) target = $region17
  $region16: #{discriminator_forward.9} parent=0 // pred_region
    _
  $region17: #{discriminator_forward.9} parent=0 // pred_fallthru
    _

</llo_original>
